<compile_context>
chip_gen: v7x
topology: tpu7x:2x2x1
jax: 0.10.0
libtpu: 0.0.40
codegen_flags: <defaults>
</compile_context>

<pallas_src>
import jax
import jax.numpy as jnp
from jax.experimental import pallas as pl
from jax.experimental.pallas import tpu as pltpu

IN_F = 1024   # fc0 in_features
HID = 256     # fc0 out_features == fc1 in_features
OUT_F = 256   # fc1 out_features
DROP_P = 0.5


def mymodule_kernel(data_ref, mask_ref, w0_ref, w1_ref, res_ref, out_ref):
    # data_ref : (M, 1024)  f32  VMEM
    # mask_ref : (M, 1024)  f32  VMEM   (0.0 / 1.0 dropout keep mask)
    # w0_ref   : (1024, 256) bf16 VMEM  (fc0 weight, pre-transposed)
    # w1_ref   : (256, 256)  bf16 VMEM  (fc1 weight, pre-transposed)
    # res_ref  : (M, 256)   f32  VMEM
    # out_ref  : (M, 256)   f32  VMEM

    # Dropout: keep-mask multiply only.  The 1/(1-p)=2.0 rescale and the final
    # *0.5 of the module cancel exactly (both Linear layers are bias-free).
    x = data_ref[...] * mask_ref[...]                      # f32 on the VPU

    # fc0 -> fc1 on the MXU: bf16 operands, f32 accumulation.
    h = jnp.dot(x.astype(jnp.bfloat16), w0_ref[...],
                preferred_element_type=jnp.float32)
    y = jnp.dot(h.astype(jnp.bfloat16), w1_ref[...],
                preferred_element_type=jnp.float32)

    # Residual add (the *0.5 has already been folded away).
    out_ref[...] = res_ref[...] + y


def mymodule_forward(data, keep_mask, w0_t, w1_t, residual):
    M = data.shape[0]
    return pl.pallas_call(
        mymodule_kernel,
        out_shape=jax.ShapeDtypeStruct((M, OUT_F), jnp.float32),
        grid=(1,),
        in_specs=[
            pl.BlockSpec((M, IN_F), lambda i: (0, 0)),
            pl.BlockSpec((M, IN_F), lambda i: (0, 0)),
            pl.BlockSpec((IN_F, HID), lambda i: (0, 0)),
            pl.BlockSpec((HID, OUT_F), lambda i: (0, 0)),
            pl.BlockSpec((M, OUT_F), lambda i: (0, 0)),
        ],
        out_specs=pl.BlockSpec((M, OUT_F), lambda i: (0, 0)),
        compiler_params=pltpu.CompilerParams(
            dimension_semantics=("arbitrary",)),
    )(data, keep_mask, w0_t, w1_t, residual)


if __name__ == "__main__":
    key = jax.random.PRNGKey(0)
    k_data, k_res, k_w0, k_w1, k_drop = jax.random.split(key, 5)

    # residual is a fixed (256, 256) tensor in the reference module -> batch = 256
    M = 256
    data = jax.random.uniform(k_data, (M, IN_F), dtype=jnp.float32)
    residual = jax.random.uniform(k_res, (M, OUT_F), dtype=jnp.float32)

    # Deterministic parameter init mimicking torch.nn.Linear (uniform +-1/sqrt(fan_in)),
    # stored pre-transposed as (in, out) and shipped in bf16 for the MXU.
    b0 = 1.0 / jnp.sqrt(jnp.float32(IN_F))
    b1 = 1.0 / jnp.sqrt(jnp.float32(HID))
    w0_t = jax.random.uniform(k_w0, (IN_F, HID), dtype=jnp.float32,
                              minval=-b0, maxval=b0).astype(jnp.bfloat16)
    w1_t = jax.random.uniform(k_w1, (HID, OUT_F), dtype=jnp.float32,
                              minval=-b1, maxval=b1).astype(jnp.bfloat16)

    # Dropout keep mask, Bernoulli(1 - p), as 0/1 float32.
    keep_mask = jax.random.bernoulli(k_drop, 1.0 - DROP_P,
                                     (M, IN_F)).astype(jnp.float32)

    out = mymodule_forward(data, keep_mask, w0_t, w1_t, residual)
    out = jax.block_until_ready(out)
    assert out.shape == (M, OUT_F) and out.dtype == jnp.float32

    # Reference (same bf16 operand rounding, f32 accumulation) for sanity.
    xr = (data * keep_mask).astype(jnp.bfloat16)
    hr = jnp.dot(xr, w0_t, preferred_element_type=jnp.float32)
    yr = jnp.dot(hr.astype(jnp.bfloat16), w1_t, preferred_element_type=jnp.float32)
    ref = residual + yr
    assert jnp.allclose(out, ref, rtol=1e-2, atol=1e-2)

    print("KERNEL_OK")
</pallas_src>

<mosaic_0001>
module attributes {stable_mosaic.version = 11 : i64} {
  func.func @mymodule_kernel(%arg0: i32, %arg1: memref<256x1024xf32, #tpu.memory_space<vmem>>, %arg2: memref<256x1024xf32, #tpu.memory_space<vmem>>, %arg3: memref<1024x256xbf16, #tpu.memory_space<vmem>>, %arg4: memref<256x256xbf16, #tpu.memory_space<vmem>>, %arg5: memref<256x256xf32, #tpu.memory_space<vmem>>, %arg6: memref<256x256xf32, #tpu.memory_space<vmem>>) attributes {dimension_semantics = [#tpu.dimension_semantics<arbitrary>], iteration_bounds = array<i64: 1>, scalar_prefetch = 0 : i64, scratch_operands = 0 : i64, tpu.core_type = #tpu.core_type<tc>, window_params = [{pipeline_mode = #tpu.pipeline_mode<synchronous>, transform_indices = @transform_0, window_bounds = array<i64: 256, 1024>}, {pipeline_mode = #tpu.pipeline_mode<synchronous>, transform_indices = @transform_1, window_bounds = array<i64: 256, 1024>}, {pipeline_mode = #tpu.pipeline_mode<synchronous>, transform_indices = @transform_2, window_bounds = array<i64: 1024, 256>}, {pipeline_mode = #tpu.pipeline_mode<synchronous>, transform_indices = @transform_3, window_bounds = array<i64: 256, 256>}, {pipeline_mode = #tpu.pipeline_mode<synchronous>, transform_indices = @transform_4, window_bounds = array<i64: 256, 256>}, {pipeline_mode = #tpu.pipeline_mode<synchronous>, transform_indices = @transform_5, window_bounds = array<i64: 256, 256>}]} {
    %c0 = arith.constant 0 : index
    %c0_0 = arith.constant 0 : index
    %0 = vector.load %arg1[%c0, %c0_0] : memref<256x1024xf32, #tpu.memory_space<vmem>>, vector<256x1024xf32>
    %c0_1 = arith.constant 0 : index
    %c0_2 = arith.constant 0 : index
    %1 = vector.load %arg2[%c0_1, %c0_2] : memref<256x1024xf32, #tpu.memory_space<vmem>>, vector<256x1024xf32>
    %2 = arith.mulf %0, %1 : vector<256x1024xf32>
    %3 = arith.truncf %2 : vector<256x1024xf32> to vector<256x1024xbf16>
    %c0_3 = arith.constant 0 : index
    %c0_4 = arith.constant 0 : index
    %4 = vector.load %arg3[%c0_3, %c0_4] : memref<1024x256xbf16, #tpu.memory_space<vmem>>, vector<1024x256xbf16>
    %cst = arith.constant dense<0.000000e+00> : vector<256x256xf32>
    %5 = tpu.matmul %3, %4, %cst {dimension_numbers = #tpu.dot_dimension_numbers<[1], [0], [0], [1], [0, 0, 1, 1], [], []>} : vector<256x1024xbf16>, vector<1024x256xbf16>, vector<256x256xf32> -> vector<256x256xf32>
    %6 = arith.truncf %5 : vector<256x256xf32> to vector<256x256xbf16>
    %c0_5 = arith.constant 0 : index
    %c0_6 = arith.constant 0 : index
    %7 = vector.load %arg4[%c0_5, %c0_6] : memref<256x256xbf16, #tpu.memory_space<vmem>>, vector<256x256xbf16>
    %cst_7 = arith.constant dense<0.000000e+00> : vector<256x256xf32>
    %8 = tpu.matmul %6, %7, %cst_7 {dimension_numbers = #tpu.dot_dimension_numbers<[1], [0], [0], [1], [0, 0, 1, 1], [], []>} : vector<256x256xbf16>, vector<256x256xbf16>, vector<256x256xf32> -> vector<256x256xf32>
    %c0_8 = arith.constant 0 : index
    %c0_9 = arith.constant 0 : index
    %9 = vector.load %arg5[%c0_8, %c0_9] : memref<256x256xf32, #tpu.memory_space<vmem>>, vector<256x256xf32>
    %10 = arith.addf %9, %8 : vector<256x256xf32>
    %c0_10 = arith.constant 0 : index
    %c0_11 = arith.constant 0 : index
    %11 = vector.load %arg6[%c0_10, %c0_11] : memref<256x256xf32, #tpu.memory_space<vmem>>, vector<256x256xf32>
    tpu.vector_store %arg6[%c0_10, %c0_11], %10 {strides = array<i32>} : memref<256x256xf32, #tpu.memory_space<vmem>>, vector<256x256xf32>,
    return
  }
  func.func @transform_0(%arg0: i32) -> (i32, i32) {
    %c0_i32 = arith.constant 0 : i32
    %c0_i32_0 = arith.constant 0 : i32
    %c0_i32_1 = arith.constant 0 : i32
    return %c0_i32, %c0_i32_0 : i32, i32
  }
  func.func @transform_1(%arg0: i32) -> (i32, i32) {
    %c0_i32 = arith.constant 0 : i32
    %c0_i32_0 = arith.constant 0 : i32
    %c0_i32_1 = arith.constant 0 : i32
    return %c0_i32, %c0_i32_0 : i32, i32
  }
  func.func @transform_2(%arg0: i32) -> (i32, i32) {
    %c0_i32 = arith.constant 0 : i32
    %c0_i32_0 = arith.constant 0 : i32
    %c0_i32_1 = arith.constant 0 : i32
    return %c0_i32, %c0_i32_0 : i32, i32
  }
  func.func @transform_3(%arg0: i32) -> (i32, i32) {
    %c0_i32 = arith.constant 0 : i32
    %c0_i32_0 = arith.constant 0 : i32
    %c0_i32_1 = arith.constant 0 : i32
    return %c0_i32, %c0_i32_0 : i32, i32
  }
  func.func @transform_4(%arg0: i32) -> (i32, i32) {
    %c0_i32 = arith.constant 0 : i32
    %c0_i32_0 = arith.constant 0 : i32
    %c0_i32_1 = arith.constant 0 : i32
    return %c0_i32, %c0_i32_0 : i32, i32
  }
  func.func @transform_5(%arg0: i32) -> (i32, i32) {
    %c0_i32 = arith.constant 0 : i32
    %c0_i32_0 = arith.constant 0 : i32
    %c0_i32_1 = arith.constant 0 : i32
    return %c0_i32, %c0_i32_0 : i32, i32
  }
}

</mosaic_0001>

<llo_original>
// kernel: tpu_custom_call.1
$region0: #{tpu_custom_call.1}
  #allocation0 [shape = 'u32[]', space=smem, size = 0x4, offset = 0x4, fixed_abs, tag = 'smem constant byte address 0x4 - core index']
  #allocation1 [shape = 'u32[144,128]{1,0:T(1,128)}', space=vmem, size = 0x12000, scoped, tag = 'internal scratch']
  %s0 = inlined_call_operand.hbm [shape: f32[256,1024], index: 0, kind: input, shape index: {}]
  %s1 = inlined_call_operand.hbm [shape: f32[256,1024], index: 1, kind: input, shape index: {}]
  %s2 = inlined_call_operand.hbm [shape: bf16[1024,256], index: 2, kind: input, shape index: {}]
  %s3 = inlined_call_operand.hbm [shape: bf16[256,256], index: 3, kind: input, shape index: {}]
  %s4 = inlined_call_operand.hbm [shape: f32[256,256], index: 4, kind: input, shape index: {}]
  %s5 = inlined_call_operand.hbm [shape: f32[256,256], index: 5, kind: output, shape index: {}]
  %s6 = sld [smem:[#allocation0]]
  $region50: #{tpu_custom_call.1} parent=0
    _
  %s8 = ssub.s32 1, %s6
  %s9 = scalar_select 0, %s8, %s6
  $region1: #{tpu_custom_call.1} parent=0
    #allocation2 [shape = 'u8[1048576]{0}', space=vmem, size = 0x100000, scoped, tag = 'input window, operand 0, single buffered']
    #allocation3 [shape = 's32[1]{0}', space=sflag, size = 0x4, scoped, tag = 'scoped memory for tpu_custom_call.1']
    #allocation4 [shape = 's32[1]{0}', space=sflag, size = 0x4, scoped, tag = 'scoped memory for tpu_custom_call.1']
    #allocation5 [shape = 'u8[1048576]{0}', space=vmem, size = 0x100000, scoped, tag = 'input window, operand 1, single buffered']
    #allocation6 [shape = 's32[1]{0}', space=sflag, size = 0x4, scoped, tag = 'scoped memory for tpu_custom_call.1']
    #allocation7 [shape = 'u8[524288]{0}', space=vmem, size = 0x80000, scoped, tag = 'input window, operand 2, single buffered']
    #allocation8 [shape = 'u8[131072]{0}', space=vmem, size = 0x20000, scoped, tag = 'input window, operand 3, single buffered']
    #allocation9 [shape = 's32[1]{0}', space=sflag, size = 0x4, scoped, tag = 'scoped memory for tpu_custom_call.1']
    #allocation10 [shape = 'u8[262144]{0}', space=vmem, size = 0x40000, scoped, tag = 'input window, operand 4, single buffered']
    #allocation11 [shape = 'u8[262144]{0}', space=vmem, size = 0x40000, scoped, tag = 'output window, operand 0, single buffered']
    %10 = vsyncpa [#allocation3], 0
    %11 = vsyncpa [#allocation6], 0
    %12 = vsyncpa [#allocation9], 0
    %13 = vsyncpa [#allocation4], 0
    // Predicated region
    $region2: #{tpu_custom_call.1} parent=1 // pred_check
      _
    $region3: #{tpu_custom_call.1} parent=1 // pred_check_branch
      %15 = sbr.rel (0) target = $region5
    $region4: #{tpu_custom_call.1} parent=1 // pred_region
      %s17 = ssub.s32 32768, 32768
      %18 = vsyncadd [#allocation3], %s17
      %s19 = sshll.u32 [#allocation2], 4
      %s20 = int_to_ptr.vmem [resolvable:$true] %s19
      %25 = dma.hbm_to_vmem [thread:$0]  %s0, 32768, %s20, [#allocation3], 1024, 1024, 64
    $region5: #{tpu_custom_call.1} parent=1 // pred_fallthru
      _
    // Predicated region
    $region6: #{tpu_custom_call.1} parent=1 // pred_check
      _
    $region7: #{tpu_custom_call.1} parent=1 // pred_check_branch
      %27 = sbr.rel (0) target = $region9
    $region8: #{tpu_custom_call.1} parent=1 // pred_region
      %s29 = ssub.s32 32768, 32768
      %30 = vsyncadd [#allocation6], %s29
      %s31 = sshll.u32 [#allocation5], 4
      %s32 = int_to_ptr.vmem [resolvable:$true] %s31
      %37 = dma.hbm_to_vmem [thread:$0]  %s1, 32768, %s32, [#allocation6], 1024, 1024, 64
    $region9: #{tpu_custom_call.1} parent=1 // pred_fallthru
      _
    // Predicated region
    $region10: #{tpu_custom_call.1} parent=1 // pred_check
      _
    $region11: #{tpu_custom_call.1} parent=1 // pred_check_branch
      %39 = sbr.rel (0) target = $region13
    $region12: #{tpu_custom_call.1} parent=1 // pred_region
      %s41 = ssub.s32 16384, 16384
      %42 = vsyncadd [#allocation6], %s41
      %s43 = sshll.u32 [#allocation7], 4
      %s44 = int_to_ptr.vmem [resolvable:$true] %s43
      %49 = dma.hbm_to_vmem [thread:$0]  %s2, 16384, %s44, [#allocation6], 128, 128, 8
    $region13: #{tpu_custom_call.1} parent=1 // pred_fallthru
      _
    // Predicated region
    $region14: #{tpu_custom_call.1} parent=1 // pred_check
      _
    $region15: #{tpu_custom_call.1} parent=1 // pred_check_branch
      %51 = sbr.rel (0) target = $region17
    $region16: #{tpu_custom_call.1} parent=1 // pred_region
      %s53 = ssub.s32 4096, 4096
      %54 = vsyncadd [#allocation9], %s53
      %s55 = sshll.u32 [#allocation8], 4
      %s56 = int_to_ptr.vmem [resolvable:$true] %s55
      %61 = dma.hbm_to_vmem [thread:$0]  %s3, 4096, %s56, [#allocation9], 128, 128, 8
    $region17: #{tpu_custom_call.1} parent=1 // pred_fallthru
      _
    // Predicated region
    $region18: #{tpu_custom_call.1} parent=1 // pred_check
      _
    $region19: #{tpu_custom_call.1} parent=1 // pred_check_branch
      %63 = sbr.rel (0) target = $region21
    $region20: #{tpu_custom_call.1} parent=1 // pred_region
      %s65 = ssub.s32 8192, 8192
      %66 = vsyncadd [#allocation9], %s65
      %s67 = sshll.u32 [#allocation10], 4
      %s68 = int_to_ptr.vmem [resolvable:$true] %s67
      %73 = dma.hbm_to_vmem [thread:$0]  %s4, 8192, %s68, [#allocation9], 256, 256, 16
    $region21: #{tpu_custom_call.1} parent=1 // pred_fallthru
      _
    // Predicated region
    $region22: #{tpu_custom_call.1} parent=1 // pred_check
      _
    $region23: #{tpu_custom_call.1} parent=1 // pred_check_branch
      %75 = sbr.rel (0) target = $region25
    $region24: #{tpu_custom_call.1} parent=1 // pred_region
      %76 = dma.done [#allocation3], 32768
    $region25: #{tpu_custom_call.1} parent=1 // pred_fallthru
      _
    // Predicated region
    $region26: #{tpu_custom_call.1} parent=1 // pred_check
      _
    $region27: #{tpu_custom_call.1} parent=1 // pred_check_branch
      %78 = sbr.rel (0) target = $region29
    $region28: #{tpu_custom_call.1} parent=1 // pred_region
      %79 = dma.done [#allocation6], 32768
    $region29: #{tpu_custom_call.1} parent=1 // pred_fallthru
      _
    // Predicated region
    $region30: #{tpu_custom_call.1} parent=1 // pred_check
      _
    $region31: #{tpu_custom_call.1} parent=1 // pred_check_branch
      %81 = sbr.rel (0) target = $region33
    $region32: #{tpu_custom_call.1} parent=1 // pred_region
      %82 = dma.done [#allocation6], 16384
    $region33: #{tpu_custom_call.1} parent=1 // pred_fallthru
      _
    // Predicated region
    $region34: #{tpu_custom_call.1} parent=1 // pred_check
      _
    $region35: #{tpu_custom_call.1} parent=1 // pred_check_branch
      %84 = sbr.rel (0) target = $region37
    $region36: #{tpu_custom_call.1} parent=1 // pred_region
      %85 = dma.done [#allocation9], 4096
    $region37: #{tpu_custom_call.1} parent=1 // pred_fallthru
      _
    // Predicated region
    $region38: #{tpu_custom_call.1} parent=1 // pred_check
      _
    $region39: #{tpu_custom_call.1} parent=1 // pred_check_branch
      %87 = sbr.rel (0) target = $region41
    $region40: #{tpu_custom_call.1} parent=1 // pred_region
      %88 = dma.done [#allocation9], 8192
    $region41: #{tpu_custom_call.1} parent=1 // pred_fallthru
      _
    %v89 = vld [vmem:[#allocation2] sm:$0xff]
    %v90 = vld [vmem:[#allocation2 + $0x8] sm:$0xff]
    %v91 = vld [vmem:[#allocation2 + $0x10] sm:$0xff]
    %v92 = vld [vmem:[#allocation2 + $0x18] sm:$0xff]
    %v93 = vld [vmem:[#allocation2 + $0x20] sm:$0xff]
    %v94 = vld [vmem:[#allocation2 + $0x28] sm:$0xff]
    %v95 = vld [vmem:[#allocation2 + $0x30] sm:$0xff]
    %v96 = vld [vmem:[#allocation2 + $0x38] sm:$0xff]
    %v97 = vld [vmem:[#allocation2 + $0x40] sm:$0xff]
    %v98 = vld [vmem:[#allocation2 + $0x48] sm:$0xff]
    %v99 = vld [vmem:[#allocation2 + $0x50] sm:$0xff]
    %v100 = vld [vmem:[#allocation2 + $0x58] sm:$0xff]
    %v101 = vld [vmem:[#allocation2 + $0x60] sm:$0xff]
    %v102 = vld [vmem:[#allocation2 + $0x68] sm:$0xff]
    %v103 = vld [vmem:[#allocation2 + $0x70] sm:$0xff]
    %v104 = vld [vmem:[#allocation2 + $0x78] sm:$0xff]
    %v105 = vld [vmem:[#allocation2 + $0x80] sm:$0xff]
    %v106 = vld [vmem:[#allocation2 + $0x88] sm:$0xff]
    %v107 = vld [vmem:[#allocation2 + $0x90] sm:$0xff]
    %v108 = vld [vmem:[#allocation2 + $0x98] sm:$0xff]
    %v109 = vld [vmem:[#allocation2 + $0xa0] sm:$0xff]
    %v110 = vld [vmem:[#allocation2 + $0xa8] sm:$0xff]
    %v111 = vld [vmem:[#allocation2 + $0xb0] sm:$0xff]
    %v112 = vld [vmem:[#allocation2 + $0xb8] sm:$0xff]
    %v113 = vld [vmem:[#allocation2 + $0xc0] sm:$0xff]
    %v114 = vld [vmem:[#allocation2 + $0xc8] sm:$0xff]
    %v115 = vld [vmem:[#allocation2 + $0xd0] sm:$0xff]
    %v116 = vld [vmem:[#allocation2 + $0xd8] sm:$0xff]
    %v117 = vld [vmem:[#allocation2 + $0xe0] sm:$0xff]
    %v118 = vld [vmem:[#allocation2 + $0xe8] sm:$0xff]
    %v119 = vld [vmem:[#allocation2 + $0xf0] sm:$0xff]
    %v120 = vld [vmem:[#allocation2 + $0xf8] sm:$0xff]
    %v121 = vld [vmem:[#allocation2 + $0x100] sm:$0xff]
    %v122 = vld [vmem:[#allocation2 + $0x108] sm:$0xff]
    %v123 = vld [vmem:[#allocation2 + $0x110] sm:$0xff]
    %v124 = vld [vmem:[#allocation2 + $0x118] sm:$0xff]
    %v125 = vld [vmem:[#allocation2 + $0x120] sm:$0xff]
    %v126 = vld [vmem:[#allocation2 + $0x128] sm:$0xff]
    %v127 = vld [vmem:[#allocation2 + $0x130] sm:$0xff]
    %v128 = vld [vmem:[#allocation2 + $0x138] sm:$0xff]
    %v129 = vld [vmem:[#allocation2 + $0x140] sm:$0xff]
    %v130 = vld [vmem:[#allocation2 + $0x148] sm:$0xff]
    %v131 = vld [vmem:[#allocation2 + $0x150] sm:$0xff]
    %v132 = vld [vmem:[#allocation2 + $0x158] sm:$0xff]
    %v133 = vld [vmem:[#allocation2 + $0x160] sm:$0xff]
    %v134 = vld [vmem:[#allocation2 + $0x168] sm:$0xff]
    %v135 = vld [vmem:[#allocation2 + $0x170] sm:$0xff]
    %v136 = vld [vmem:[#allocation2 + $0x178] sm:$0xff]
    %v137 = vld [vmem:[#allocation2 + $0x180] sm:$0xff]
    %v138 = vld [vmem:[#allocation2 + $0x188] sm:$0xff]
    %v139 = vld [vmem:[#allocation2 + $0x190] sm:$0xff]
    %v140 = vld [vmem:[#allocation2 + $0x198] sm:$0xff]
    %v141 = vld [vmem:[#allocation2 + $0x1a0] sm:$0xff]
    %v142 = vld [vmem:[#allocation2 + $0x1a8] sm:$0xff]
    %v143 = vld [vmem:[#allocation2 + $0x1b0] sm:$0xff]
    %v144 = vld [vmem:[#allocation2 + $0x1b8] sm:$0xff]
    %v145 = vld [vmem:[#allocation2 + $0x1c0] sm:$0xff]
    %v146 = vld [vmem:[#allocation2 + $0x1c8] sm:$0xff]
    %v147 = vld [vmem:[#allocation2 + $0x1d0] sm:$0xff]
    %v148 = vld [vmem:[#allocation2 + $0x1d8] sm:$0xff]
    %v149 = vld [vmem:[#allocation2 + $0x1e0] sm:$0xff]
    %v150 = vld [vmem:[#allocation2 + $0x1e8] sm:$0xff]
    %v151 = vld [vmem:[#allocation2 + $0x1f0] sm:$0xff]
    %v152 = vld [vmem:[#allocation2 + $0x1f8] sm:$0xff]
    %v153 = vld [vmem:[#allocation2 + $0x200] sm:$0xff]
    %v154 = vld [vmem:[#allocation2 + $0x208] sm:$0xff]
    %v155 = vld [vmem:[#allocation2 + $0x210] sm:$0xff]
    %v156 = vld [vmem:[#allocation2 + $0x218] sm:$0xff]
    %v157 = vld [vmem:[#allocation2 + $0x220] sm:$0xff]
    %v158 = vld [vmem:[#allocation2 + $0x228] sm:$0xff]
    %v159 = vld [vmem:[#allocation2 + $0x230] sm:$0xff]
    %v160 = vld [vmem:[#allocation2 + $0x238] sm:$0xff]
    %v161 = vld [vmem:[#allocation2 + $0x240] sm:$0xff]
    %v162 = vld [vmem:[#allocation2 + $0x248] sm:$0xff]
    %v163 = vld [vmem:[#allocation2 + $0x250] sm:$0xff]
    %v164 = vld [vmem:[#allocation2 + $0x258] sm:$0xff]
    %v165 = vld [vmem:[#allocation2 + $0x260] sm:$0xff]
    %v166 = vld [vmem:[#allocation2 + $0x268] sm:$0xff]
    %v167 = vld [vmem:[#allocation2 + $0x270] sm:$0xff]
    %v168 = vld [vmem:[#allocation2 + $0x278] sm:$0xff]
    %v169 = vld [vmem:[#allocation2 + $0x280] sm:$0xff]
    %v170 = vld [vmem:[#allocation2 + $0x288] sm:$0xff]
    %v171 = vld [vmem:[#allocation2 + $0x290] sm:$0xff]
    %v172 = vld [vmem:[#allocation2 + $0x298] sm:$0xff]
    %v173 = vld [vmem:[#allocation2 + $0x2a0] sm:$0xff]
    %v174 = vld [vmem:[#allocation2 + $0x2a8] sm:$0xff]
    %v175 = vld [vmem:[#allocation2 + $0x2b0] sm:$0xff]
    %v176 = vld [vmem:[#allocation2 + $0x2b8] sm:$0xff]
    %v177 = vld [vmem:[#allocation2 + $0x2c0] sm:$0xff]
    %v178 = vld [vmem:[#allocation2 + $0x2c8] sm:$0xff]
    %v179 = vld [vmem:[#allocation2 + $0x2d0] sm:$0xff]
    %v180 = vld [vmem:[#allocation2 + $0x2d8] sm:$0xff]
    %v181 = vld [vmem:[#allocation2 + $0x2e0] sm:$0xff]
    %v182 = vld [vmem:[#allocation2 + $0x2e8] sm:$0xff]
    %v183 = vld [vmem:[#allocation2 + $0x2f0] sm:$0xff]
    %v184 = vld [vmem:[#allocation2 + $0x2f8] sm:$0xff]
    %v185 = vld [vmem:[#allocation2 + $0x300] sm:$0xff]
    %v186 = vld [vmem:[#allocation2 + $0x308] sm:$0xff]
    %v187 = vld [vmem:[#allocation2 + $0x310] sm:$0xff]
    %v188 = vld [vmem:[#allocation2 + $0x318] sm:$0xff]
    %v189 = vld [vmem:[#allocation2 + $0x320] sm:$0xff]
    %v190 = vld [vmem:[#allocation2 + $0x328] sm:$0xff]
    %v191 = vld [vmem:[#allocation2 + $0x330] sm:$0xff]
    %v192 = vld [vmem:[#allocation2 + $0x338] sm:$0xff]
    %v193 = vld [vmem:[#allocation2 + $0x340] sm:$0xff]
    %v194 = vld [vmem:[#allocation2 + $0x348] sm:$0xff]
    %v195 = vld [vmem:[#allocation2 + $0x350] sm:$0xff]
    %v196 = vld [vmem:[#allocation2 + $0x358] sm:$0xff]
    %v197 = vld [vmem:[#allocation2 + $0x360] sm:$0xff]
    %v198 = vld [vmem:[#allocation2 + $0x368] sm:$0xff]
    %v199 = vld [vmem:[#allocation2 + $0x370] sm:$0xff]
    %v200 = vld [vmem:[#allocation2 + $0x378] sm:$0xff]
    %v201 = vld [vmem:[#allocation2 + $0x380] sm:$0xff]
    %v202 = vld [vmem:[#allocation2 + $0x388] sm:$0xff]
    %v203 = vld [vmem:[#allocation2 + $0x390] sm:$0xff]
    %v204 = vld [vmem:[#allocation2 + $0x398] sm:$0xff]
    %v205 = vld [vmem:[#allocation2 + $0x3a0] sm:$0xff]
    %v206 = vld [vmem:[#allocation2 + $0x3a8] sm:$0xff]
    %v207 = vld [vmem:[#allocation2 + $0x3b0] sm:$0xff]
    %v208 = vld [vmem:[#allocation2 + $0x3b8] sm:$0xff]
    %v209 = vld [vmem:[#allocation2 + $0x3c0] sm:$0xff]
    %v210 = vld [vmem:[#allocation2 + $0x3c8] sm:$0xff]
    %v211 = vld [vmem:[#allocation2 + $0x3d0] sm:$0xff]
    %v212 = vld [vmem:[#allocation2 + $0x3d8] sm:$0xff]
    %v213 = vld [vmem:[#allocation2 + $0x3e0] sm:$0xff]
    %v214 = vld [vmem:[#allocation2 + $0x3e8] sm:$0xff]
    %v215 = vld [vmem:[#allocation2 + $0x3f0] sm:$0xff]
    %v216 = vld [vmem:[#allocation2 + $0x3f8] sm:$0xff]
    %v217 = vld [vmem:[#allocation2 + $0x400] sm:$0xff]
    %v218 = vld [vmem:[#allocation2 + $0x408] sm:$0xff]
    %v219 = vld [vmem:[#allocation2 + $0x410] sm:$0xff]
    %v220 = vld [vmem:[#allocation2 + $0x418] sm:$0xff]
    %v221 = vld [vmem:[#allocation2 + $0x420] sm:$0xff]
    %v222 = vld [vmem:[#allocation2 + $0x428] sm:$0xff]
    %v223 = vld [vmem:[#allocation2 + $0x430] sm:$0xff]
    %v224 = vld [vmem:[#allocation2 + $0x438] sm:$0xff]
    %v225 = vld [vmem:[#allocation2 + $0x440] sm:$0xff]
    %v226 = vld [vmem:[#allocation2 + $0x448] sm:$0xff]
    %v227 = vld [vmem:[#allocation2 + $0x450] sm:$0xff]
    %v228 = vld [vmem:[#allocation2 + $0x458] sm:$0xff]
    %v229 = vld [vmem:[#allocation2 + $0x460] sm:$0xff]
    %v230 = vld [vmem:[#allocation2 + $0x468] sm:$0xff]
    %v231 = vld [vmem:[#allocation2 + $0x470] sm:$0xff]
    %v232 = vld [vmem:[#allocation2 + $0x478] sm:$0xff]
    %v233 = vld [vmem:[#allocation2 + $0x480] sm:$0xff]
    %v234 = vld [vmem:[#allocation2 + $0x488] sm:$0xff]
    %v235 = vld [vmem:[#allocation2 + $0x490] sm:$0xff]
    %v236 = vld [vmem:[#allocation2 + $0x498] sm:$0xff]
    %v237 = vld [vmem:[#allocation2 + $0x4a0] sm:$0xff]
    %v238 = vld [vmem:[#allocation2 + $0x4a8] sm:$0xff]
    %v239 = vld [vmem:[#allocation2 + $0x4b0] sm:$0xff]
    %v240 = vld [vmem:[#allocation2 + $0x4b8] sm:$0xff]
    %v241 = vld [vmem:[#allocation2 + $0x4c0] sm:$0xff]
    %v242 = vld [vmem:[#allocation2 + $0x4c8] sm:$0xff]
    %v243 = vld [vmem:[#allocation2 + $0x4d0] sm:$0xff]
    %v244 = vld [vmem:[#allocation2 + $0x4d8] sm:$0xff]
    %v245 = vld [vmem:[#allocation2 + $0x4e0] sm:$0xff]
    %v246 = vld [vmem:[#allocation2 + $0x4e8] sm:$0xff]
    %v247 = vld [vmem:[#allocation2 + $0x4f0] sm:$0xff]
    %v248 = vld [vmem:[#allocation2 + $0x4f8] sm:$0xff]
    %v249 = vld [vmem:[#allocation2 + $0x500] sm:$0xff]
    %v250 = vld [vmem:[#allocation2 + $0x508] sm:$0xff]
    %v251 = vld [vmem:[#allocation2 + $0x510] sm:$0xff]
    %v252 = vld [vmem:[#allocation2 + $0x518] sm:$0xff]
    %v253 = vld [vmem:[#allocation2 + $0x520] sm:$0xff]
    %v254 = vld [vmem:[#allocation2 + $0x528] sm:$0xff]
    %v255 = vld [vmem:[#allocation2 + $0x530] sm:$0xff]
    %v256 = vld [vmem:[#allocation2 + $0x538] sm:$0xff]
    %v257 = vld [vmem:[#allocation2 + $0x540] sm:$0xff]
    %v258 = vld [vmem:[#allocation2 + $0x548] sm:$0xff]
    %v259 = vld [vmem:[#allocation2 + $0x550] sm:$0xff]
    %v260 = vld [vmem:[#allocation2 + $0x558] sm:$0xff]
    %v261 = vld [vmem:[#allocation2 + $0x560] sm:$0xff]
    %v262 = vld [vmem:[#allocation2 + $0x568] sm:$0xff]
    %v263 = vld [vmem:[#allocation2 + $0x570] sm:$0xff]
    %v264 = vld [vmem:[#allocation2 + $0x578] sm:$0xff]
    %v265 = vld [vmem:[#allocation2 + $0x580] sm:$0xff]
    %v266 = vld [vmem:[#allocation2 + $0x588] sm:$0xff]
    %v267 = vld [vmem:[#allocation2 + $0x590] sm:$0xff]
    %v268 = vld [vmem:[#allocation2 + $0x598] sm:$0xff]
    %v269 = vld [vmem:[#allocation2 + $0x5a0] sm:$0xff]
    %v270 = vld [vmem:[#allocation2 + $0x5a8] sm:$0xff]
    %v271 = vld [vmem:[#allocation2 + $0x5b0] sm:$0xff]
    %v272 = vld [vmem:[#allocation2 + $0x5b8] sm:$0xff]
    %v273 = vld [vmem:[#allocation2 + $0x5c0] sm:$0xff]
    %v274 = vld [vmem:[#allocation2 + $0x5c8] sm:$0xff]
    %v275 = vld [vmem:[#allocation2 + $0x5d0] sm:$0xff]
    %v276 = vld [vmem:[#allocation2 + $0x5d8] sm:$0xff]
    %v277 = vld [vmem:[#allocation2 + $0x5e0] sm:$0xff]
    %v278 = vld [vmem:[#allocation2 + $0x5e8] sm:$0xff]
    %v279 = vld [vmem:[#allocation2 + $0x5f0] sm:$0xff]
    %v280 = vld [vmem:[#allocation2 + $0x5f8] sm:$0xff]
    %v281 = vld [vmem:[#allocation2 + $0x600] sm:$0xff]
    %v282 = vld [vmem:[#allocation2 + $0x608] sm:$0xff]
    %v283 = vld [vmem:[#allocation2 + $0x610] sm:$0xff]
    %v284 = vld [vmem:[#allocation2 + $0x618] sm:$0xff]
    %v285 = vld [vmem:[#allocation2 + $0x620] sm:$0xff]
    %v286 = vld [vmem:[#allocation2 + $0x628] sm:$0xff]
    %v287 = vld [vmem:[#allocation2 + $0x630] sm:$0xff]
    %v288 = vld [vmem:[#allocation2 + $0x638] sm:$0xff]
    %v289 = vld [vmem:[#allocation2 + $0x640] sm:$0xff]
    %v290 = vld [vmem:[#allocation2 + $0x648] sm:$0xff]
    %v291 = vld [vmem:[#allocation2 + $0x650] sm:$0xff]
    %v292 = vld [vmem:[#allocation2 + $0x658] sm:$0xff]
    %v293 = vld [vmem:[#allocation2 + $0x660] sm:$0xff]
    %v294 = vld [vmem:[#allocation2 + $0x668] sm:$0xff]
    %v295 = vld [vmem:[#allocation2 + $0x670] sm:$0xff]
    %v296 = vld [vmem:[#allocation2 + $0x678] sm:$0xff]
    %v297 = vld [vmem:[#allocation2 + $0x680] sm:$0xff]
    %v298 = vld [vmem:[#allocation2 + $0x688] sm:$0xff]
    %v299 = vld [vmem:[#allocation2 + $0x690] sm:$0xff]
    %v300 = vld [vmem:[#allocation2 + $0x698] sm:$0xff]
    %v301 = vld [vmem:[#allocation2 + $0x6a0] sm:$0xff]
    %v302 = vld [vmem:[#allocation2 + $0x6a8] sm:$0xff]
    %v303 = vld [vmem:[#allocation2 + $0x6b0] sm:$0xff]
    %v304 = vld [vmem:[#allocation2 + $0x6b8] sm:$0xff]
    %v305 = vld [vmem:[#allocation2 + $0x6c0] sm:$0xff]
    %v306 = vld [vmem:[#allocation2 + $0x6c8] sm:$0xff]
    %v307 = vld [vmem:[#allocation2 + $0x6d0] sm:$0xff]
    %v308 = vld [vmem:[#allocation2 + $0x6d8] sm:$0xff]
    %v309 = vld [vmem:[#allocation2 + $0x6e0] sm:$0xff]
    %v310 = vld [vmem:[#allocation2 + $0x6e8] sm:$0xff]
    %v311 = vld [vmem:[#allocation2 + $0x6f0] sm:$0xff]
    %v312 = vld [vmem:[#allocation2 + $0x6f8] sm:$0xff]
    %v313 = vld [vmem:[#allocation2 + $0x700] sm:$0xff]
    %v314 = vld [vmem:[#allocation2 + $0x708] sm:$0xff]
    %v315 = vld [vmem:[#allocation2 + $0x710] sm:$0xff]
    %v316 = vld [vmem:[#allocation2 + $0x718] sm:$0xff]
    %v317 = vld [vmem:[#allocation2 + $0x720] sm:$0xff]
    %v318 = vld [vmem:[#allocation2 + $0x728] sm:$0xff]
    %v319 = vld [vmem:[#allocation2 + $0x730] sm:$0xff]
    %v320 = vld [vmem:[#allocation2 + $0x738] sm:$0xff]
    %v321 = vld [vmem:[#allocation2 + $0x740] sm:$0xff]
    %v322 = vld [vmem:[#allocation2 + $0x748] sm:$0xff]
    %v323 = vld [vmem:[#allocation2 + $0x750] sm:$0xff]
    %v324 = vld [vmem:[#allocation2 + $0x758] sm:$0xff]
    %v325 = vld [vmem:[#allocation2 + $0x760] sm:$0xff]
    %v326 = vld [vmem:[#allocation2 + $0x768] sm:$0xff]
    %v327 = vld [vmem:[#allocation2 + $0x770] sm:$0xff]
    %v328 = vld [vmem:[#allocation2 + $0x778] sm:$0xff]
    %v329 = vld [vmem:[#allocation2 + $0x780] sm:$0xff]
    %v330 = vld [vmem:[#allocation2 + $0x788] sm:$0xff]
    %v331 = vld [vmem:[#allocation2 + $0x790] sm:$0xff]
    %v332 = vld [vmem:[#allocation2 + $0x798] sm:$0xff]
    %v333 = vld [vmem:[#allocation2 + $0x7a0] sm:$0xff]
    %v334 = vld [vmem:[#allocation2 + $0x7a8] sm:$0xff]
    %v335 = vld [vmem:[#allocation2 + $0x7b0] sm:$0xff]
    %v336 = vld [vmem:[#allocation2 + $0x7b8] sm:$0xff]
    %v337 = vld [vmem:[#allocation2 + $0x7c0] sm:$0xff]
    %v338 = vld [vmem:[#allocation2 + $0x7c8] sm:$0xff]
    %v339 = vld [vmem:[#allocation2 + $0x7d0] sm:$0xff]
    %v340 = vld [vmem:[#allocation2 + $0x7d8] sm:$0xff]
    %v341 = vld [vmem:[#allocation2 + $0x7e0] sm:$0xff]
    %v342 = vld [vmem:[#allocation2 + $0x7e8] sm:$0xff]
    %v343 = vld [vmem:[#allocation2 + $0x7f0] sm:$0xff]
    %v344 = vld [vmem:[#allocation2 + $0x7f8] sm:$0xff]
    %v345 = vld [vmem:[#allocation5] sm:$0xff]
    %v346 = vld [vmem:[#allocation5 + $0x8] sm:$0xff]
    %v347 = vld [vmem:[#allocation5 + $0x10] sm:$0xff]
    %v348 = vld [vmem:[#allocation5 + $0x18] sm:$0xff]
    %v349 = vld [vmem:[#allocation5 + $0x20] sm:$0xff]
    %v350 = vld [vmem:[#allocation5 + $0x28] sm:$0xff]
    %v351 = vld [vmem:[#allocation5 + $0x30] sm:$0xff]
    %v352 = vld [vmem:[#allocation5 + $0x38] sm:$0xff]
    %v353 = vld [vmem:[#allocation5 + $0x40] sm:$0xff]
    %v354 = vld [vmem:[#allocation5 + $0x48] sm:$0xff]
    %v355 = vld [vmem:[#allocation5 + $0x50] sm:$0xff]
    %v356 = vld [vmem:[#allocation5 + $0x58] sm:$0xff]
    %v357 = vld [vmem:[#allocation5 + $0x60] sm:$0xff]
    %v358 = vld [vmem:[#allocation5 + $0x68] sm:$0xff]
    %v359 = vld [vmem:[#allocation5 + $0x70] sm:$0xff]
    %v360 = vld [vmem:[#allocation5 + $0x78] sm:$0xff]
    %v361 = vld [vmem:[#allocation5 + $0x80] sm:$0xff]
    %v362 = vld [vmem:[#allocation5 + $0x88] sm:$0xff]
    %v363 = vld [vmem:[#allocation5 + $0x90] sm:$0xff]
    %v364 = vld [vmem:[#allocation5 + $0x98] sm:$0xff]
    %v365 = vld [vmem:[#allocation5 + $0xa0] sm:$0xff]
    %v366 = vld [vmem:[#allocation5 + $0xa8] sm:$0xff]
    %v367 = vld [vmem:[#allocation5 + $0xb0] sm:$0xff]
    %v368 = vld [vmem:[#allocation5 + $0xb8] sm:$0xff]
    %v369 = vld [vmem:[#allocation5 + $0xc0] sm:$0xff]
    %v370 = vld [vmem:[#allocation5 + $0xc8] sm:$0xff]
    %v371 = vld [vmem:[#allocation5 + $0xd0] sm:$0xff]
    %v372 = vld [vmem:[#allocation5 + $0xd8] sm:$0xff]
    %v373 = vld [vmem:[#allocation5 + $0xe0] sm:$0xff]
    %v374 = vld [vmem:[#allocation5 + $0xe8] sm:$0xff]
    %v375 = vld [vmem:[#allocation5 + $0xf0] sm:$0xff]
    %v376 = vld [vmem:[#allocation5 + $0xf8] sm:$0xff]
    %v377 = vld [vmem:[#allocation5 + $0x100] sm:$0xff]
    %v378 = vld [vmem:[#allocation5 + $0x108] sm:$0xff]
    %v379 = vld [vmem:[#allocation5 + $0x110] sm:$0xff]
    %v380 = vld [vmem:[#allocation5 + $0x118] sm:$0xff]
    %v381 = vld [vmem:[#allocation5 + $0x120] sm:$0xff]
    %v382 = vld [vmem:[#allocation5 + $0x128] sm:$0xff]
    %v383 = vld [vmem:[#allocation5 + $0x130] sm:$0xff]
    %v384 = vld [vmem:[#allocation5 + $0x138] sm:$0xff]
    %v385 = vld [vmem:[#allocation5 + $0x140] sm:$0xff]
    %v386 = vld [vmem:[#allocation5 + $0x148] sm:$0xff]
    %v387 = vld [vmem:[#allocation5 + $0x150] sm:$0xff]
    %v388 = vld [vmem:[#allocation5 + $0x158] sm:$0xff]
    %v389 = vld [vmem:[#allocation5 + $0x160] sm:$0xff]
    %v390 = vld [vmem:[#allocation5 + $0x168] sm:$0xff]
    %v391 = vld [vmem:[#allocation5 + $0x170] sm:$0xff]
    %v392 = vld [vmem:[#allocation5 + $0x178] sm:$0xff]
    %v393 = vld [vmem:[#allocation5 + $0x180] sm:$0xff]
    %v394 = vld [vmem:[#allocation5 + $0x188] sm:$0xff]
    %v395 = vld [vmem:[#allocation5 + $0x190] sm:$0xff]
    %v396 = vld [vmem:[#allocation5 + $0x198] sm:$0xff]
    %v397 = vld [vmem:[#allocation5 + $0x1a0] sm:$0xff]
    %v398 = vld [vmem:[#allocation5 + $0x1a8] sm:$0xff]
    %v399 = vld [vmem:[#allocation5 + $0x1b0] sm:$0xff]
    %v400 = vld [vmem:[#allocation5 + $0x1b8] sm:$0xff]
    %v401 = vld [vmem:[#allocation5 + $0x1c0] sm:$0xff]
    %v402 = vld [vmem:[#allocation5 + $0x1c8] sm:$0xff]
    %v403 = vld [vmem:[#allocation5 + $0x1d0] sm:$0xff]
    %v404 = vld [vmem:[#allocation5 + $0x1d8] sm:$0xff]
    %v405 = vld [vmem:[#allocation5 + $0x1e0] sm:$0xff]
    %v406 = vld [vmem:[#allocation5 + $0x1e8] sm:$0xff]
    %v407 = vld [vmem:[#allocation5 + $0x1f0] sm:$0xff]
    %v408 = vld [vmem:[#allocation5 + $0x1f8] sm:$0xff]
    %v409 = vld [vmem:[#allocation5 + $0x200] sm:$0xff]
    %v410 = vld [vmem:[#allocation5 + $0x208] sm:$0xff]
    %v411 = vld [vmem:[#allocation5 + $0x210] sm:$0xff]
    %v412 = vld [vmem:[#allocation5 + $0x218] sm:$0xff]
    %v413 = vld [vmem:[#allocation5 + $0x220] sm:$0xff]
    %v414 = vld [vmem:[#allocation5 + $0x228] sm:$0xff]
    %v415 = vld [vmem:[#allocation5 + $0x230] sm:$0xff]
    %v416 = vld [vmem:[#allocation5 + $0x238] sm:$0xff]
    %v417 = vld [vmem:[#allocation5 + $0x240] sm:$0xff]
    %v418 = vld [vmem:[#allocation5 + $0x248] sm:$0xff]
    %v419 = vld [vmem:[#allocation5 + $0x250] sm:$0xff]
    %v420 = vld [vmem:[#allocation5 + $0x258] sm:$0xff]
    %v421 = vld [vmem:[#allocation5 + $0x260] sm:$0xff]
    %v422 = vld [vmem:[#allocation5 + $0x268] sm:$0xff]
    %v423 = vld [vmem:[#allocation5 + $0x270] sm:$0xff]
    %v424 = vld [vmem:[#allocation5 + $0x278] sm:$0xff]
    %v425 = vld [vmem:[#allocation5 + $0x280] sm:$0xff]
    %v426 = vld [vmem:[#allocation5 + $0x288] sm:$0xff]
    %v427 = vld [vmem:[#allocation5 + $0x290] sm:$0xff]
    %v428 = vld [vmem:[#allocation5 + $0x298] sm:$0xff]
    %v429 = vld [vmem:[#allocation5 + $0x2a0] sm:$0xff]
    %v430 = vld [vmem:[#allocation5 + $0x2a8] sm:$0xff]
    %v431 = vld [vmem:[#allocation5 + $0x2b0] sm:$0xff]
    %v432 = vld [vmem:[#allocation5 + $0x2b8] sm:$0xff]
    %v433 = vld [vmem:[#allocation5 + $0x2c0] sm:$0xff]
    %v434 = vld [vmem:[#allocation5 + $0x2c8] sm:$0xff]
    %v435 = vld [vmem:[#allocation5 + $0x2d0] sm:$0xff]
    %v436 = vld [vmem:[#allocation5 + $0x2d8] sm:$0xff]
    %v437 = vld [vmem:[#allocation5 + $0x2e0] sm:$0xff]
    %v438 = vld [vmem:[#allocation5 + $0x2e8] sm:$0xff]
    %v439 = vld [vmem:[#allocation5 + $0x2f0] sm:$0xff]
    %v440 = vld [vmem:[#allocation5 + $0x2f8] sm:$0xff]
    %v441 = vld [vmem:[#allocation5 + $0x300] sm:$0xff]
    %v442 = vld [vmem:[#allocation5 + $0x308] sm:$0xff]
    %v443 = vld [vmem:[#allocation5 + $0x310] sm:$0xff]
    %v444 = vld [vmem:[#allocation5 + $0x318] sm:$0xff]
    %v445 = vld [vmem:[#allocation5 + $0x320] sm:$0xff]
    %v446 = vld [vmem:[#allocation5 + $0x328] sm:$0xff]
    %v447 = vld [vmem:[#allocation5 + $0x330] sm:$0xff]
    %v448 = vld [vmem:[#allocation5 + $0x338] sm:$0xff]
    %v449 = vld [vmem:[#allocation5 + $0x340] sm:$0xff]
    %v450 = vld [vmem:[#allocation5 + $0x348] sm:$0xff]
    %v451 = vld [vmem:[#allocation5 + $0x350] sm:$0xff]
    %v452 = vld [vmem:[#allocation5 + $0x358] sm:$0xff]
    %v453 = vld [vmem:[#allocation5 + $0x360] sm:$0xff]
    %v454 = vld [vmem:[#allocation5 + $0x368] sm:$0xff]
    %v455 = vld [vmem:[#allocation5 + $0x370] sm:$0xff]
    %v456 = vld [vmem:[#allocation5 + $0x378] sm:$0xff]
    %v457 = vld [vmem:[#allocation5 + $0x380] sm:$0xff]
    %v458 = vld [vmem:[#allocation5 + $0x388] sm:$0xff]
    %v459 = vld [vmem:[#allocation5 + $0x390] sm:$0xff]
    %v460 = vld [vmem:[#allocation5 + $0x398] sm:$0xff]
    %v461 = vld [vmem:[#allocation5 + $0x3a0] sm:$0xff]
    %v462 = vld [vmem:[#allocation5 + $0x3a8] sm:$0xff]
    %v463 = vld [vmem:[#allocation5 + $0x3b0] sm:$0xff]
    %v464 = vld [vmem:[#allocation5 + $0x3b8] sm:$0xff]
    %v465 = vld [vmem:[#allocation5 + $0x3c0] sm:$0xff]
    %v466 = vld [vmem:[#allocation5 + $0x3c8] sm:$0xff]
    %v467 = vld [vmem:[#allocation5 + $0x3d0] sm:$0xff]
    %v468 = vld [vmem:[#allocation5 + $0x3d8] sm:$0xff]
    %v469 = vld [vmem:[#allocation5 + $0x3e0] sm:$0xff]
    %v470 = vld [vmem:[#allocation5 + $0x3e8] sm:$0xff]
    %v471 = vld [vmem:[#allocation5 + $0x3f0] sm:$0xff]
    %v472 = vld [vmem:[#allocation5 + $0x3f8] sm:$0xff]
    %v473 = vld [vmem:[#allocation5 + $0x400] sm:$0xff]
    %v474 = vld [vmem:[#allocation5 + $0x408] sm:$0xff]
    %v475 = vld [vmem:[#allocation5 + $0x410] sm:$0xff]
    %v476 = vld [vmem:[#allocation5 + $0x418] sm:$0xff]
    %v477 = vld [vmem:[#allocation5 + $0x420] sm:$0xff]
    %v478 = vld [vmem:[#allocation5 + $0x428] sm:$0xff]
    %v479 = vld [vmem:[#allocation5 + $0x430] sm:$0xff]
    %v480 = vld [vmem:[#allocation5 + $0x438] sm:$0xff]
    %v481 = vld [vmem:[#allocation5 + $0x440] sm:$0xff]
    %v482 = vld [vmem:[#allocation5 + $0x448] sm:$0xff]
    %v483 = vld [vmem:[#allocation5 + $0x450] sm:$0xff]
    %v484 = vld [vmem:[#allocation5 + $0x458] sm:$0xff]
    %v485 = vld [vmem:[#allocation5 + $0x460] sm:$0xff]
    %v486 = vld [vmem:[#allocation5 + $0x468] sm:$0xff]
    %v487 = vld [vmem:[#allocation5 + $0x470] sm:$0xff]
    %v488 = vld [vmem:[#allocation5 + $0x478] sm:$0xff]
    %v489 = vld [vmem:[#allocation5 + $0x480] sm:$0xff]
    %v490 = vld [vmem:[#allocation5 + $0x488] sm:$0xff]
    %v491 = vld [vmem:[#allocation5 + $0x490] sm:$0xff]
    %v492 = vld [vmem:[#allocation5 + $0x498] sm:$0xff]
    %v493 = vld [vmem:[#allocation5 + $0x4a0] sm:$0xff]
    %v494 = vld [vmem:[#allocation5 + $0x4a8] sm:$0xff]
    %v495 = vld [vmem:[#allocation5 + $0x4b0] sm:$0xff]
    %v496 = vld [vmem:[#allocation5 + $0x4b8] sm:$0xff]
    %v497 = vld [vmem:[#allocation5 + $0x4c0] sm:$0xff]
    %v498 = vld [vmem:[#allocation5 + $0x4c8] sm:$0xff]
    %v499 = vld [vmem:[#allocation5 + $0x4d0] sm:$0xff]
    %v500 = vld [vmem:[#allocation5 + $0x4d8] sm:$0xff]
    %v501 = vld [vmem:[#allocation5 + $0x4e0] sm:$0xff]
    %v502 = vld [vmem:[#allocation5 + $0x4e8] sm:$0xff]
    %v503 = vld [vmem:[#allocation5 + $0x4f0] sm:$0xff]
    %v504 = vld [vmem:[#allocation5 + $0x4f8] sm:$0xff]
    %v505 = vld [vmem:[#allocation5 + $0x500] sm:$0xff]
    %v506 = vld [vmem:[#allocation5 + $0x508] sm:$0xff]
    %v507 = vld [vmem:[#allocation5 + $0x510] sm:$0xff]
    %v508 = vld [vmem:[#allocation5 + $0x518] sm:$0xff]
    %v509 = vld [vmem:[#allocation5 + $0x520] sm:$0xff]
    %v510 = vld [vmem:[#allocation5 + $0x528] sm:$0xff]
    %v511 = vld [vmem:[#allocation5 + $0x530] sm:$0xff]
    %v512 = vld [vmem:[#allocation5 + $0x538] sm:$0xff]
    %v513 = vld [vmem:[#allocation5 + $0x540] sm:$0xff]
    %v514 = vld [vmem:[#allocation5 + $0x548] sm:$0xff]
    %v515 = vld [vmem:[#allocation5 + $0x550] sm:$0xff]
    %v516 = vld [vmem:[#allocation5 + $0x558] sm:$0xff]
    %v517 = vld [vmem:[#allocation5 + $0x560] sm:$0xff]
    %v518 = vld [vmem:[#allocation5 + $0x568] sm:$0xff]
    %v519 = vld [vmem:[#allocation5 + $0x570] sm:$0xff]
    %v520 = vld [vmem:[#allocation5 + $0x578] sm:$0xff]
    %v521 = vld [vmem:[#allocation5 + $0x580] sm:$0xff]
    %v522 = vld [vmem:[#allocation5 + $0x588] sm:$0xff]
    %v523 = vld [vmem:[#allocation5 + $0x590] sm:$0xff]
    %v524 = vld [vmem:[#allocation5 + $0x598] sm:$0xff]
    %v525 = vld [vmem:[#allocation5 + $0x5a0] sm:$0xff]
    %v526 = vld [vmem:[#allocation5 + $0x5a8] sm:$0xff]
    %v527 = vld [vmem:[#allocation5 + $0x5b0] sm:$0xff]
    %v528 = vld [vmem:[#allocation5 + $0x5b8] sm:$0xff]
    %v529 = vld [vmem:[#allocation5 + $0x5c0] sm:$0xff]
    %v530 = vld [vmem:[#allocation5 + $0x5c8] sm:$0xff]
    %v531 = vld [vmem:[#allocation5 + $0x5d0] sm:$0xff]
    %v532 = vld [vmem:[#allocation5 + $0x5d8] sm:$0xff]
    %v533 = vld [vmem:[#allocation5 + $0x5e0] sm:$0xff]
    %v534 = vld [vmem:[#allocation5 + $0x5e8] sm:$0xff]
    %v535 = vld [vmem:[#allocation5 + $0x5f0] sm:$0xff]
    %v536 = vld [vmem:[#allocation5 + $0x5f8] sm:$0xff]
    %v537 = vld [vmem:[#allocation5 + $0x600] sm:$0xff]
    %v538 = vld [vmem:[#allocation5 + $0x608] sm:$0xff]
    %v539 = vld [vmem:[#allocation5 + $0x610] sm:$0xff]
    %v540 = vld [vmem:[#allocation5 + $0x618] sm:$0xff]
    %v541 = vld [vmem:[#allocation5 + $0x620] sm:$0xff]
    %v542 = vld [vmem:[#allocation5 + $0x628] sm:$0xff]
    %v543 = vld [vmem:[#allocation5 + $0x630] sm:$0xff]
    %v544 = vld [vmem:[#allocation5 + $0x638] sm:$0xff]
    %v545 = vld [vmem:[#allocation5 + $0x640] sm:$0xff]
    %v546 = vld [vmem:[#allocation5 + $0x648] sm:$0xff]
    %v547 = vld [vmem:[#allocation5 + $0x650] sm:$0xff]
    %v548 = vld [vmem:[#allocation5 + $0x658] sm:$0xff]
    %v549 = vld [vmem:[#allocation5 + $0x660] sm:$0xff]
    %v550 = vld [vmem:[#allocation5 + $0x668] sm:$0xff]
    %v551 = vld [vmem:[#allocation5 + $0x670] sm:$0xff]
    %v552 = vld [vmem:[#allocation5 + $0x678] sm:$0xff]
    %v553 = vld [vmem:[#allocation5 + $0x680] sm:$0xff]
    %v554 = vld [vmem:[#allocation5 + $0x688] sm:$0xff]
    %v555 = vld [vmem:[#allocation5 + $0x690] sm:$0xff]
    %v556 = vld [vmem:[#allocation5 + $0x698] sm:$0xff]
    %v557 = vld [vmem:[#allocation5 + $0x6a0] sm:$0xff]
    %v558 = vld [vmem:[#allocation5 + $0x6a8] sm:$0xff]
    %v559 = vld [vmem:[#allocation5 + $0x6b0] sm:$0xff]
    %v560 = vld [vmem:[#allocation5 + $0x6b8] sm:$0xff]
    %v561 = vld [vmem:[#allocation5 + $0x6c0] sm:$0xff]
    %v562 = vld [vmem:[#allocation5 + $0x6c8] sm:$0xff]
    %v563 = vld [vmem:[#allocation5 + $0x6d0] sm:$0xff]
    %v564 = vld [vmem:[#allocation5 + $0x6d8] sm:$0xff]
    %v565 = vld [vmem:[#allocation5 + $0x6e0] sm:$0xff]
    %v566 = vld [vmem:[#allocation5 + $0x6e8] sm:$0xff]
    %v567 = vld [vmem:[#allocation5 + $0x6f0] sm:$0xff]
    %v568 = vld [vmem:[#allocation5 + $0x6f8] sm:$0xff]
    %v569 = vld [vmem:[#allocation5 + $0x700] sm:$0xff]
    %v570 = vld [vmem:[#allocation5 + $0x708] sm:$0xff]
    %v571 = vld [vmem:[#allocation5 + $0x710] sm:$0xff]
    %v572 = vld [vmem:[#allocation5 + $0x718] sm:$0xff]
    %v573 = vld [vmem:[#allocation5 + $0x720] sm:$0xff]
    %v574 = vld [vmem:[#allocation5 + $0x728] sm:$0xff]
    %v575 = vld [vmem:[#allocation5 + $0x730] sm:$0xff]
    %v576 = vld [vmem:[#allocation5 + $0x738] sm:$0xff]
    %v577 = vld [vmem:[#allocation5 + $0x740] sm:$0xff]
    %v578 = vld [vmem:[#allocation5 + $0x748] sm:$0xff]
    %v579 = vld [vmem:[#allocation5 + $0x750] sm:$0xff]
    %v580 = vld [vmem:[#allocation5 + $0x758] sm:$0xff]
    %v581 = vld [vmem:[#allocation5 + $0x760] sm:$0xff]
    %v582 = vld [vmem:[#allocation5 + $0x768] sm:$0xff]
    %v583 = vld [vmem:[#allocation5 + $0x770] sm:$0xff]
    %v584 = vld [vmem:[#allocation5 + $0x778] sm:$0xff]
    %v585 = vld [vmem:[#allocation5 + $0x780] sm:$0xff]
    %v586 = vld [vmem:[#allocation5 + $0x788] sm:$0xff]
    %v587 = vld [vmem:[#allocation5 + $0x790] sm:$0xff]
    %v588 = vld [vmem:[#allocation5 + $0x798] sm:$0xff]
    %v589 = vld [vmem:[#allocation5 + $0x7a0] sm:$0xff]
    %v590 = vld [vmem:[#allocation5 + $0x7a8] sm:$0xff]
    %v591 = vld [vmem:[#allocation5 + $0x7b0] sm:$0xff]
    %v592 = vld [vmem:[#allocation5 + $0x7b8] sm:$0xff]
    %v593 = vld [vmem:[#allocation5 + $0x7c0] sm:$0xff]
    %v594 = vld [vmem:[#allocation5 + $0x7c8] sm:$0xff]
    %v595 = vld [vmem:[#allocation5 + $0x7d0] sm:$0xff]
    %v596 = vld [vmem:[#allocation5 + $0x7d8] sm:$0xff]
    %v597 = vld [vmem:[#allocation5 + $0x7e0] sm:$0xff]
    %v598 = vld [vmem:[#allocation5 + $0x7e8] sm:$0xff]
    %v599 = vld [vmem:[#allocation5 + $0x7f0] sm:$0xff]
    %v600 = vld [vmem:[#allocation5 + $0x7f8] sm:$0xff]
    %v601 = vmul.f32 %v89, %v345
    %v602 = vmul.f32 %v90, %v346
    %v603 = vmul.f32 %v91, %v347
    %v604 = vmul.f32 %v92, %v348
    %v605 = vmul.f32 %v93, %v349
    %v606 = vmul.f32 %v94, %v350
    %v607 = vmul.f32 %v95, %v351
    %v608 = vmul.f32 %v96, %v352
    %v609 = vmul.f32 %v97, %v353
    %v610 = vmul.f32 %v98, %v354
    %v611 = vmul.f32 %v99, %v355
    %v612 = vmul.f32 %v100, %v356
    %v613 = vmul.f32 %v101, %v357
    %v614 = vmul.f32 %v102, %v358
    %v615 = vmul.f32 %v103, %v359
    %v616 = vmul.f32 %v104, %v360
    %v617 = vmul.f32 %v105, %v361
    %v618 = vmul.f32 %v106, %v362
    %v619 = vmul.f32 %v107, %v363
    %v620 = vmul.f32 %v108, %v364
    %v621 = vmul.f32 %v109, %v365
    %v622 = vmul.f32 %v110, %v366
    %v623 = vmul.f32 %v111, %v367
    %v624 = vmul.f32 %v112, %v368
    %v625 = vmul.f32 %v113, %v369
    %v626 = vmul.f32 %v114, %v370
    %v627 = vmul.f32 %v115, %v371
    %v628 = vmul.f32 %v116, %v372
    %v629 = vmul.f32 %v117, %v373
    %v630 = vmul.f32 %v118, %v374
    %v631 = vmul.f32 %v119, %v375
    %v632 = vmul.f32 %v120, %v376
    %v633 = vmul.f32 %v121, %v377
    %v634 = vmul.f32 %v122, %v378
    %v635 = vmul.f32 %v123, %v379
    %v636 = vmul.f32 %v124, %v380
    %v637 = vmul.f32 %v125, %v381
    %v638 = vmul.f32 %v126, %v382
    %v639 = vmul.f32 %v127, %v383
    %v640 = vmul.f32 %v128, %v384
    %v641 = vmul.f32 %v129, %v385
    %v642 = vmul.f32 %v130, %v386
    %v643 = vmul.f32 %v131, %v387
    %v644 = vmul.f32 %v132, %v388
    %v645 = vmul.f32 %v133, %v389
    %v646 = vmul.f32 %v134, %v390
    %v647 = vmul.f32 %v135, %v391
    %v648 = vmul.f32 %v136, %v392
    %v649 = vmul.f32 %v137, %v393
    %v650 = vmul.f32 %v138, %v394
    %v651 = vmul.f32 %v139, %v395
    %v652 = vmul.f32 %v140, %v396
    %v653 = vmul.f32 %v141, %v397
    %v654 = vmul.f32 %v142, %v398
    %v655 = vmul.f32 %v143, %v399
    %v656 = vmul.f32 %v144, %v400
    %v657 = vmul.f32 %v145, %v401
    %v658 = vmul.f32 %v146, %v402
    %v659 = vmul.f32 %v147, %v403
    %v660 = vmul.f32 %v148, %v404
    %v661 = vmul.f32 %v149, %v405
    %v662 = vmul.f32 %v150, %v406
    %v663 = vmul.f32 %v151, %v407
    %v664 = vmul.f32 %v152, %v408
    %v665 = vmul.f32 %v153, %v409
    %v666 = vmul.f32 %v154, %v410
    %v667 = vmul.f32 %v155, %v411
    %v668 = vmul.f32 %v156, %v412
    %v669 = vmul.f32 %v157, %v413
    %v670 = vmul.f32 %v158, %v414
    %v671 = vmul.f32 %v159, %v415
    %v672 = vmul.f32 %v160, %v416
    %v673 = vmul.f32 %v161, %v417
    %v674 = vmul.f32 %v162, %v418
    %v675 = vmul.f32 %v163, %v419
    %v676 = vmul.f32 %v164, %v420
    %v677 = vmul.f32 %v165, %v421
    %v678 = vmul.f32 %v166, %v422
    %v679 = vmul.f32 %v167, %v423
    %v680 = vmul.f32 %v168, %v424
    %v681 = vmul.f32 %v169, %v425
    %v682 = vmul.f32 %v170, %v426
    %v683 = vmul.f32 %v171, %v427
    %v684 = vmul.f32 %v172, %v428
    %v685 = vmul.f32 %v173, %v429
    %v686 = vmul.f32 %v174, %v430
    %v687 = vmul.f32 %v175, %v431
    %v688 = vmul.f32 %v176, %v432
    %v689 = vmul.f32 %v177, %v433
    %v690 = vmul.f32 %v178, %v434
    %v691 = vmul.f32 %v179, %v435
    %v692 = vmul.f32 %v180, %v436
    %v693 = vmul.f32 %v181, %v437
    %v694 = vmul.f32 %v182, %v438
    %v695 = vmul.f32 %v183, %v439
    %v696 = vmul.f32 %v184, %v440
    %v697 = vmul.f32 %v185, %v441
    %v698 = vmul.f32 %v186, %v442
    %v699 = vmul.f32 %v187, %v443
    %v700 = vmul.f32 %v188, %v444
    %v701 = vmul.f32 %v189, %v445
    %v702 = vmul.f32 %v190, %v446
    %v703 = vmul.f32 %v191, %v447
    %v704 = vmul.f32 %v192, %v448
    %v705 = vmul.f32 %v193, %v449
    %v706 = vmul.f32 %v194, %v450
    %v707 = vmul.f32 %v195, %v451
    %v708 = vmul.f32 %v196, %v452
    %v709 = vmul.f32 %v197, %v453
    %v710 = vmul.f32 %v198, %v454
    %v711 = vmul.f32 %v199, %v455
    %v712 = vmul.f32 %v200, %v456
    %v713 = vmul.f32 %v201, %v457
    %v714 = vmul.f32 %v202, %v458
    %v715 = vmul.f32 %v203, %v459
    %v716 = vmul.f32 %v204, %v460
    %v717 = vmul.f32 %v205, %v461
    %v718 = vmul.f32 %v206, %v462
    %v719 = vmul.f32 %v207, %v463
    %v720 = vmul.f32 %v208, %v464
    %v721 = vmul.f32 %v209, %v465
    %v722 = vmul.f32 %v210, %v466
    %v723 = vmul.f32 %v211, %v467
    %v724 = vmul.f32 %v212, %v468
    %v725 = vmul.f32 %v213, %v469
    %v726 = vmul.f32 %v214, %v470
    %v727 = vmul.f32 %v215, %v471
    %v728 = vmul.f32 %v216, %v472
    %v729 = vmul.f32 %v217, %v473
    %v730 = vmul.f32 %v218, %v474
    %v731 = vmul.f32 %v219, %v475
    %v732 = vmul.f32 %v220, %v476
    %v733 = vmul.f32 %v221, %v477
    %v734 = vmul.f32 %v222, %v478
    %v735 = vmul.f32 %v223, %v479
    %v736 = vmul.f32 %v224, %v480
    %v737 = vmul.f32 %v225, %v481
    %v738 = vmul.f32 %v226, %v482
    %v739 = vmul.f32 %v227, %v483
    %v740 = vmul.f32 %v228, %v484
    %v741 = vmul.f32 %v229, %v485
    %v742 = vmul.f32 %v230, %v486
    %v743 = vmul.f32 %v231, %v487
    %v744 = vmul.f32 %v232, %v488
    %v745 = vmul.f32 %v233, %v489
    %v746 = vmul.f32 %v234, %v490
    %v747 = vmul.f32 %v235, %v491
    %v748 = vmul.f32 %v236, %v492
    %v749 = vmul.f32 %v237, %v493
    %v750 = vmul.f32 %v238, %v494
    %v751 = vmul.f32 %v239, %v495
    %v752 = vmul.f32 %v240, %v496
    %v753 = vmul.f32 %v241, %v497
    %v754 = vmul.f32 %v242, %v498
    %v755 = vmul.f32 %v243, %v499
    %v756 = vmul.f32 %v244, %v500
    %v757 = vmul.f32 %v245, %v501
    %v758 = vmul.f32 %v246, %v502
    %v759 = vmul.f32 %v247, %v503
    %v760 = vmul.f32 %v248, %v504
    %v761 = vmul.f32 %v249, %v505
    %v762 = vmul.f32 %v250, %v506
    %v763 = vmul.f32 %v251, %v507
    %v764 = vmul.f32 %v252, %v508
    %v765 = vmul.f32 %v253, %v509
    %v766 = vmul.f32 %v254, %v510
    %v767 = vmul.f32 %v255, %v511
    %v768 = vmul.f32 %v256, %v512
    %v769 = vmul.f32 %v257, %v513
    %v770 = vmul.f32 %v258, %v514
    %v771 = vmul.f32 %v259, %v515
    %v772 = vmul.f32 %v260, %v516
    %v773 = vmul.f32 %v261, %v517
    %v774 = vmul.f32 %v262, %v518
    %v775 = vmul.f32 %v263, %v519
    %v776 = vmul.f32 %v264, %v520
    %v777 = vmul.f32 %v265, %v521
    %v778 = vmul.f32 %v266, %v522
    %v779 = vmul.f32 %v267, %v523
    %v780 = vmul.f32 %v268, %v524
    %v781 = vmul.f32 %v269, %v525
    %v782 = vmul.f32 %v270, %v526
    %v783 = vmul.f32 %v271, %v527
    %v784 = vmul.f32 %v272, %v528
    %v785 = vmul.f32 %v273, %v529
    %v786 = vmul.f32 %v274, %v530
    %v787 = vmul.f32 %v275, %v531
    %v788 = vmul.f32 %v276, %v532
    %v789 = vmul.f32 %v277, %v533
    %v790 = vmul.f32 %v278, %v534
    %v791 = vmul.f32 %v279, %v535
    %v792 = vmul.f32 %v280, %v536
    %v793 = vmul.f32 %v281, %v537
    %v794 = vmul.f32 %v282, %v538
    %v795 = vmul.f32 %v283, %v539
    %v796 = vmul.f32 %v284, %v540
    %v797 = vmul.f32 %v285, %v541
    %v798 = vmul.f32 %v286, %v542
    %v799 = vmul.f32 %v287, %v543
    %v800 = vmul.f32 %v288, %v544
    %v801 = vmul.f32 %v289, %v545
    %v802 = vmul.f32 %v290, %v546
    %v803 = vmul.f32 %v291, %v547
    %v804 = vmul.f32 %v292, %v548
    %v805 = vmul.f32 %v293, %v549
    %v806 = vmul.f32 %v294, %v550
    %v807 = vmul.f32 %v295, %v551
    %v808 = vmul.f32 %v296, %v552
    %v809 = vmul.f32 %v297, %v553
    %v810 = vmul.f32 %v298, %v554
    %v811 = vmul.f32 %v299, %v555
    %v812 = vmul.f32 %v300, %v556
    %v813 = vmul.f32 %v301, %v557
    %v814 = vmul.f32 %v302, %v558
    %v815 = vmul.f32 %v303, %v559
    %v816 = vmul.f32 %v304, %v560
    %v817 = vmul.f32 %v305, %v561
    %v818 = vmul.f32 %v306, %v562
    %v819 = vmul.f32 %v307, %v563
    %v820 = vmul.f32 %v308, %v564
    %v821 = vmul.f32 %v309, %v565
    %v822 = vmul.f32 %v310, %v566
    %v823 = vmul.f32 %v311, %v567
    %v824 = vmul.f32 %v312, %v568
    %v825 = vmul.f32 %v313, %v569
    %v826 = vmul.f32 %v314, %v570
    %v827 = vmul.f32 %v315, %v571
    %v828 = vmul.f32 %v316, %v572
    %v829 = vmul.f32 %v317, %v573
    %v830 = vmul.f32 %v318, %v574
    %v831 = vmul.f32 %v319, %v575
    %v832 = vmul.f32 %v320, %v576
    %v833 = vmul.f32 %v321, %v577
    %v834 = vmul.f32 %v322, %v578
    %v835 = vmul.f32 %v323, %v579
    %v836 = vmul.f32 %v324, %v580
    %v837 = vmul.f32 %v325, %v581
    %v838 = vmul.f32 %v326, %v582
    %v839 = vmul.f32 %v327, %v583
    %v840 = vmul.f32 %v328, %v584
    %v841 = vmul.f32 %v329, %v585
    %v842 = vmul.f32 %v330, %v586
    %v843 = vmul.f32 %v331, %v587
    %v844 = vmul.f32 %v332, %v588
    %v845 = vmul.f32 %v333, %v589
    %v846 = vmul.f32 %v334, %v590
    %v847 = vmul.f32 %v335, %v591
    %v848 = vmul.f32 %v336, %v592
    %v849 = vmul.f32 %v337, %v593
    %v850 = vmul.f32 %v338, %v594
    %v851 = vmul.f32 %v339, %v595
    %v852 = vmul.f32 %v340, %v596
    %v853 = vmul.f32 %v341, %v597
    %v854 = vmul.f32 %v342, %v598
    %v855 = vmul.f32 %v343, %v599
    %v856 = vmul.f32 %v344, %v600
    %v857 = vpack.c.bf16 %v609, %v601
    %v858 = vpack.c.bf16 %v610, %v602
    %v859 = vpack.c.bf16 %v611, %v603
    %v860 = vpack.c.bf16 %v612, %v604
    %v861 = vpack.c.bf16 %v613, %v605
    %v862 = vpack.c.bf16 %v614, %v606
    %v863 = vpack.c.bf16 %v615, %v607
    %v864 = vpack.c.bf16 %v616, %v608
    %v865 = vpack.c.bf16 %v625, %v617
    %v866 = vpack.c.bf16 %v626, %v618
    %v867 = vpack.c.bf16 %v627, %v619
    %v868 = vpack.c.bf16 %v628, %v620
    %v869 = vpack.c.bf16 %v629, %v621
    %v870 = vpack.c.bf16 %v630, %v622
    %v871 = vpack.c.bf16 %v631, %v623
    %v872 = vpack.c.bf16 %v632, %v624
    %v873 = vpack.c.bf16 %v641, %v633
    %v874 = vpack.c.bf16 %v642, %v634
    %v875 = vpack.c.bf16 %v643, %v635
    %v876 = vpack.c.bf16 %v644, %v636
    %v877 = vpack.c.bf16 %v645, %v637
    %v878 = vpack.c.bf16 %v646, %v638
    %v879 = vpack.c.bf16 %v647, %v639
    %v880 = vpack.c.bf16 %v648, %v640
    %v881 = vpack.c.bf16 %v657, %v649
    %v882 = vpack.c.bf16 %v658, %v650
    %v883 = vpack.c.bf16 %v659, %v651
    %v884 = vpack.c.bf16 %v660, %v652
    %v885 = vpack.c.bf16 %v661, %v653
    %v886 = vpack.c.bf16 %v662, %v654
    %v887 = vpack.c.bf16 %v663, %v655
    %v888 = vpack.c.bf16 %v664, %v656
    %v889 = vpack.c.bf16 %v673, %v665
    %v890 = vpack.c.bf16 %v674, %v666
    %v891 = vpack.c.bf16 %v675, %v667
    %v892 = vpack.c.bf16 %v676, %v668
    %v893 = vpack.c.bf16 %v677, %v669
    %v894 = vpack.c.bf16 %v678, %v670
    %v895 = vpack.c.bf16 %v679, %v671
    %v896 = vpack.c.bf16 %v680, %v672
    %v897 = vpack.c.bf16 %v689, %v681
    %v898 = vpack.c.bf16 %v690, %v682
    %v899 = vpack.c.bf16 %v691, %v683
    %v900 = vpack.c.bf16 %v692, %v684
    %v901 = vpack.c.bf16 %v693, %v685
    %v902 = vpack.c.bf16 %v694, %v686
    %v903 = vpack.c.bf16 %v695, %v687
    %v904 = vpack.c.bf16 %v696, %v688
    %v905 = vpack.c.bf16 %v705, %v697
    %v906 = vpack.c.bf16 %v706, %v698
    %v907 = vpack.c.bf16 %v707, %v699
    %v908 = vpack.c.bf16 %v708, %v700
    %v909 = vpack.c.bf16 %v709, %v701
    %v910 = vpack.c.bf16 %v710, %v702
    %v911 = vpack.c.bf16 %v711, %v703
    %v912 = vpack.c.bf16 %v712, %v704
    %v913 = vpack.c.bf16 %v721, %v713
    %v914 = vpack.c.bf16 %v722, %v714
    %v915 = vpack.c.bf16 %v723, %v715
    %v916 = vpack.c.bf16 %v724, %v716
    %v917 = vpack.c.bf16 %v725, %v717
    %v918 = vpack.c.bf16 %v726, %v718
    %v919 = vpack.c.bf16 %v727, %v719
    %v920 = vpack.c.bf16 %v728, %v720
    %v921 = vpack.c.bf16 %v737, %v729
    %v922 = vpack.c.bf16 %v738, %v730
    %v923 = vpack.c.bf16 %v739, %v731
    %v924 = vpack.c.bf16 %v740, %v732
    %v925 = vpack.c.bf16 %v741, %v733
    %v926 = vpack.c.bf16 %v742, %v734
    %v927 = vpack.c.bf16 %v743, %v735
    %v928 = vpack.c.bf16 %v744, %v736
    %v929 = vpack.c.bf16 %v753, %v745
    %v930 = vpack.c.bf16 %v754, %v746
    %v931 = vpack.c.bf16 %v755, %v747
    %v932 = vpack.c.bf16 %v756, %v748
    %v933 = vpack.c.bf16 %v757, %v749
    %v934 = vpack.c.bf16 %v758, %v750
    %v935 = vpack.c.bf16 %v759, %v751
    %v936 = vpack.c.bf16 %v760, %v752
    %v937 = vpack.c.bf16 %v769, %v761
    %v938 = vpack.c.bf16 %v770, %v762
    %v939 = vpack.c.bf16 %v771, %v763
    %v940 = vpack.c.bf16 %v772, %v764
    %v941 = vpack.c.bf16 %v773, %v765
    %v942 = vpack.c.bf16 %v774, %v766
    %v943 = vpack.c.bf16 %v775, %v767
    %v944 = vpack.c.bf16 %v776, %v768
    %v945 = vpack.c.bf16 %v785, %v777
    %v946 = vpack.c.bf16 %v786, %v778
    %v947 = vpack.c.bf16 %v787, %v779
    %v948 = vpack.c.bf16 %v788, %v780
    %v949 = vpack.c.bf16 %v789, %v781
    %v950 = vpack.c.bf16 %v790, %v782
    %v951 = vpack.c.bf16 %v791, %v783
    %v952 = vpack.c.bf16 %v792, %v784
    %v953 = vpack.c.bf16 %v801, %v793
    %v954 = vpack.c.bf16 %v802, %v794
    %v955 = vpack.c.bf16 %v803, %v795
    %v956 = vpack.c.bf16 %v804, %v796
    %v957 = vpack.c.bf16 %v805, %v797
    %v958 = vpack.c.bf16 %v806, %v798
    %v959 = vpack.c.bf16 %v807, %v799
    %v960 = vpack.c.bf16 %v808, %v800
    %v961 = vpack.c.bf16 %v817, %v809
    %v962 = vpack.c.bf16 %v818, %v810
    %v963 = vpack.c.bf16 %v819, %v811
    %v964 = vpack.c.bf16 %v820, %v812
    %v965 = vpack.c.bf16 %v821, %v813
    %v966 = vpack.c.bf16 %v822, %v814
    %v967 = vpack.c.bf16 %v823, %v815
    %v968 = vpack.c.bf16 %v824, %v816
    %v969 = vpack.c.bf16 %v833, %v825
    %v970 = vpack.c.bf16 %v834, %v826
    %v971 = vpack.c.bf16 %v835, %v827
    %v972 = vpack.c.bf16 %v836, %v828
    %v973 = vpack.c.bf16 %v837, %v829
    %v974 = vpack.c.bf16 %v838, %v830
    %v975 = vpack.c.bf16 %v839, %v831
    %v976 = vpack.c.bf16 %v840, %v832
    %v977 = vpack.c.bf16 %v849, %v841
    %v978 = vpack.c.bf16 %v850, %v842
    %v979 = vpack.c.bf16 %v851, %v843
    %v980 = vpack.c.bf16 %v852, %v844
    %v981 = vpack.c.bf16 %v853, %v845
    %v982 = vpack.c.bf16 %v854, %v846
    %v983 = vpack.c.bf16 %v855, %v847
    %v984 = vpack.c.bf16 %v856, %v848
    %v985 = vld [vmem:[#allocation7] sm:$0xff]
    %v986 = vld [vmem:[#allocation7 + $0x8] sm:$0xff]
    %v987 = vld [vmem:[#allocation7 + $0x10] sm:$0xff]
    %v988 = vld [vmem:[#allocation7 + $0x18] sm:$0xff]
    %v989 = vld [vmem:[#allocation7 + $0x20] sm:$0xff]
    %v990 = vld [vmem:[#allocation7 + $0x28] sm:$0xff]
    %v991 = vld [vmem:[#allocation7 + $0x30] sm:$0xff]
    %v992 = vld [vmem:[#allocation7 + $0x38] sm:$0xff]
    %v993 = vld [vmem:[#allocation7 + $0x40] sm:$0xff]
    %v994 = vld [vmem:[#allocation7 + $0x48] sm:$0xff]
    %v995 = vld [vmem:[#allocation7 + $0x50] sm:$0xff]
    %v996 = vld [vmem:[#allocation7 + $0x58] sm:$0xff]
    %v997 = vld [vmem:[#allocation7 + $0x60] sm:$0xff]
    %v998 = vld [vmem:[#allocation7 + $0x68] sm:$0xff]
    %v999 = vld [vmem:[#allocation7 + $0x70] sm:$0xff]
    %v1000 = vld [vmem:[#allocation7 + $0x78] sm:$0xff]
    %v1001 = vld [vmem:[#allocation7 + $0x80] sm:$0xff]
    %v1002 = vld [vmem:[#allocation7 + $0x88] sm:$0xff]
    %v1003 = vld [vmem:[#allocation7 + $0x90] sm:$0xff]
    %v1004 = vld [vmem:[#allocation7 + $0x98] sm:$0xff]
    %v1005 = vld [vmem:[#allocation7 + $0xa0] sm:$0xff]
    %v1006 = vld [vmem:[#allocation7 + $0xa8] sm:$0xff]
    %v1007 = vld [vmem:[#allocation7 + $0xb0] sm:$0xff]
    %v1008 = vld [vmem:[#allocation7 + $0xb8] sm:$0xff]
    %v1009 = vld [vmem:[#allocation7 + $0xc0] sm:$0xff]
    %v1010 = vld [vmem:[#allocation7 + $0xc8] sm:$0xff]
    %v1011 = vld [vmem:[#allocation7 + $0xd0] sm:$0xff]
    %v1012 = vld [vmem:[#allocation7 + $0xd8] sm:$0xff]
    %v1013 = vld [vmem:[#allocation7 + $0xe0] sm:$0xff]
    %v1014 = vld [vmem:[#allocation7 + $0xe8] sm:$0xff]
    %v1015 = vld [vmem:[#allocation7 + $0xf0] sm:$0xff]
    %v1016 = vld [vmem:[#allocation7 + $0xf8] sm:$0xff]
    %v1017 = vld [vmem:[#allocation7 + $0x100] sm:$0xff]
    %v1018 = vld [vmem:[#allocation7 + $0x108] sm:$0xff]
    %v1019 = vld [vmem:[#allocation7 + $0x110] sm:$0xff]
    %v1020 = vld [vmem:[#allocation7 + $0x118] sm:$0xff]
    %v1021 = vld [vmem:[#allocation7 + $0x120] sm:$0xff]
    %v1022 = vld [vmem:[#allocation7 + $0x128] sm:$0xff]
    %v1023 = vld [vmem:[#allocation7 + $0x130] sm:$0xff]
    %v1024 = vld [vmem:[#allocation7 + $0x138] sm:$0xff]
    %v1025 = vld [vmem:[#allocation7 + $0x140] sm:$0xff]
    %v1026 = vld [vmem:[#allocation7 + $0x148] sm:$0xff]
    %v1027 = vld [vmem:[#allocation7 + $0x150] sm:$0xff]
    %v1028 = vld [vmem:[#allocation7 + $0x158] sm:$0xff]
    %v1029 = vld [vmem:[#allocation7 + $0x160] sm:$0xff]
    %v1030 = vld [vmem:[#allocation7 + $0x168] sm:$0xff]
    %v1031 = vld [vmem:[#allocation7 + $0x170] sm:$0xff]
    %v1032 = vld [vmem:[#allocation7 + $0x178] sm:$0xff]
    %v1033 = vld [vmem:[#allocation7 + $0x180] sm:$0xff]
    %v1034 = vld [vmem:[#allocation7 + $0x188] sm:$0xff]
    %v1035 = vld [vmem:[#allocation7 + $0x190] sm:$0xff]
    %v1036 = vld [vmem:[#allocation7 + $0x198] sm:$0xff]
    %v1037 = vld [vmem:[#allocation7 + $0x1a0] sm:$0xff]
    %v1038 = vld [vmem:[#allocation7 + $0x1a8] sm:$0xff]
    %v1039 = vld [vmem:[#allocation7 + $0x1b0] sm:$0xff]
    %v1040 = vld [vmem:[#allocation7 + $0x1b8] sm:$0xff]
    %v1041 = vld [vmem:[#allocation7 + $0x1c0] sm:$0xff]
    %v1042 = vld [vmem:[#allocation7 + $0x1c8] sm:$0xff]
    %v1043 = vld [vmem:[#allocation7 + $0x1d0] sm:$0xff]
    %v1044 = vld [vmem:[#allocation7 + $0x1d8] sm:$0xff]
    %v1045 = vld [vmem:[#allocation7 + $0x1e0] sm:$0xff]
    %v1046 = vld [vmem:[#allocation7 + $0x1e8] sm:$0xff]
    %v1047 = vld [vmem:[#allocation7 + $0x1f0] sm:$0xff]
    %v1048 = vld [vmem:[#allocation7 + $0x1f8] sm:$0xff]
    %v1049 = vld [vmem:[#allocation7 + $0x200] sm:$0xff]
    %v1050 = vld [vmem:[#allocation7 + $0x208] sm:$0xff]
    %v1051 = vld [vmem:[#allocation7 + $0x210] sm:$0xff]
    %v1052 = vld [vmem:[#allocation7 + $0x218] sm:$0xff]
    %v1053 = vld [vmem:[#allocation7 + $0x220] sm:$0xff]
    %v1054 = vld [vmem:[#allocation7 + $0x228] sm:$0xff]
    %v1055 = vld [vmem:[#allocation7 + $0x230] sm:$0xff]
    %v1056 = vld [vmem:[#allocation7 + $0x238] sm:$0xff]
    %v1057 = vld [vmem:[#allocation7 + $0x240] sm:$0xff]
    %v1058 = vld [vmem:[#allocation7 + $0x248] sm:$0xff]
    %v1059 = vld [vmem:[#allocation7 + $0x250] sm:$0xff]
    %v1060 = vld [vmem:[#allocation7 + $0x258] sm:$0xff]
    %v1061 = vld [vmem:[#allocation7 + $0x260] sm:$0xff]
    %v1062 = vld [vmem:[#allocation7 + $0x268] sm:$0xff]
    %v1063 = vld [vmem:[#allocation7 + $0x270] sm:$0xff]
    %v1064 = vld [vmem:[#allocation7 + $0x278] sm:$0xff]
    %v1065 = vld [vmem:[#allocation7 + $0x280] sm:$0xff]
    %v1066 = vld [vmem:[#allocation7 + $0x288] sm:$0xff]
    %v1067 = vld [vmem:[#allocation7 + $0x290] sm:$0xff]
    %v1068 = vld [vmem:[#allocation7 + $0x298] sm:$0xff]
    %v1069 = vld [vmem:[#allocation7 + $0x2a0] sm:$0xff]
    %v1070 = vld [vmem:[#allocation7 + $0x2a8] sm:$0xff]
    %v1071 = vld [vmem:[#allocation7 + $0x2b0] sm:$0xff]
    %v1072 = vld [vmem:[#allocation7 + $0x2b8] sm:$0xff]
    %v1073 = vld [vmem:[#allocation7 + $0x2c0] sm:$0xff]
    %v1074 = vld [vmem:[#allocation7 + $0x2c8] sm:$0xff]
    %v1075 = vld [vmem:[#allocation7 + $0x2d0] sm:$0xff]
    %v1076 = vld [vmem:[#allocation7 + $0x2d8] sm:$0xff]
    %v1077 = vld [vmem:[#allocation7 + $0x2e0] sm:$0xff]
    %v1078 = vld [vmem:[#allocation7 + $0x2e8] sm:$0xff]
    %v1079 = vld [vmem:[#allocation7 + $0x2f0] sm:$0xff]
    %v1080 = vld [vmem:[#allocation7 + $0x2f8] sm:$0xff]
    %v1081 = vld [vmem:[#allocation7 + $0x300] sm:$0xff]
    %v1082 = vld [vmem:[#allocation7 + $0x308] sm:$0xff]
    %v1083 = vld [vmem:[#allocation7 + $0x310] sm:$0xff]
    %v1084 = vld [vmem:[#allocation7 + $0x318] sm:$0xff]
    %v1085 = vld [vmem:[#allocation7 + $0x320] sm:$0xff]
    %v1086 = vld [vmem:[#allocation7 + $0x328] sm:$0xff]
    %v1087 = vld [vmem:[#allocation7 + $0x330] sm:$0xff]
    %v1088 = vld [vmem:[#allocation7 + $0x338] sm:$0xff]
    %v1089 = vld [vmem:[#allocation7 + $0x340] sm:$0xff]
    %v1090 = vld [vmem:[#allocation7 + $0x348] sm:$0xff]
    %v1091 = vld [vmem:[#allocation7 + $0x350] sm:$0xff]
    %v1092 = vld [vmem:[#allocation7 + $0x358] sm:$0xff]
    %v1093 = vld [vmem:[#allocation7 + $0x360] sm:$0xff]
    %v1094 = vld [vmem:[#allocation7 + $0x368] sm:$0xff]
    %v1095 = vld [vmem:[#allocation7 + $0x370] sm:$0xff]
    %v1096 = vld [vmem:[#allocation7 + $0x378] sm:$0xff]
    %v1097 = vld [vmem:[#allocation7 + $0x380] sm:$0xff]
    %v1098 = vld [vmem:[#allocation7 + $0x388] sm:$0xff]
    %v1099 = vld [vmem:[#allocation7 + $0x390] sm:$0xff]
    %v1100 = vld [vmem:[#allocation7 + $0x398] sm:$0xff]
    %v1101 = vld [vmem:[#allocation7 + $0x3a0] sm:$0xff]
    %v1102 = vld [vmem:[#allocation7 + $0x3a8] sm:$0xff]
    %v1103 = vld [vmem:[#allocation7 + $0x3b0] sm:$0xff]
    %v1104 = vld [vmem:[#allocation7 + $0x3b8] sm:$0xff]
    %v1105 = vld [vmem:[#allocation7 + $0x3c0] sm:$0xff]
    %v1106 = vld [vmem:[#allocation7 + $0x3c8] sm:$0xff]
    %v1107 = vld [vmem:[#allocation7 + $0x3d0] sm:$0xff]
    %v1108 = vld [vmem:[#allocation7 + $0x3d8] sm:$0xff]
    %v1109 = vld [vmem:[#allocation7 + $0x3e0] sm:$0xff]
    %v1110 = vld [vmem:[#allocation7 + $0x3e8] sm:$0xff]
    %v1111 = vld [vmem:[#allocation7 + $0x3f0] sm:$0xff]
    %v1112 = vld [vmem:[#allocation7 + $0x3f8] sm:$0xff]
    %v1241 = vunpack.c.l.b16 %v985
    %v1242 = vunpack.c.h.b16 %v985
    %v1243 = vunpack.c.l.b16 %v986
    %v1244 = vunpack.c.h.b16 %v986
    %v1245 = vunpack.c.l.b16 %v987
    %v1246 = vunpack.c.h.b16 %v987
    %v1247 = vunpack.c.l.b16 %v988
    %v1248 = vunpack.c.h.b16 %v988
    %v1249 = vunpack.c.l.b16 %v989
    %v1250 = vunpack.c.h.b16 %v989
    %v1251 = vunpack.c.l.b16 %v990
    %v1252 = vunpack.c.h.b16 %v990
    %v1253 = vunpack.c.l.b16 %v991
    %v1254 = vunpack.c.h.b16 %v991
    %v1255 = vunpack.c.l.b16 %v992
    %v1256 = vunpack.c.h.b16 %v992
    %v1257 = vunpack.c.l.b16 %v993
    %v1258 = vunpack.c.h.b16 %v993
    %v1259 = vunpack.c.l.b16 %v994
    %v1260 = vunpack.c.h.b16 %v994
    %v1261 = vunpack.c.l.b16 %v995
    %v1262 = vunpack.c.h.b16 %v995
    %v1263 = vunpack.c.l.b16 %v996
    %v1264 = vunpack.c.h.b16 %v996
    %v1265 = vunpack.c.l.b16 %v997
    %v1266 = vunpack.c.h.b16 %v997
    %v1267 = vunpack.c.l.b16 %v998
    %v1268 = vunpack.c.h.b16 %v998
    %v1269 = vunpack.c.l.b16 %v999
    %v1270 = vunpack.c.h.b16 %v999
    %v1271 = vunpack.c.l.b16 %v1000
    %v1272 = vunpack.c.h.b16 %v1000
    %v1273 = vunpack.c.l.b16 %v1001
    %v1274 = vunpack.c.h.b16 %v1001
    %v1275 = vunpack.c.l.b16 %v1002
    %v1276 = vunpack.c.h.b16 %v1002
    %v1277 = vunpack.c.l.b16 %v1003
    %v1278 = vunpack.c.h.b16 %v1003
    %v1279 = vunpack.c.l.b16 %v1004
    %v1280 = vunpack.c.h.b16 %v1004
    %v1281 = vunpack.c.l.b16 %v1005
    %v1282 = vunpack.c.h.b16 %v1005
    %v1283 = vunpack.c.l.b16 %v1006
    %v1284 = vunpack.c.h.b16 %v1006
    %v1285 = vunpack.c.l.b16 %v1007
    %v1286 = vunpack.c.h.b16 %v1007
    %v1287 = vunpack.c.l.b16 %v1008
    %v1288 = vunpack.c.h.b16 %v1008
    %v1289 = vunpack.c.l.b16 %v1009
    %v1290 = vunpack.c.h.b16 %v1009
    %v1291 = vunpack.c.l.b16 %v1010
    %v1292 = vunpack.c.h.b16 %v1010
    %v1293 = vunpack.c.l.b16 %v1011
    %v1294 = vunpack.c.h.b16 %v1011
    %v1295 = vunpack.c.l.b16 %v1012
    %v1296 = vunpack.c.h.b16 %v1012
    %v1297 = vunpack.c.l.b16 %v1013
    %v1298 = vunpack.c.h.b16 %v1013
    %v1299 = vunpack.c.l.b16 %v1014
    %v1300 = vunpack.c.h.b16 %v1014
    %v1301 = vunpack.c.l.b16 %v1015
    %v1302 = vunpack.c.h.b16 %v1015
    %v1303 = vunpack.c.l.b16 %v1016
    %v1304 = vunpack.c.h.b16 %v1016
    %v1305 = vunpack.c.l.b16 %v1017
    %v1306 = vunpack.c.h.b16 %v1017
    %v1307 = vunpack.c.l.b16 %v1018
    %v1308 = vunpack.c.h.b16 %v1018
    %v1309 = vunpack.c.l.b16 %v1019
    %v1310 = vunpack.c.h.b16 %v1019
    %v1311 = vunpack.c.l.b16 %v1020
    %v1312 = vunpack.c.h.b16 %v1020
    %v1313 = vunpack.c.l.b16 %v1021
    %v1314 = vunpack.c.h.b16 %v1021
    %v1315 = vunpack.c.l.b16 %v1022
    %v1316 = vunpack.c.h.b16 %v1022
    %v1317 = vunpack.c.l.b16 %v1023
    %v1318 = vunpack.c.h.b16 %v1023
    %v1319 = vunpack.c.l.b16 %v1024
    %v1320 = vunpack.c.h.b16 %v1024
    %v1321 = vunpack.c.l.b16 %v1025
    %v1322 = vunpack.c.h.b16 %v1025
    %v1323 = vunpack.c.l.b16 %v1026
    %v1324 = vunpack.c.h.b16 %v1026
    %v1325 = vunpack.c.l.b16 %v1027
    %v1326 = vunpack.c.h.b16 %v1027
    %v1327 = vunpack.c.l.b16 %v1028
    %v1328 = vunpack.c.h.b16 %v1028
    %v1329 = vunpack.c.l.b16 %v1029
    %v1330 = vunpack.c.h.b16 %v1029
    %v1331 = vunpack.c.l.b16 %v1030
    %v1332 = vunpack.c.h.b16 %v1030
    %v1333 = vunpack.c.l.b16 %v1031
    %v1334 = vunpack.c.h.b16 %v1031
    %v1335 = vunpack.c.l.b16 %v1032
    %v1336 = vunpack.c.h.b16 %v1032
    %v1337 = vunpack.c.l.b16 %v1033
    %v1338 = vunpack.c.h.b16 %v1033
    %v1339 = vunpack.c.l.b16 %v1034
    %v1340 = vunpack.c.h.b16 %v1034
    %v1341 = vunpack.c.l.b16 %v1035
    %v1342 = vunpack.c.h.b16 %v1035
    %v1343 = vunpack.c.l.b16 %v1036
    %v1344 = vunpack.c.h.b16 %v1036
    %v1345 = vunpack.c.l.b16 %v1037
    %v1346 = vunpack.c.h.b16 %v1037
    %v1347 = vunpack.c.l.b16 %v1038
    %v1348 = vunpack.c.h.b16 %v1038
    %v1349 = vunpack.c.l.b16 %v1039
    %v1350 = vunpack.c.h.b16 %v1039
    %v1351 = vunpack.c.l.b16 %v1040
    %v1352 = vunpack.c.h.b16 %v1040
    %v1353 = vunpack.c.l.b16 %v1041
    %v1354 = vunpack.c.h.b16 %v1041
    %v1355 = vunpack.c.l.b16 %v1042
    %v1356 = vunpack.c.h.b16 %v1042
    %v1357 = vunpack.c.l.b16 %v1043
    %v1358 = vunpack.c.h.b16 %v1043
    %v1359 = vunpack.c.l.b16 %v1044
    %v1360 = vunpack.c.h.b16 %v1044
    %v1361 = vunpack.c.l.b16 %v1045
    %v1362 = vunpack.c.h.b16 %v1045
    %v1363 = vunpack.c.l.b16 %v1046
    %v1364 = vunpack.c.h.b16 %v1046
    %v1365 = vunpack.c.l.b16 %v1047
    %v1366 = vunpack.c.h.b16 %v1047
    %v1367 = vunpack.c.l.b16 %v1048
    %v1368 = vunpack.c.h.b16 %v1048
    %v1369 = vunpack.c.l.b16 %v1049
    %v1370 = vunpack.c.h.b16 %v1049
    %v1371 = vunpack.c.l.b16 %v1050
    %v1372 = vunpack.c.h.b16 %v1050
    %v1373 = vunpack.c.l.b16 %v1051
    %v1374 = vunpack.c.h.b16 %v1051
    %v1375 = vunpack.c.l.b16 %v1052
    %v1376 = vunpack.c.h.b16 %v1052
    %v1377 = vunpack.c.l.b16 %v1053
    %v1378 = vunpack.c.h.b16 %v1053
    %v1379 = vunpack.c.l.b16 %v1054
    %v1380 = vunpack.c.h.b16 %v1054
    %v1381 = vunpack.c.l.b16 %v1055
    %v1382 = vunpack.c.h.b16 %v1055
    %v1383 = vunpack.c.l.b16 %v1056
    %v1384 = vunpack.c.h.b16 %v1056
    %v1385 = vunpack.c.l.b16 %v1057
    %v1386 = vunpack.c.h.b16 %v1057
    %v1387 = vunpack.c.l.b16 %v1058
    %v1388 = vunpack.c.h.b16 %v1058
    %v1389 = vunpack.c.l.b16 %v1059
    %v1390 = vunpack.c.h.b16 %v1059
    %v1391 = vunpack.c.l.b16 %v1060
    %v1392 = vunpack.c.h.b16 %v1060
    %v1393 = vunpack.c.l.b16 %v1061
    %v1394 = vunpack.c.h.b16 %v1061
    %v1395 = vunpack.c.l.b16 %v1062
    %v1396 = vunpack.c.h.b16 %v1062
    %v1397 = vunpack.c.l.b16 %v1063
    %v1398 = vunpack.c.h.b16 %v1063
    %v1399 = vunpack.c.l.b16 %v1064
    %v1400 = vunpack.c.h.b16 %v1064
    %v1401 = vunpack.c.l.b16 %v1065
    %v1402 = vunpack.c.h.b16 %v1065
    %v1403 = vunpack.c.l.b16 %v1066
    %v1404 = vunpack.c.h.b16 %v1066
    %v1405 = vunpack.c.l.b16 %v1067
    %v1406 = vunpack.c.h.b16 %v1067
    %v1407 = vunpack.c.l.b16 %v1068
    %v1408 = vunpack.c.h.b16 %v1068
    %v1409 = vunpack.c.l.b16 %v1069
    %v1410 = vunpack.c.h.b16 %v1069
    %v1411 = vunpack.c.l.b16 %v1070
    %v1412 = vunpack.c.h.b16 %v1070
    %v1413 = vunpack.c.l.b16 %v1071
    %v1414 = vunpack.c.h.b16 %v1071
    %v1415 = vunpack.c.l.b16 %v1072
    %v1416 = vunpack.c.h.b16 %v1072
    %v1417 = vunpack.c.l.b16 %v1073
    %v1418 = vunpack.c.h.b16 %v1073
    %v1419 = vunpack.c.l.b16 %v1074
    %v1420 = vunpack.c.h.b16 %v1074
    %v1421 = vunpack.c.l.b16 %v1075
    %v1422 = vunpack.c.h.b16 %v1075
    %v1423 = vunpack.c.l.b16 %v1076
    %v1424 = vunpack.c.h.b16 %v1076
    %v1425 = vunpack.c.l.b16 %v1077
    %v1426 = vunpack.c.h.b16 %v1077
    %v1427 = vunpack.c.l.b16 %v1078
    %v1428 = vunpack.c.h.b16 %v1078
    %v1429 = vunpack.c.l.b16 %v1079
    %v1430 = vunpack.c.h.b16 %v1079
    %v1431 = vunpack.c.l.b16 %v1080
    %v1432 = vunpack.c.h.b16 %v1080
    %v1433 = vunpack.c.l.b16 %v1081
    %v1434 = vunpack.c.h.b16 %v1081
    %v1435 = vunpack.c.l.b16 %v1082
    %v1436 = vunpack.c.h.b16 %v1082
    %v1437 = vunpack.c.l.b16 %v1083
    %v1438 = vunpack.c.h.b16 %v1083
    %v1439 = vunpack.c.l.b16 %v1084
    %v1440 = vunpack.c.h.b16 %v1084
    %v1441 = vunpack.c.l.b16 %v1085
    %v1442 = vunpack.c.h.b16 %v1085
    %v1443 = vunpack.c.l.b16 %v1086
    %v1444 = vunpack.c.h.b16 %v1086
    %v1445 = vunpack.c.l.b16 %v1087
    %v1446 = vunpack.c.h.b16 %v1087
    %v1447 = vunpack.c.l.b16 %v1088
    %v1448 = vunpack.c.h.b16 %v1088
    %v1449 = vunpack.c.l.b16 %v1089
    %v1450 = vunpack.c.h.b16 %v1089
    %v1451 = vunpack.c.l.b16 %v1090
    %v1452 = vunpack.c.h.b16 %v1090
    %v1453 = vunpack.c.l.b16 %v1091
    %v1454 = vunpack.c.h.b16 %v1091
    %v1455 = vunpack.c.l.b16 %v1092
    %v1456 = vunpack.c.h.b16 %v1092
    %v1457 = vunpack.c.l.b16 %v1093
    %v1458 = vunpack.c.h.b16 %v1093
    %v1459 = vunpack.c.l.b16 %v1094
    %v1460 = vunpack.c.h.b16 %v1094
    %v1461 = vunpack.c.l.b16 %v1095
    %v1462 = vunpack.c.h.b16 %v1095
    %v1463 = vunpack.c.l.b16 %v1096
    %v1464 = vunpack.c.h.b16 %v1096
    %v1465 = vunpack.c.l.b16 %v1097
    %v1466 = vunpack.c.h.b16 %v1097
    %v1467 = vunpack.c.l.b16 %v1098
    %v1468 = vunpack.c.h.b16 %v1098
    %v1469 = vunpack.c.l.b16 %v1099
    %v1470 = vunpack.c.h.b16 %v1099
    %v1471 = vunpack.c.l.b16 %v1100
    %v1472 = vunpack.c.h.b16 %v1100
    %v1473 = vunpack.c.l.b16 %v1101
    %v1474 = vunpack.c.h.b16 %v1101
    %v1475 = vunpack.c.l.b16 %v1102
    %v1476 = vunpack.c.h.b16 %v1102
    %v1477 = vunpack.c.l.b16 %v1103
    %v1478 = vunpack.c.h.b16 %v1103
    %v1479 = vunpack.c.l.b16 %v1104
    %v1480 = vunpack.c.h.b16 %v1104
    %v1481 = vunpack.c.l.b16 %v1105
    %v1482 = vunpack.c.h.b16 %v1105
    %v1483 = vunpack.c.l.b16 %v1106
    %v1484 = vunpack.c.h.b16 %v1106
    %v1485 = vunpack.c.l.b16 %v1107
    %v1486 = vunpack.c.h.b16 %v1107
    %v1487 = vunpack.c.l.b16 %v1108
    %v1488 = vunpack.c.h.b16 %v1108
    %v1489 = vunpack.c.l.b16 %v1109
    %v1490 = vunpack.c.h.b16 %v1109
    %v1491 = vunpack.c.l.b16 %v1110
    %v1492 = vunpack.c.h.b16 %v1110
    %v1493 = vunpack.c.l.b16 %v1111
    %v1494 = vunpack.c.h.b16 %v1111
    %v1495 = vunpack.c.l.b16 %v1112
    %v1496 = vunpack.c.h.b16 %v1112
    %v1497 = vpack.c.b16 %v1243, %v1241
    %v1498 = vpack.c.b16 %v1244, %v1242
    %v1499 = vpack.c.b16 %v1247, %v1245
    %v1500 = vpack.c.b16 %v1248, %v1246
    %v1501 = vpack.c.b16 %v1251, %v1249
    %v1502 = vpack.c.b16 %v1252, %v1250
    %v1503 = vpack.c.b16 %v1255, %v1253
    %v1504 = vpack.c.b16 %v1256, %v1254
    %v1505 = vpack.c.b16 %v1259, %v1257
    %v1506 = vpack.c.b16 %v1260, %v1258
    %v1507 = vpack.c.b16 %v1263, %v1261
    %v1508 = vpack.c.b16 %v1264, %v1262
    %v1509 = vpack.c.b16 %v1267, %v1265
    %v1510 = vpack.c.b16 %v1268, %v1266
    %v1511 = vpack.c.b16 %v1271, %v1269
    %v1512 = vpack.c.b16 %v1272, %v1270
    %v1513 = vpack.c.b16 %v1275, %v1273
    %v1514 = vpack.c.b16 %v1276, %v1274
    %v1515 = vpack.c.b16 %v1279, %v1277
    %v1516 = vpack.c.b16 %v1280, %v1278
    %v1517 = vpack.c.b16 %v1283, %v1281
    %v1518 = vpack.c.b16 %v1284, %v1282
    %v1519 = vpack.c.b16 %v1287, %v1285
    %v1520 = vpack.c.b16 %v1288, %v1286
    %v1521 = vpack.c.b16 %v1291, %v1289
    %v1522 = vpack.c.b16 %v1292, %v1290
    %v1523 = vpack.c.b16 %v1295, %v1293
    %v1524 = vpack.c.b16 %v1296, %v1294
    %v1525 = vpack.c.b16 %v1299, %v1297
    %v1526 = vpack.c.b16 %v1300, %v1298
    %v1527 = vpack.c.b16 %v1303, %v1301
    %v1528 = vpack.c.b16 %v1304, %v1302
    %v1529 = vpack.c.b16 %v1307, %v1305
    %v1530 = vpack.c.b16 %v1308, %v1306
    %v1531 = vpack.c.b16 %v1311, %v1309
    %v1532 = vpack.c.b16 %v1312, %v1310
    %v1533 = vpack.c.b16 %v1315, %v1313
    %v1534 = vpack.c.b16 %v1316, %v1314
    %v1535 = vpack.c.b16 %v1319, %v1317
    %v1536 = vpack.c.b16 %v1320, %v1318
    %v1537 = vpack.c.b16 %v1323, %v1321
    %v1538 = vpack.c.b16 %v1324, %v1322
    %v1539 = vpack.c.b16 %v1327, %v1325
    %v1540 = vpack.c.b16 %v1328, %v1326
    %v1541 = vpack.c.b16 %v1331, %v1329
    %v1542 = vpack.c.b16 %v1332, %v1330
    %v1543 = vpack.c.b16 %v1335, %v1333
    %v1544 = vpack.c.b16 %v1336, %v1334
    %v1545 = vpack.c.b16 %v1339, %v1337
    %v1546 = vpack.c.b16 %v1340, %v1338
    %v1547 = vpack.c.b16 %v1343, %v1341
    %v1548 = vpack.c.b16 %v1344, %v1342
    %v1549 = vpack.c.b16 %v1347, %v1345
    %v1550 = vpack.c.b16 %v1348, %v1346
    %v1551 = vpack.c.b16 %v1351, %v1349
    %v1552 = vpack.c.b16 %v1352, %v1350
    %v1553 = vpack.c.b16 %v1355, %v1353
    %v1554 = vpack.c.b16 %v1356, %v1354
    %v1555 = vpack.c.b16 %v1359, %v1357
    %v1556 = vpack.c.b16 %v1360, %v1358
    %v1557 = vpack.c.b16 %v1363, %v1361
    %v1558 = vpack.c.b16 %v1364, %v1362
    %v1559 = vpack.c.b16 %v1367, %v1365
    %v1560 = vpack.c.b16 %v1368, %v1366
    %v1561 = vpack.c.b16 %v1371, %v1369
    %v1562 = vpack.c.b16 %v1372, %v1370
    %v1563 = vpack.c.b16 %v1375, %v1373
    %v1564 = vpack.c.b16 %v1376, %v1374
    %v1565 = vpack.c.b16 %v1379, %v1377
    %v1566 = vpack.c.b16 %v1380, %v1378
    %v1567 = vpack.c.b16 %v1383, %v1381
    %v1568 = vpack.c.b16 %v1384, %v1382
    %v1569 = vpack.c.b16 %v1387, %v1385
    %v1570 = vpack.c.b16 %v1388, %v1386
    %v1571 = vpack.c.b16 %v1391, %v1389
    %v1572 = vpack.c.b16 %v1392, %v1390
    %v1573 = vpack.c.b16 %v1395, %v1393
    %v1574 = vpack.c.b16 %v1396, %v1394
    %v1575 = vpack.c.b16 %v1399, %v1397
    %v1576 = vpack.c.b16 %v1400, %v1398
    %v1577 = vpack.c.b16 %v1403, %v1401
    %v1578 = vpack.c.b16 %v1404, %v1402
    %v1579 = vpack.c.b16 %v1407, %v1405
    %v1580 = vpack.c.b16 %v1408, %v1406
    %v1581 = vpack.c.b16 %v1411, %v1409
    %v1582 = vpack.c.b16 %v1412, %v1410
    %v1583 = vpack.c.b16 %v1415, %v1413
    %v1584 = vpack.c.b16 %v1416, %v1414
    %v1585 = vpack.c.b16 %v1419, %v1417
    %v1586 = vpack.c.b16 %v1420, %v1418
    %v1587 = vpack.c.b16 %v1423, %v1421
    %v1588 = vpack.c.b16 %v1424, %v1422
    %v1589 = vpack.c.b16 %v1427, %v1425
    %v1590 = vpack.c.b16 %v1428, %v1426
    %v1591 = vpack.c.b16 %v1431, %v1429
    %v1592 = vpack.c.b16 %v1432, %v1430
    %v1593 = vpack.c.b16 %v1435, %v1433
    %v1594 = vpack.c.b16 %v1436, %v1434
    %v1595 = vpack.c.b16 %v1439, %v1437
    %v1596 = vpack.c.b16 %v1440, %v1438
    %v1597 = vpack.c.b16 %v1443, %v1441
    %v1598 = vpack.c.b16 %v1444, %v1442
    %v1599 = vpack.c.b16 %v1447, %v1445
    %v1600 = vpack.c.b16 %v1448, %v1446
    %v1601 = vpack.c.b16 %v1451, %v1449
    %v1602 = vpack.c.b16 %v1452, %v1450
    %v1603 = vpack.c.b16 %v1455, %v1453
    %v1604 = vpack.c.b16 %v1456, %v1454
    %v1605 = vpack.c.b16 %v1459, %v1457
    %v1606 = vpack.c.b16 %v1460, %v1458
    %v1607 = vpack.c.b16 %v1463, %v1461
    %v1608 = vpack.c.b16 %v1464, %v1462
    %v1609 = vpack.c.b16 %v1467, %v1465
    %v1610 = vpack.c.b16 %v1468, %v1466
    %v1611 = vpack.c.b16 %v1471, %v1469
    %v1612 = vpack.c.b16 %v1472, %v1470
    %v1613 = vpack.c.b16 %v1475, %v1473
    %v1614 = vpack.c.b16 %v1476, %v1474
    %v1615 = vpack.c.b16 %v1479, %v1477
    %v1616 = vpack.c.b16 %v1480, %v1478
    %v1617 = vpack.c.b16 %v1483, %v1481
    %v1618 = vpack.c.b16 %v1484, %v1482
    %v1619 = vpack.c.b16 %v1487, %v1485
    %v1620 = vpack.c.b16 %v1488, %v1486
    %v1621 = vpack.c.b16 %v1491, %v1489
    %v1622 = vpack.c.b16 %v1492, %v1490
    %v1623 = vpack.c.b16 %v1495, %v1493
    %v1624 = vpack.c.b16 %v1496, %v1494
    %1753 = vmatprep.subr.bf16.mxu0 %v1498
    %1754 = vmatpush1.bf16.msra.mxu0 %v1497
    %1755 = vmatprep.subr.bf16.mxu0 %v1500
    %1756 = vmatpush1.bf16.msra.mxu0 %v1499
    %1757 = vmatprep.subr.bf16.mxu0 %v1502
    %1758 = vmatpush1.bf16.msra.mxu0 %v1501
    %1759 = vmatprep.subr.bf16.mxu0 %v1504
    %1760 = vmatpush1.bf16.msra.mxu0 %v1503
    %1761 = vmatprep.subr.bf16.mxu0 %v1506
    %1762 = vmatpush1.bf16.msra.mxu0 %v1505
    %1763 = vmatprep.subr.bf16.mxu0 %v1508
    %1764 = vmatpush1.bf16.msra.mxu0 %v1507
    %1765 = vmatprep.subr.bf16.mxu0 %v1510
    %1766 = vmatpush1.bf16.msra.mxu0 %v1509
    %1767 = vmatprep.subr.bf16.mxu0 %v1512
    %1768 = vmatpush1.bf16.msra.mxu0 %v1511
    %1769 = vmatprep.subr.bf16.mxu0 %v1514
    %1770 = vmatpush1.bf16.msra.mxu0 %v1513
    %1771 = vmatprep.subr.bf16.mxu0 %v1516
    %1772 = vmatpush1.bf16.msra.mxu0 %v1515
    %1773 = vmatprep.subr.bf16.mxu0 %v1518
    %1774 = vmatpush1.bf16.msra.mxu0 %v1517
    %1775 = vmatprep.subr.bf16.mxu0 %v1520
    %1776 = vmatpush1.bf16.msra.mxu0 %v1519
    %1777 = vmatprep.subr.bf16.mxu0 %v1522
    %1778 = vmatpush1.bf16.msra.mxu0 %v1521
    %1779 = vmatprep.subr.bf16.mxu0 %v1524
    %1780 = vmatpush1.bf16.msra.mxu0 %v1523
    %1781 = vmatprep.subr.bf16.mxu0 %v1526
    %1782 = vmatpush1.bf16.msra.mxu0 %v1525
    %1783 = vmatprep.subr.bf16.mxu0 %v1528
    %1784 = vmatpush1.bf16.msra.mxu0 %v1527
    %1785 = vmatprep.mubr.bf16.mxu0 %v858
    %1786 = vmatmul.mubr.bf16.gmra.mrb[0].mxu0 %v857
    %v1787 = vpop.f32.mrb[0].mxu0
    %v1788 = vadd.f32 0.0, %v1787
    %v1789 = vpop.f32.mrb[0].mxu0
    %v1790 = vadd.f32 0.0, %v1789
    %v1791 = vpop.f32.mrb[0].mxu0
    %v1792 = vadd.f32 0.0, %v1791
    %v1793 = vpop.f32.mrb[0].mxu0
    %v1794 = vadd.f32 0.0, %v1793
    %1795 = vmatprep.mubr.bf16.mxu0 %v866
    %1796 = vmatmul.mubr.bf16.gmra.mrb[0].mxu0 %v865
    %v1797 = vpop.f32.mrb[0].mxu0
    %v1798 = vadd.f32 0.0, %v1797
    %v1799 = vpop.f32.mrb[0].mxu0
    %v1800 = vadd.f32 0.0, %v1799
    %v1801 = vpop.f32.mrb[0].mxu0
    %v1802 = vadd.f32 0.0, %v1801
    %v1803 = vpop.f32.mrb[0].mxu0
    %v1804 = vadd.f32 0.0, %v1803
    %1805 = vmatprep.mubr.bf16.mxu0 %v874
    %1806 = vmatmul.mubr.bf16.gmra.mrb[0].mxu0 %v873
    %v1807 = vpop.f32.mrb[0].mxu0
    %v1808 = vadd.f32 0.0, %v1807
    %v1809 = vpop.f32.mrb[0].mxu0
    %v1810 = vadd.f32 0.0, %v1809
    %v1811 = vpop.f32.mrb[0].mxu0
    %v1812 = vadd.f32 0.0, %v1811
    %v1813 = vpop.f32.mrb[0].mxu0
    %v1814 = vadd.f32 0.0, %v1813
    %1815 = vmatprep.mubr.bf16.mxu0 %v882
    %1816 = vmatmul.mubr.bf16.gmra.mrb[0].mxu0 %v881
    %v1817 = vpop.f32.mrb[0].mxu0
    %v1818 = vadd.f32 0.0, %v1817
    %v1819 = vpop.f32.mrb[0].mxu0
    %v1820 = vadd.f32 0.0, %v1819
    %v1821 = vpop.f32.mrb[0].mxu0
    %v1822 = vadd.f32 0.0, %v1821
    %v1823 = vpop.f32.mrb[0].mxu0
    %v1824 = vadd.f32 0.0, %v1823
    %1825 = vmatprep.mubr.bf16.mxu0 %v890
    %1826 = vmatmul.mubr.bf16.gmra.mrb[0].mxu0 %v889
    %v1827 = vpop.f32.mrb[0].mxu0
    %v1828 = vadd.f32 0.0, %v1827
    %v1829 = vpop.f32.mrb[0].mxu0
    %v1830 = vadd.f32 0.0, %v1829
    %v1831 = vpop.f32.mrb[0].mxu0
    %v1832 = vadd.f32 0.0, %v1831
    %v1833 = vpop.f32.mrb[0].mxu0
    %v1834 = vadd.f32 0.0, %v1833
    %1835 = vmatprep.mubr.bf16.mxu0 %v898
    %1836 = vmatmul.mubr.bf16.gmra.mrb[0].mxu0 %v897
    %v1837 = vpop.f32.mrb[0].mxu0
    %v1838 = vadd.f32 0.0, %v1837
    %v1839 = vpop.f32.mrb[0].mxu0
    %v1840 = vadd.f32 0.0, %v1839
    %v1841 = vpop.f32.mrb[0].mxu0
    %v1842 = vadd.f32 0.0, %v1841
    %v1843 = vpop.f32.mrb[0].mxu0
    %v1844 = vadd.f32 0.0, %v1843
    %1845 = vmatprep.mubr.bf16.mxu0 %v906
    %1846 = vmatmul.mubr.bf16.gmra.mrb[0].mxu0 %v905
    %v1847 = vpop.f32.mrb[0].mxu0
    %v1848 = vadd.f32 0.0, %v1847
    %v1849 = vpop.f32.mrb[0].mxu0
    %v1850 = vadd.f32 0.0, %v1849
    %v1851 = vpop.f32.mrb[0].mxu0
    %v1852 = vadd.f32 0.0, %v1851
    %v1853 = vpop.f32.mrb[0].mxu0
    %v1854 = vadd.f32 0.0, %v1853
    %1855 = vmatprep.mubr.bf16.mxu0 %v914
    %1856 = vmatmul.mubr.bf16.gmra.mrb[0].mxu0 %v913
    %v1857 = vpop.f32.mrb[0].mxu0
    %v1858 = vadd.f32 0.0, %v1857
    %v1859 = vpop.f32.mrb[0].mxu0
    %v1860 = vadd.f32 0.0, %v1859
    %v1861 = vpop.f32.mrb[0].mxu0
    %v1862 = vadd.f32 0.0, %v1861
    %v1863 = vpop.f32.mrb[0].mxu0
    %v1864 = vadd.f32 0.0, %v1863
    %1865 = vmatprep.mubr.bf16.mxu0 %v922
    %1866 = vmatmul.mubr.bf16.gmra.mrb[0].mxu0 %v921
    %v1867 = vpop.f32.mrb[0].mxu0
    %v1868 = vadd.f32 0.0, %v1867
    %v1869 = vpop.f32.mrb[0].mxu0
    %v1870 = vadd.f32 0.0, %v1869
    %v1871 = vpop.f32.mrb[0].mxu0
    %v1872 = vadd.f32 0.0, %v1871
    %v1873 = vpop.f32.mrb[0].mxu0
    %v1874 = vadd.f32 0.0, %v1873
    %1875 = vmatprep.mubr.bf16.mxu0 %v930
    %1876 = vmatmul.mubr.bf16.gmra.mrb[0].mxu0 %v929
    %v1877 = vpop.f32.mrb[0].mxu0
    %v1878 = vadd.f32 0.0, %v1877
    %v1879 = vpop.f32.mrb[0].mxu0
    %v1880 = vadd.f32 0.0, %v1879
    %v1881 = vpop.f32.mrb[0].mxu0
    %v1882 = vadd.f32 0.0, %v1881
    %v1883 = vpop.f32.mrb[0].mxu0
    %v1884 = vadd.f32 0.0, %v1883
    %1885 = vmatprep.mubr.bf16.mxu0 %v938
    %1886 = vmatmul.mubr.bf16.gmra.mrb[0].mxu0 %v937
    %v1887 = vpop.f32.mrb[0].mxu0
    %v1888 = vadd.f32 0.0, %v1887
    %v1889 = vpop.f32.mrb[0].mxu0
    %v1890 = vadd.f32 0.0, %v1889
    %v1891 = vpop.f32.mrb[0].mxu0
    %v1892 = vadd.f32 0.0, %v1891
    %v1893 = vpop.f32.mrb[0].mxu0
    %v1894 = vadd.f32 0.0, %v1893
    %1895 = vmatprep.mubr.bf16.mxu0 %v946
    %1896 = vmatmul.mubr.bf16.gmra.mrb[0].mxu0 %v945
    %v1897 = vpop.f32.mrb[0].mxu0
    %v1898 = vadd.f32 0.0, %v1897
    %v1899 = vpop.f32.mrb[0].mxu0
    %v1900 = vadd.f32 0.0, %v1899
    %v1901 = vpop.f32.mrb[0].mxu0
    %v1902 = vadd.f32 0.0, %v1901
    %v1903 = vpop.f32.mrb[0].mxu0
    %v1904 = vadd.f32 0.0, %v1903
    %1905 = vmatprep.mubr.bf16.mxu0 %v954
    %1906 = vmatmul.mubr.bf16.gmra.mrb[0].mxu0 %v953
    %v1907 = vpop.f32.mrb[0].mxu0
    %v1908 = vadd.f32 0.0, %v1907
    %v1909 = vpop.f32.mrb[0].mxu0
    %v1910 = vadd.f32 0.0, %v1909
    %v1911 = vpop.f32.mrb[0].mxu0
    %v1912 = vadd.f32 0.0, %v1911
    %v1913 = vpop.f32.mrb[0].mxu0
    %v1914 = vadd.f32 0.0, %v1913
    %1915 = vmatprep.mubr.bf16.mxu0 %v962
    %1916 = vmatmul.mubr.bf16.gmra.mrb[0].mxu0 %v961
    %v1917 = vpop.f32.mrb[0].mxu0
    %v1918 = vadd.f32 0.0, %v1917
    %v1919 = vpop.f32.mrb[0].mxu0
    %v1920 = vadd.f32 0.0, %v1919
    %v1921 = vpop.f32.mrb[0].mxu0
    %v1922 = vadd.f32 0.0, %v1921
    %v1923 = vpop.f32.mrb[0].mxu0
    %v1924 = vadd.f32 0.0, %v1923
    %1925 = vmatprep.mubr.bf16.mxu0 %v970
    %1926 = vmatmul.mubr.bf16.gmra.mrb[0].mxu0 %v969
    %v1927 = vpop.f32.mrb[0].mxu0
    %v1928 = vadd.f32 0.0, %v1927
    %v1929 = vpop.f32.mrb[0].mxu0
    %v1930 = vadd.f32 0.0, %v1929
    %v1931 = vpop.f32.mrb[0].mxu0
    %v1932 = vadd.f32 0.0, %v1931
    %v1933 = vpop.f32.mrb[0].mxu0
    %v1934 = vadd.f32 0.0, %v1933
    %1935 = vmatprep.mubr.bf16.mxu0 %v978
    %1936 = vmatmul.mubr.bf16.gmra.mrb[0].mxu0 %v977
    %v1937 = vpop.f32.mrb[0].mxu0
    %v1938 = vadd.f32 0.0, %v1937
    %v1939 = vpop.f32.mrb[0].mxu0
    %v1940 = vadd.f32 0.0, %v1939
    %v1941 = vpop.f32.mrb[0].mxu0
    %v1942 = vadd.f32 0.0, %v1941
    %v1943 = vpop.f32.mrb[0].mxu0
    %v1944 = vadd.f32 0.0, %v1943
    %1945 = vdwg.mxu0
    %1946 = vmatprep.subr.bf16.mxu0 %v1530
    %1947 = vmatpush1.bf16.msra.mxu0 %v1529
    %1948 = vmatprep.subr.bf16.mxu0 %v1532
    %1949 = vmatpush1.bf16.msra.mxu0 %v1531
    %1950 = vmatprep.subr.bf16.mxu0 %v1534
    %1951 = vmatpush1.bf16.msra.mxu0 %v1533
    %1952 = vmatprep.subr.bf16.mxu0 %v1536
    %1953 = vmatpush1.bf16.msra.mxu0 %v1535
    %1954 = vmatprep.subr.bf16.mxu0 %v1538
    %1955 = vmatpush1.bf16.msra.mxu0 %v1537
    %1956 = vmatprep.subr.bf16.mxu0 %v1540
    %1957 = vmatpush1.bf16.msra.mxu0 %v1539
    %1958 = vmatprep.subr.bf16.mxu0 %v1542
    %1959 = vmatpush1.bf16.msra.mxu0 %v1541
    %1960 = vmatprep.subr.bf16.mxu0 %v1544
    %1961 = vmatpush1.bf16.msra.mxu0 %v1543
    %1962 = vmatprep.subr.bf16.mxu0 %v1546
    %1963 = vmatpush1.bf16.msra.mxu0 %v1545
    %1964 = vmatprep.subr.bf16.mxu0 %v1548
    %1965 = vmatpush1.bf16.msra.mxu0 %v1547
    %1966 = vmatprep.subr.bf16.mxu0 %v1550
    %1967 = vmatpush1.bf16.msra.mxu0 %v1549
    %1968 = vmatprep.subr.bf16.mxu0 %v1552
    %1969 = vmatpush1.bf16.msra.mxu0 %v1551
    %1970 = vmatprep.subr.bf16.mxu0 %v1554
    %1971 = vmatpush1.bf16.msra.mxu0 %v1553
    %1972 = vmatprep.subr.bf16.mxu0 %v1556
    %1973 = vmatpush1.bf16.msra.mxu0 %v1555
    %1974 = vmatprep.subr.bf16.mxu0 %v1558
    %1975 = vmatpush1.bf16.msra.mxu0 %v1557
    %1976 = vmatprep.subr.bf16.mxu0 %v1560
    %1977 = vmatpush1.bf16.msra.mxu0 %v1559
    %1978 = vmatprep.mubr.bf16.mxu0 %v860
    %1979 = vmatmul.mubr.bf16.gmra.mrb[0].mxu0 %v859
    %v1980 = vpop.f32.mrb[0].mxu0
    %v1981 = vadd.f32 %v1788, %v1980
    %v1982 = vpop.f32.mrb[0].mxu0
    %v1983 = vadd.f32 %v1790, %v1982
    %v1984 = vpop.f32.mrb[0].mxu0
    %v1985 = vadd.f32 %v1792, %v1984
    %v1986 = vpop.f32.mrb[0].mxu0
    %v1987 = vadd.f32 %v1794, %v1986
    %1988 = vmatprep.mubr.bf16.mxu0 %v868
    %1989 = vmatmul.mubr.bf16.gmra.mrb[0].mxu0 %v867
    %v1990 = vpop.f32.mrb[0].mxu0
    %v1991 = vadd.f32 %v1798, %v1990
    %v1992 = vpop.f32.mrb[0].mxu0
    %v1993 = vadd.f32 %v1800, %v1992
    %v1994 = vpop.f32.mrb[0].mxu0
    %v1995 = vadd.f32 %v1802, %v1994
    %v1996 = vpop.f32.mrb[0].mxu0
    %v1997 = vadd.f32 %v1804, %v1996
    %1998 = vmatprep.mubr.bf16.mxu0 %v876
    %1999 = vmatmul.mubr.bf16.gmra.mrb[0].mxu0 %v875
    %v2000 = vpop.f32.mrb[0].mxu0
    %v2001 = vadd.f32 %v1808, %v2000
    %v2002 = vpop.f32.mrb[0].mxu0
    %v2003 = vadd.f32 %v1810, %v2002
    %v2004 = vpop.f32.mrb[0].mxu0
    %v2005 = vadd.f32 %v1812, %v2004
    %v2006 = vpop.f32.mrb[0].mxu0
    %v2007 = vadd.f32 %v1814, %v2006
    %2008 = vmatprep.mubr.bf16.mxu0 %v884
    %2009 = vmatmul.mubr.bf16.gmra.mrb[0].mxu0 %v883
    %v2010 = vpop.f32.mrb[0].mxu0
    %v2011 = vadd.f32 %v1818, %v2010
    %v2012 = vpop.f32.mrb[0].mxu0
    %v2013 = vadd.f32 %v1820, %v2012
    %v2014 = vpop.f32.mrb[0].mxu0
    %v2015 = vadd.f32 %v1822, %v2014
    %v2016 = vpop.f32.mrb[0].mxu0
    %v2017 = vadd.f32 %v1824, %v2016
    %2018 = vmatprep.mubr.bf16.mxu0 %v892
    %2019 = vmatmul.mubr.bf16.gmra.mrb[0].mxu0 %v891
    %v2020 = vpop.f32.mrb[0].mxu0
    %v2021 = vadd.f32 %v1828, %v2020
    %v2022 = vpop.f32.mrb[0].mxu0
    %v2023 = vadd.f32 %v1830, %v2022
    %v2024 = vpop.f32.mrb[0].mxu0
    %v2025 = vadd.f32 %v1832, %v2024
    %v2026 = vpop.f32.mrb[0].mxu0
    %v2027 = vadd.f32 %v1834, %v2026
    %2028 = vmatprep.mubr.bf16.mxu0 %v900
    %2029 = vmatmul.mubr.bf16.gmra.mrb[0].mxu0 %v899
    %v2030 = vpop.f32.mrb[0].mxu0
    %v2031 = vadd.f32 %v1838, %v2030
    %v2032 = vpop.f32.mrb[0].mxu0
    %v2033 = vadd.f32 %v1840, %v2032
    %v2034 = vpop.f32.mrb[0].mxu0
    %v2035 = vadd.f32 %v1842, %v2034
    %v2036 = vpop.f32.mrb[0].mxu0
    %v2037 = vadd.f32 %v1844, %v2036
    %2038 = vmatprep.mubr.bf16.mxu0 %v908
    %2039 = vmatmul.mubr.bf16.gmra.mrb[0].mxu0 %v907
    %v2040 = vpop.f32.mrb[0].mxu0
    %v2041 = vadd.f32 %v1848, %v2040
    %v2042 = vpop.f32.mrb[0].mxu0
    %v2043 = vadd.f32 %v1850, %v2042
    %v2044 = vpop.f32.mrb[0].mxu0
    %v2045 = vadd.f32 %v1852, %v2044
    %v2046 = vpop.f32.mrb[0].mxu0
    %v2047 = vadd.f32 %v1854, %v2046
    %2048 = vmatprep.mubr.bf16.mxu0 %v916
    %2049 = vmatmul.mubr.bf16.gmra.mrb[0].mxu0 %v915
    %v2050 = vpop.f32.mrb[0].mxu0
    %v2051 = vadd.f32 %v1858, %v2050
    %v2052 = vpop.f32.mrb[0].mxu0
    %v2053 = vadd.f32 %v1860, %v2052
    %v2054 = vpop.f32.mrb[0].mxu0
    %v2055 = vadd.f32 %v1862, %v2054
    %v2056 = vpop.f32.mrb[0].mxu0
    %v2057 = vadd.f32 %v1864, %v2056
    %2058 = vmatprep.mubr.bf16.mxu0 %v924
    %2059 = vmatmul.mubr.bf16.gmra.mrb[0].mxu0 %v923
    %v2060 = vpop.f32.mrb[0].mxu0
    %v2061 = vadd.f32 %v1868, %v2060
    %v2062 = vpop.f32.mrb[0].mxu0
    %v2063 = vadd.f32 %v1870, %v2062
    %v2064 = vpop.f32.mrb[0].mxu0
    %v2065 = vadd.f32 %v1872, %v2064
    %v2066 = vpop.f32.mrb[0].mxu0
    %v2067 = vadd.f32 %v1874, %v2066
    %2068 = vmatprep.mubr.bf16.mxu0 %v932
    %2069 = vmatmul.mubr.bf16.gmra.mrb[0].mxu0 %v931
    %v2070 = vpop.f32.mrb[0].mxu0
    %v2071 = vadd.f32 %v1878, %v2070
    %v2072 = vpop.f32.mrb[0].mxu0
    %v2073 = vadd.f32 %v1880, %v2072
    %v2074 = vpop.f32.mrb[0].mxu0
    %v2075 = vadd.f32 %v1882, %v2074
    %v2076 = vpop.f32.mrb[0].mxu0
    %v2077 = vadd.f32 %v1884, %v2076
    %2078 = vmatprep.mubr.bf16.mxu0 %v940
    %2079 = vmatmul.mubr.bf16.gmra.mrb[0].mxu0 %v939
    %v2080 = vpop.f32.mrb[0].mxu0
    %v2081 = vadd.f32 %v1888, %v2080
    %v2082 = vpop.f32.mrb[0].mxu0
    %v2083 = vadd.f32 %v1890, %v2082
    %v2084 = vpop.f32.mrb[0].mxu0
    %v2085 = vadd.f32 %v1892, %v2084
    %v2086 = vpop.f32.mrb[0].mxu0
    %v2087 = vadd.f32 %v1894, %v2086
    %2088 = vmatprep.mubr.bf16.mxu0 %v948
    %2089 = vmatmul.mubr.bf16.gmra.mrb[0].mxu0 %v947
    %v2090 = vpop.f32.mrb[0].mxu0
    %v2091 = vadd.f32 %v1898, %v2090
    %v2092 = vpop.f32.mrb[0].mxu0
    %v2093 = vadd.f32 %v1900, %v2092
    %v2094 = vpop.f32.mrb[0].mxu0
    %v2095 = vadd.f32 %v1902, %v2094
    %v2096 = vpop.f32.mrb[0].mxu0
    %v2097 = vadd.f32 %v1904, %v2096
    %2098 = vmatprep.mubr.bf16.mxu0 %v956
    %2099 = vmatmul.mubr.bf16.gmra.mrb[0].mxu0 %v955
    %v2100 = vpop.f32.mrb[0].mxu0
    %v2101 = vadd.f32 %v1908, %v2100
    %v2102 = vpop.f32.mrb[0].mxu0
    %v2103 = vadd.f32 %v1910, %v2102
    %v2104 = vpop.f32.mrb[0].mxu0
    %v2105 = vadd.f32 %v1912, %v2104
    %v2106 = vpop.f32.mrb[0].mxu0
    %v2107 = vadd.f32 %v1914, %v2106
    %2108 = vmatprep.mubr.bf16.mxu0 %v964
    %2109 = vmatmul.mubr.bf16.gmra.mrb[0].mxu0 %v963
    %v2110 = vpop.f32.mrb[0].mxu0
    %v2111 = vadd.f32 %v1918, %v2110
    %v2112 = vpop.f32.mrb[0].mxu0
    %v2113 = vadd.f32 %v1920, %v2112
    %v2114 = vpop.f32.mrb[0].mxu0
    %v2115 = vadd.f32 %v1922, %v2114
    %v2116 = vpop.f32.mrb[0].mxu0
    %v2117 = vadd.f32 %v1924, %v2116
    %2118 = vmatprep.mubr.bf16.mxu0 %v972
    %2119 = vmatmul.mubr.bf16.gmra.mrb[0].mxu0 %v971
    %v2120 = vpop.f32.mrb[0].mxu0
    %v2121 = vadd.f32 %v1928, %v2120
    %v2122 = vpop.f32.mrb[0].mxu0
    %v2123 = vadd.f32 %v1930, %v2122
    %v2124 = vpop.f32.mrb[0].mxu0
    %v2125 = vadd.f32 %v1932, %v2124
    %v2126 = vpop.f32.mrb[0].mxu0
    %v2127 = vadd.f32 %v1934, %v2126
    %2128 = vmatprep.mubr.bf16.mxu0 %v980
    %2129 = vmatmul.mubr.bf16.gmra.mrb[0].mxu0 %v979
    %v2130 = vpop.f32.mrb[0].mxu0
    %v2131 = vadd.f32 %v1938, %v2130
    %v2132 = vpop.f32.mrb[0].mxu0
    %v2133 = vadd.f32 %v1940, %v2132
    %v2134 = vpop.f32.mrb[0].mxu0
    %v2135 = vadd.f32 %v1942, %v2134
    %v2136 = vpop.f32.mrb[0].mxu0
    %v2137 = vadd.f32 %v1944, %v2136
    %2138 = vdwg.mxu0
    %2139 = vmatprep.subr.bf16.mxu0 %v1562
    %2140 = vmatpush1.bf16.msra.mxu0 %v1561
    %2141 = vmatprep.subr.bf16.mxu0 %v1564
    %2142 = vmatpush1.bf16.msra.mxu0 %v1563
    %2143 = vmatprep.subr.bf16.mxu0 %v1566
    %2144 = vmatpush1.bf16.msra.mxu0 %v1565
    %2145 = vmatprep.subr.bf16.mxu0 %v1568
    %2146 = vmatpush1.bf16.msra.mxu0 %v1567
    %2147 = vmatprep.subr.bf16.mxu0 %v1570
    %2148 = vmatpush1.bf16.msra.mxu0 %v1569
    %2149 = vmatprep.subr.bf16.mxu0 %v1572
    %2150 = vmatpush1.bf16.msra.mxu0 %v1571
    %2151 = vmatprep.subr.bf16.mxu0 %v1574
    %2152 = vmatpush1.bf16.msra.mxu0 %v1573
    %2153 = vmatprep.subr.bf16.mxu0 %v1576
    %2154 = vmatpush1.bf16.msra.mxu0 %v1575
    %2155 = vmatprep.subr.bf16.mxu0 %v1578
    %2156 = vmatpush1.bf16.msra.mxu0 %v1577
    %2157 = vmatprep.subr.bf16.mxu0 %v1580
    %2158 = vmatpush1.bf16.msra.mxu0 %v1579
    %2159 = vmatprep.subr.bf16.mxu0 %v1582
    %2160 = vmatpush1.bf16.msra.mxu0 %v1581
    %2161 = vmatprep.subr.bf16.mxu0 %v1584
    %2162 = vmatpush1.bf16.msra.mxu0 %v1583
    %2163 = vmatprep.subr.bf16.mxu0 %v1586
    %2164 = vmatpush1.bf16.msra.mxu0 %v1585
    %2165 = vmatprep.subr.bf16.mxu0 %v1588
    %2166 = vmatpush1.bf16.msra.mxu0 %v1587
    %2167 = vmatprep.subr.bf16.mxu0 %v1590
    %2168 = vmatpush1.bf16.msra.mxu0 %v1589
    %2169 = vmatprep.subr.bf16.mxu0 %v1592
    %2170 = vmatpush1.bf16.msra.mxu0 %v1591
    %2171 = vmatprep.mubr.bf16.mxu0 %v862
    %2172 = vmatmul.mubr.bf16.gmra.mrb[0].mxu0 %v861
    %v2173 = vpop.f32.mrb[0].mxu0
    %v2174 = vadd.f32 %v1981, %v2173
    %v2175 = vpop.f32.mrb[0].mxu0
    %v2176 = vadd.f32 %v1983, %v2175
    %v2177 = vpop.f32.mrb[0].mxu0
    %v2178 = vadd.f32 %v1985, %v2177
    %v2179 = vpop.f32.mrb[0].mxu0
    %v2180 = vadd.f32 %v1987, %v2179
    %2181 = vmatprep.mubr.bf16.mxu0 %v870
    %2182 = vmatmul.mubr.bf16.gmra.mrb[0].mxu0 %v869
    %v2183 = vpop.f32.mrb[0].mxu0
    %v2184 = vadd.f32 %v1991, %v2183
    %v2185 = vpop.f32.mrb[0].mxu0
    %v2186 = vadd.f32 %v1993, %v2185
    %v2187 = vpop.f32.mrb[0].mxu0
    %v2188 = vadd.f32 %v1995, %v2187
    %v2189 = vpop.f32.mrb[0].mxu0
    %v2190 = vadd.f32 %v1997, %v2189
    %2191 = vmatprep.mubr.bf16.mxu0 %v878
    %2192 = vmatmul.mubr.bf16.gmra.mrb[0].mxu0 %v877
    %v2193 = vpop.f32.mrb[0].mxu0
    %v2194 = vadd.f32 %v2001, %v2193
    %v2195 = vpop.f32.mrb[0].mxu0
    %v2196 = vadd.f32 %v2003, %v2195
    %v2197 = vpop.f32.mrb[0].mxu0
    %v2198 = vadd.f32 %v2005, %v2197
    %v2199 = vpop.f32.mrb[0].mxu0
    %v2200 = vadd.f32 %v2007, %v2199
    %2201 = vmatprep.mubr.bf16.mxu0 %v886
    %2202 = vmatmul.mubr.bf16.gmra.mrb[0].mxu0 %v885
    %v2203 = vpop.f32.mrb[0].mxu0
    %v2204 = vadd.f32 %v2011, %v2203
    %v2205 = vpop.f32.mrb[0].mxu0
    %v2206 = vadd.f32 %v2013, %v2205
    %v2207 = vpop.f32.mrb[0].mxu0
    %v2208 = vadd.f32 %v2015, %v2207
    %v2209 = vpop.f32.mrb[0].mxu0
    %v2210 = vadd.f32 %v2017, %v2209
    %2211 = vmatprep.mubr.bf16.mxu0 %v894
    %2212 = vmatmul.mubr.bf16.gmra.mrb[0].mxu0 %v893
    %v2213 = vpop.f32.mrb[0].mxu0
    %v2214 = vadd.f32 %v2021, %v2213
    %v2215 = vpop.f32.mrb[0].mxu0
    %v2216 = vadd.f32 %v2023, %v2215
    %v2217 = vpop.f32.mrb[0].mxu0
    %v2218 = vadd.f32 %v2025, %v2217
    %v2219 = vpop.f32.mrb[0].mxu0
    %v2220 = vadd.f32 %v2027, %v2219
    %2221 = vmatprep.mubr.bf16.mxu0 %v902
    %2222 = vmatmul.mubr.bf16.gmra.mrb[0].mxu0 %v901
    %v2223 = vpop.f32.mrb[0].mxu0
    %v2224 = vadd.f32 %v2031, %v2223
    %v2225 = vpop.f32.mrb[0].mxu0
    %v2226 = vadd.f32 %v2033, %v2225
    %v2227 = vpop.f32.mrb[0].mxu0
    %v2228 = vadd.f32 %v2035, %v2227
    %v2229 = vpop.f32.mrb[0].mxu0
    %v2230 = vadd.f32 %v2037, %v2229
    %2231 = vmatprep.mubr.bf16.mxu0 %v910
    %2232 = vmatmul.mubr.bf16.gmra.mrb[0].mxu0 %v909
    %v2233 = vpop.f32.mrb[0].mxu0
    %v2234 = vadd.f32 %v2041, %v2233
    %v2235 = vpop.f32.mrb[0].mxu0
    %v2236 = vadd.f32 %v2043, %v2235
    %v2237 = vpop.f32.mrb[0].mxu0
    %v2238 = vadd.f32 %v2045, %v2237
    %v2239 = vpop.f32.mrb[0].mxu0
    %v2240 = vadd.f32 %v2047, %v2239
    %2241 = vmatprep.mubr.bf16.mxu0 %v918
    %2242 = vmatmul.mubr.bf16.gmra.mrb[0].mxu0 %v917
    %v2243 = vpop.f32.mrb[0].mxu0
    %v2244 = vadd.f32 %v2051, %v2243
    %v2245 = vpop.f32.mrb[0].mxu0
    %v2246 = vadd.f32 %v2053, %v2245
    %v2247 = vpop.f32.mrb[0].mxu0
    %v2248 = vadd.f32 %v2055, %v2247
    %v2249 = vpop.f32.mrb[0].mxu0
    %v2250 = vadd.f32 %v2057, %v2249
    %2251 = vmatprep.mubr.bf16.mxu0 %v926
    %2252 = vmatmul.mubr.bf16.gmra.mrb[0].mxu0 %v925
    %v2253 = vpop.f32.mrb[0].mxu0
    %v2254 = vadd.f32 %v2061, %v2253
    %v2255 = vpop.f32.mrb[0].mxu0
    %v2256 = vadd.f32 %v2063, %v2255
    %v2257 = vpop.f32.mrb[0].mxu0
    %v2258 = vadd.f32 %v2065, %v2257
    %v2259 = vpop.f32.mrb[0].mxu0
    %v2260 = vadd.f32 %v2067, %v2259
    %2261 = vmatprep.mubr.bf16.mxu0 %v934
    %2262 = vmatmul.mubr.bf16.gmra.mrb[0].mxu0 %v933
    %v2263 = vpop.f32.mrb[0].mxu0
    %v2264 = vadd.f32 %v2071, %v2263
    %v2265 = vpop.f32.mrb[0].mxu0
    %v2266 = vadd.f32 %v2073, %v2265
    %v2267 = vpop.f32.mrb[0].mxu0
    %v2268 = vadd.f32 %v2075, %v2267
    %v2269 = vpop.f32.mrb[0].mxu0
    %v2270 = vadd.f32 %v2077, %v2269
    %2271 = vmatprep.mubr.bf16.mxu0 %v942
    %2272 = vmatmul.mubr.bf16.gmra.mrb[0].mxu0 %v941
    %v2273 = vpop.f32.mrb[0].mxu0
    %v2274 = vadd.f32 %v2081, %v2273
    %v2275 = vpop.f32.mrb[0].mxu0
    %v2276 = vadd.f32 %v2083, %v2275
    %v2277 = vpop.f32.mrb[0].mxu0
    %v2278 = vadd.f32 %v2085, %v2277
    %v2279 = vpop.f32.mrb[0].mxu0
    %v2280 = vadd.f32 %v2087, %v2279
    %2281 = vmatprep.mubr.bf16.mxu0 %v950
    %2282 = vmatmul.mubr.bf16.gmra.mrb[0].mxu0 %v949
    %v2283 = vpop.f32.mrb[0].mxu0
    %v2284 = vadd.f32 %v2091, %v2283
    %v2285 = vpop.f32.mrb[0].mxu0
    %v2286 = vadd.f32 %v2093, %v2285
    %v2287 = vpop.f32.mrb[0].mxu0
    %v2288 = vadd.f32 %v2095, %v2287
    %v2289 = vpop.f32.mrb[0].mxu0
    %v2290 = vadd.f32 %v2097, %v2289
    %2291 = vmatprep.mubr.bf16.mxu0 %v958
    %2292 = vmatmul.mubr.bf16.gmra.mrb[0].mxu0 %v957
    %v2293 = vpop.f32.mrb[0].mxu0
    %v2294 = vadd.f32 %v2101, %v2293
    %v2295 = vpop.f32.mrb[0].mxu0
    %v2296 = vadd.f32 %v2103, %v2295
    %v2297 = vpop.f32.mrb[0].mxu0
    %v2298 = vadd.f32 %v2105, %v2297
    %v2299 = vpop.f32.mrb[0].mxu0
    %v2300 = vadd.f32 %v2107, %v2299
    %2301 = vmatprep.mubr.bf16.mxu0 %v966
    %2302 = vmatmul.mubr.bf16.gmra.mrb[0].mxu0 %v965
    %v2303 = vpop.f32.mrb[0].mxu0
    %v2304 = vadd.f32 %v2111, %v2303
    %v2305 = vpop.f32.mrb[0].mxu0
    %v2306 = vadd.f32 %v2113, %v2305
    %v2307 = vpop.f32.mrb[0].mxu0
    %v2308 = vadd.f32 %v2115, %v2307
    %v2309 = vpop.f32.mrb[0].mxu0
    %v2310 = vadd.f32 %v2117, %v2309
    %2311 = vmatprep.mubr.bf16.mxu0 %v974
    %2312 = vmatmul.mubr.bf16.gmra.mrb[0].mxu0 %v973
    %v2313 = vpop.f32.mrb[0].mxu0
    %v2314 = vadd.f32 %v2121, %v2313
    %v2315 = vpop.f32.mrb[0].mxu0
    %v2316 = vadd.f32 %v2123, %v2315
    %v2317 = vpop.f32.mrb[0].mxu0
    %v2318 = vadd.f32 %v2125, %v2317
    %v2319 = vpop.f32.mrb[0].mxu0
    %v2320 = vadd.f32 %v2127, %v2319
    %2321 = vmatprep.mubr.bf16.mxu0 %v982
    %2322 = vmatmul.mubr.bf16.gmra.mrb[0].mxu0 %v981
    %v2323 = vpop.f32.mrb[0].mxu0
    %v2324 = vadd.f32 %v2131, %v2323
    %v2325 = vpop.f32.mrb[0].mxu0
    %v2326 = vadd.f32 %v2133, %v2325
    %v2327 = vpop.f32.mrb[0].mxu0
    %v2328 = vadd.f32 %v2135, %v2327
    %v2329 = vpop.f32.mrb[0].mxu0
    %v2330 = vadd.f32 %v2137, %v2329
    %2331 = vdwg.mxu0
    %2332 = vmatprep.subr.bf16.mxu0 %v1594
    %2333 = vmatpush1.bf16.msra.mxu0 %v1593
    %2334 = vmatprep.subr.bf16.mxu0 %v1596
    %2335 = vmatpush1.bf16.msra.mxu0 %v1595
    %2336 = vmatprep.subr.bf16.mxu0 %v1598
    %2337 = vmatpush1.bf16.msra.mxu0 %v1597
    %2338 = vmatprep.subr.bf16.mxu0 %v1600
    %2339 = vmatpush1.bf16.msra.mxu0 %v1599
    %2340 = vmatprep.subr.bf16.mxu0 %v1602
    %2341 = vmatpush1.bf16.msra.mxu0 %v1601
    %2342 = vmatprep.subr.bf16.mxu0 %v1604
    %2343 = vmatpush1.bf16.msra.mxu0 %v1603
    %2344 = vmatprep.subr.bf16.mxu0 %v1606
    %2345 = vmatpush1.bf16.msra.mxu0 %v1605
    %2346 = vmatprep.subr.bf16.mxu0 %v1608
    %2347 = vmatpush1.bf16.msra.mxu0 %v1607
    %2348 = vmatprep.subr.bf16.mxu0 %v1610
    %2349 = vmatpush1.bf16.msra.mxu0 %v1609
    %2350 = vmatprep.subr.bf16.mxu0 %v1612
    %2351 = vmatpush1.bf16.msra.mxu0 %v1611
    %2352 = vmatprep.subr.bf16.mxu0 %v1614
    %2353 = vmatpush1.bf16.msra.mxu0 %v1613
    %2354 = vmatprep.subr.bf16.mxu0 %v1616
    %2355 = vmatpush1.bf16.msra.mxu0 %v1615
    %2356 = vmatprep.subr.bf16.mxu0 %v1618
    %2357 = vmatpush1.bf16.msra.mxu0 %v1617
    %2358 = vmatprep.subr.bf16.mxu0 %v1620
    %2359 = vmatpush1.bf16.msra.mxu0 %v1619
    %2360 = vmatprep.subr.bf16.mxu0 %v1622
    %2361 = vmatpush1.bf16.msra.mxu0 %v1621
    %2362 = vmatprep.subr.bf16.mxu0 %v1624
    %2363 = vmatpush1.bf16.msra.mxu0 %v1623
    %2364 = vmatprep.mubr.bf16.mxu0 %v864
    %2365 = vmatmul.mubr.bf16.gmra.mrb[0].mxu0 %v863
    %v2366 = vpop.f32.mrb[0].mxu0
    %v2367 = vadd.f32 %v2174, %v2366
    %v2368 = vpop.f32.mrb[0].mxu0
    %v2369 = vadd.f32 %v2176, %v2368
    %v2370 = vpop.f32.mrb[0].mxu0
    %v2371 = vadd.f32 %v2178, %v2370
    %v2372 = vpop.f32.mrb[0].mxu0
    %v2373 = vadd.f32 %v2180, %v2372
    %2374 = vmatprep.mubr.bf16.mxu0 %v872
    %2375 = vmatmul.mubr.bf16.gmra.mrb[0].mxu0 %v871
    %v2376 = vpop.f32.mrb[0].mxu0
    %v2377 = vadd.f32 %v2184, %v2376
    %v2378 = vpop.f32.mrb[0].mxu0
    %v2379 = vadd.f32 %v2186, %v2378
    %v2380 = vpop.f32.mrb[0].mxu0
    %v2381 = vadd.f32 %v2188, %v2380
    %v2382 = vpop.f32.mrb[0].mxu0
    %v2383 = vadd.f32 %v2190, %v2382
    %2384 = vmatprep.mubr.bf16.mxu0 %v880
    %2385 = vmatmul.mubr.bf16.gmra.mrb[0].mxu0 %v879
    %v2386 = vpop.f32.mrb[0].mxu0
    %v2387 = vadd.f32 %v2194, %v2386
    %v2388 = vpop.f32.mrb[0].mxu0
    %v2389 = vadd.f32 %v2196, %v2388
    %v2390 = vpop.f32.mrb[0].mxu0
    %v2391 = vadd.f32 %v2198, %v2390
    %v2392 = vpop.f32.mrb[0].mxu0
    %v2393 = vadd.f32 %v2200, %v2392
    %2394 = vmatprep.mubr.bf16.mxu0 %v888
    %2395 = vmatmul.mubr.bf16.gmra.mrb[0].mxu0 %v887
    %v2396 = vpop.f32.mrb[0].mxu0
    %v2397 = vadd.f32 %v2204, %v2396
    %v2398 = vpop.f32.mrb[0].mxu0
    %v2399 = vadd.f32 %v2206, %v2398
    %v2400 = vpop.f32.mrb[0].mxu0
    %v2401 = vadd.f32 %v2208, %v2400
    %v2402 = vpop.f32.mrb[0].mxu0
    %v2403 = vadd.f32 %v2210, %v2402
    %2404 = vmatprep.mubr.bf16.mxu0 %v896
    %2405 = vmatmul.mubr.bf16.gmra.mrb[0].mxu0 %v895
    %v2406 = vpop.f32.mrb[0].mxu0
    %v2407 = vadd.f32 %v2214, %v2406
    %v2408 = vpop.f32.mrb[0].mxu0
    %v2409 = vadd.f32 %v2216, %v2408
    %v2410 = vpop.f32.mrb[0].mxu0
    %v2411 = vadd.f32 %v2218, %v2410
    %v2412 = vpop.f32.mrb[0].mxu0
    %v2413 = vadd.f32 %v2220, %v2412
    %2414 = vmatprep.mubr.bf16.mxu0 %v904
    %2415 = vmatmul.mubr.bf16.gmra.mrb[0].mxu0 %v903
    %v2416 = vpop.f32.mrb[0].mxu0
    %v2417 = vadd.f32 %v2224, %v2416
    %v2418 = vpop.f32.mrb[0].mxu0
    %v2419 = vadd.f32 %v2226, %v2418
    %v2420 = vpop.f32.mrb[0].mxu0
    %v2421 = vadd.f32 %v2228, %v2420
    %v2422 = vpop.f32.mrb[0].mxu0
    %v2423 = vadd.f32 %v2230, %v2422
    %2424 = vmatprep.mubr.bf16.mxu0 %v912
    %2425 = vmatmul.mubr.bf16.gmra.mrb[0].mxu0 %v911
    %v2426 = vpop.f32.mrb[0].mxu0
    %v2427 = vadd.f32 %v2234, %v2426
    %v2428 = vpop.f32.mrb[0].mxu0
    %v2429 = vadd.f32 %v2236, %v2428
    %v2430 = vpop.f32.mrb[0].mxu0
    %v2431 = vadd.f32 %v2238, %v2430
    %v2432 = vpop.f32.mrb[0].mxu0
    %v2433 = vadd.f32 %v2240, %v2432
    %2434 = vmatprep.mubr.bf16.mxu0 %v920
    %2435 = vmatmul.mubr.bf16.gmra.mrb[0].mxu0 %v919
    %v2436 = vpop.f32.mrb[0].mxu0
    %v2437 = vadd.f32 %v2244, %v2436
    %v2438 = vpop.f32.mrb[0].mxu0
    %v2439 = vadd.f32 %v2246, %v2438
    %v2440 = vpop.f32.mrb[0].mxu0
    %v2441 = vadd.f32 %v2248, %v2440
    %v2442 = vpop.f32.mrb[0].mxu0
    %v2443 = vadd.f32 %v2250, %v2442
    %2444 = vmatprep.mubr.bf16.mxu0 %v928
    %2445 = vmatmul.mubr.bf16.gmra.mrb[0].mxu0 %v927
    %v2446 = vpop.f32.mrb[0].mxu0
    %v2447 = vadd.f32 %v2254, %v2446
    %v2448 = vpop.f32.mrb[0].mxu0
    %v2449 = vadd.f32 %v2256, %v2448
    %v2450 = vpop.f32.mrb[0].mxu0
    %v2451 = vadd.f32 %v2258, %v2450
    %v2452 = vpop.f32.mrb[0].mxu0
    %v2453 = vadd.f32 %v2260, %v2452
    %2454 = vmatprep.mubr.bf16.mxu0 %v936
    %2455 = vmatmul.mubr.bf16.gmra.mrb[0].mxu0 %v935
    %v2456 = vpop.f32.mrb[0].mxu0
    %v2457 = vadd.f32 %v2264, %v2456
    %v2458 = vpop.f32.mrb[0].mxu0
    %v2459 = vadd.f32 %v2266, %v2458
    %v2460 = vpop.f32.mrb[0].mxu0
    %v2461 = vadd.f32 %v2268, %v2460
    %v2462 = vpop.f32.mrb[0].mxu0
    %v2463 = vadd.f32 %v2270, %v2462
    %2464 = vmatprep.mubr.bf16.mxu0 %v944
    %2465 = vmatmul.mubr.bf16.gmra.mrb[0].mxu0 %v943
    %v2466 = vpop.f32.mrb[0].mxu0
    %v2467 = vadd.f32 %v2274, %v2466
    %v2468 = vpop.f32.mrb[0].mxu0
    %v2469 = vadd.f32 %v2276, %v2468
    %v2470 = vpop.f32.mrb[0].mxu0
    %v2471 = vadd.f32 %v2278, %v2470
    %v2472 = vpop.f32.mrb[0].mxu0
    %v2473 = vadd.f32 %v2280, %v2472
    %2474 = vmatprep.mubr.bf16.mxu0 %v952
    %2475 = vmatmul.mubr.bf16.gmra.mrb[0].mxu0 %v951
    %v2476 = vpop.f32.mrb[0].mxu0
    %v2477 = vadd.f32 %v2284, %v2476
    %v2478 = vpop.f32.mrb[0].mxu0
    %v2479 = vadd.f32 %v2286, %v2478
    %v2480 = vpop.f32.mrb[0].mxu0
    %v2481 = vadd.f32 %v2288, %v2480
    %v2482 = vpop.f32.mrb[0].mxu0
    %v2483 = vadd.f32 %v2290, %v2482
    %2484 = vmatprep.mubr.bf16.mxu0 %v960
    %2485 = vmatmul.mubr.bf16.gmra.mrb[0].mxu0 %v959
    %v2486 = vpop.f32.mrb[0].mxu0
    %v2487 = vadd.f32 %v2294, %v2486
    %v2488 = vpop.f32.mrb[0].mxu0
    %v2489 = vadd.f32 %v2296, %v2488
    %v2490 = vpop.f32.mrb[0].mxu0
    %v2491 = vadd.f32 %v2298, %v2490
    %v2492 = vpop.f32.mrb[0].mxu0
    %v2493 = vadd.f32 %v2300, %v2492
    %2494 = vmatprep.mubr.bf16.mxu0 %v968
    %2495 = vmatmul.mubr.bf16.gmra.mrb[0].mxu0 %v967
    %v2496 = vpop.f32.mrb[0].mxu0
    %v2497 = vadd.f32 %v2304, %v2496
    %v2498 = vpop.f32.mrb[0].mxu0
    %v2499 = vadd.f32 %v2306, %v2498
    %v2500 = vpop.f32.mrb[0].mxu0
    %v2501 = vadd.f32 %v2308, %v2500
    %v2502 = vpop.f32.mrb[0].mxu0
    %v2503 = vadd.f32 %v2310, %v2502
    %2504 = vmatprep.mubr.bf16.mxu0 %v976
    %2505 = vmatmul.mubr.bf16.gmra.mrb[0].mxu0 %v975
    %v2506 = vpop.f32.mrb[0].mxu0
    %v2507 = vadd.f32 %v2314, %v2506
    %v2508 = vpop.f32.mrb[0].mxu0
    %v2509 = vadd.f32 %v2316, %v2508
    %v2510 = vpop.f32.mrb[0].mxu0
    %v2511 = vadd.f32 %v2318, %v2510
    %v2512 = vpop.f32.mrb[0].mxu0
    %v2513 = vadd.f32 %v2320, %v2512
    %2514 = vmatprep.mubr.bf16.mxu0 %v984
    %2515 = vmatmul.mubr.bf16.gmra.mrb[0].mxu0 %v983
    %v2516 = vpop.f32.mrb[0].mxu0
    %v2517 = vadd.f32 %v2324, %v2516
    %v2518 = vpop.f32.mrb[0].mxu0
    %v2519 = vadd.f32 %v2326, %v2518
    %v2520 = vpop.f32.mrb[0].mxu0
    %v2521 = vadd.f32 %v2328, %v2520
    %v2522 = vpop.f32.mrb[0].mxu0
    %v2523 = vadd.f32 %v2330, %v2522
    %2524 = vdwg.mxu0
    %v2525 = vpack.c.bf16 %v2371, %v2367
    %v2526 = vpack.c.bf16 %v2373, %v2369
    %v2527 = vpack.c.bf16 %v2381, %v2377
    %v2528 = vpack.c.bf16 %v2383, %v2379
    %v2529 = vpack.c.bf16 %v2391, %v2387
    %v2530 = vpack.c.bf16 %v2393, %v2389
    %v2531 = vpack.c.bf16 %v2401, %v2397
    %v2532 = vpack.c.bf16 %v2403, %v2399
    %v2533 = vpack.c.bf16 %v2411, %v2407
    %v2534 = vpack.c.bf16 %v2413, %v2409
    %v2535 = vpack.c.bf16 %v2421, %v2417
    %v2536 = vpack.c.bf16 %v2423, %v2419
    %v2537 = vpack.c.bf16 %v2431, %v2427
    %v2538 = vpack.c.bf16 %v2433, %v2429
    %v2539 = vpack.c.bf16 %v2441, %v2437
    %v2540 = vpack.c.bf16 %v2443, %v2439
    %v2541 = vpack.c.bf16 %v2451, %v2447
    %v2542 = vpack.c.bf16 %v2453, %v2449
    %v2543 = vpack.c.bf16 %v2461, %v2457
    %v2544 = vpack.c.bf16 %v2463, %v2459
    %v2545 = vpack.c.bf16 %v2471, %v2467
    %v2546 = vpack.c.bf16 %v2473, %v2469
    %v2547 = vpack.c.bf16 %v2481, %v2477
    %v2548 = vpack.c.bf16 %v2483, %v2479
    %v2549 = vpack.c.bf16 %v2491, %v2487
    %v2550 = vpack.c.bf16 %v2493, %v2489
    %v2551 = vpack.c.bf16 %v2501, %v2497
    %v2552 = vpack.c.bf16 %v2503, %v2499
    %v2553 = vpack.c.bf16 %v2511, %v2507
    %v2554 = vpack.c.bf16 %v2513, %v2509
    %v2555 = vpack.c.bf16 %v2521, %v2517
    %v2556 = vpack.c.bf16 %v2523, %v2519
    %v2557 = vld [vmem:[#allocation8] sm:$0xff]
    %v2558 = vld [vmem:[#allocation8 + $0x8] sm:$0xff]
    %v2559 = vld [vmem:[#allocation8 + $0x10] sm:$0xff]
    %v2560 = vld [vmem:[#allocation8 + $0x18] sm:$0xff]
    %v2561 = vld [vmem:[#allocation8 + $0x20] sm:$0xff]
    %v2562 = vld [vmem:[#allocation8 + $0x28] sm:$0xff]
    %v2563 = vld [vmem:[#allocation8 + $0x30] sm:$0xff]
    %v2564 = vld [vmem:[#allocation8 + $0x38] sm:$0xff]
    %v2565 = vld [vmem:[#allocation8 + $0x40] sm:$0xff]
    %v2566 = vld [vmem:[#allocation8 + $0x48] sm:$0xff]
    %v2567 = vld [vmem:[#allocation8 + $0x50] sm:$0xff]
    %v2568 = vld [vmem:[#allocation8 + $0x58] sm:$0xff]
    %v2569 = vld [vmem:[#allocation8 + $0x60] sm:$0xff]
    %v2570 = vld [vmem:[#allocation8 + $0x68] sm:$0xff]
    %v2571 = vld [vmem:[#allocation8 + $0x70] sm:$0xff]
    %v2572 = vld [vmem:[#allocation8 + $0x78] sm:$0xff]
    %v2573 = vld [vmem:[#allocation8 + $0x80] sm:$0xff]
    %v2574 = vld [vmem:[#allocation8 + $0x88] sm:$0xff]
    %v2575 = vld [vmem:[#allocation8 + $0x90] sm:$0xff]
    %v2576 = vld [vmem:[#allocation8 + $0x98] sm:$0xff]
    %v2577 = vld [vmem:[#allocation8 + $0xa0] sm:$0xff]
    %v2578 = vld [vmem:[#allocation8 + $0xa8] sm:$0xff]
    %v2579 = vld [vmem:[#allocation8 + $0xb0] sm:$0xff]
    %v2580 = vld [vmem:[#allocation8 + $0xb8] sm:$0xff]
    %v2581 = vld [vmem:[#allocation8 + $0xc0] sm:$0xff]
    %v2582 = vld [vmem:[#allocation8 + $0xc8] sm:$0xff]
    %v2583 = vld [vmem:[#allocation8 + $0xd0] sm:$0xff]
    %v2584 = vld [vmem:[#allocation8 + $0xd8] sm:$0xff]
    %v2585 = vld [vmem:[#allocation8 + $0xe0] sm:$0xff]
    %v2586 = vld [vmem:[#allocation8 + $0xe8] sm:$0xff]
    %v2587 = vld [vmem:[#allocation8 + $0xf0] sm:$0xff]
    %v2588 = vld [vmem:[#allocation8 + $0xf8] sm:$0xff]
    %v2621 = vunpack.c.l.b16 %v2557
    %v2622 = vunpack.c.h.b16 %v2557
    %v2623 = vunpack.c.l.b16 %v2558
    %v2624 = vunpack.c.h.b16 %v2558
    %v2625 = vunpack.c.l.b16 %v2559
    %v2626 = vunpack.c.h.b16 %v2559
    %v2627 = vunpack.c.l.b16 %v2560
    %v2628 = vunpack.c.h.b16 %v2560
    %v2629 = vunpack.c.l.b16 %v2561
    %v2630 = vunpack.c.h.b16 %v2561
    %v2631 = vunpack.c.l.b16 %v2562
    %v2632 = vunpack.c.h.b16 %v2562
    %v2633 = vunpack.c.l.b16 %v2563
    %v2634 = vunpack.c.h.b16 %v2563
    %v2635 = vunpack.c.l.b16 %v2564
    %v2636 = vunpack.c.h.b16 %v2564
    %v2637 = vunpack.c.l.b16 %v2565
    %v2638 = vunpack.c.h.b16 %v2565
    %v2639 = vunpack.c.l.b16 %v2566
    %v2640 = vunpack.c.h.b16 %v2566
    %v2641 = vunpack.c.l.b16 %v2567
    %v2642 = vunpack.c.h.b16 %v2567
    %v2643 = vunpack.c.l.b16 %v2568
    %v2644 = vunpack.c.h.b16 %v2568
    %v2645 = vunpack.c.l.b16 %v2569
    %v2646 = vunpack.c.h.b16 %v2569
    %v2647 = vunpack.c.l.b16 %v2570
    %v2648 = vunpack.c.h.b16 %v2570
    %v2649 = vunpack.c.l.b16 %v2571
    %v2650 = vunpack.c.h.b16 %v2571
    %v2651 = vunpack.c.l.b16 %v2572
    %v2652 = vunpack.c.h.b16 %v2572
    %v2653 = vunpack.c.l.b16 %v2573
    %v2654 = vunpack.c.h.b16 %v2573
    %v2655 = vunpack.c.l.b16 %v2574
    %v2656 = vunpack.c.h.b16 %v2574
    %v2657 = vunpack.c.l.b16 %v2575
    %v2658 = vunpack.c.h.b16 %v2575
    %v2659 = vunpack.c.l.b16 %v2576
    %v2660 = vunpack.c.h.b16 %v2576
    %v2661 = vunpack.c.l.b16 %v2577
    %v2662 = vunpack.c.h.b16 %v2577
    %v2663 = vunpack.c.l.b16 %v2578
    %v2664 = vunpack.c.h.b16 %v2578
    %v2665 = vunpack.c.l.b16 %v2579
    %v2666 = vunpack.c.h.b16 %v2579
    %v2667 = vunpack.c.l.b16 %v2580
    %v2668 = vunpack.c.h.b16 %v2580
    %v2669 = vunpack.c.l.b16 %v2581
    %v2670 = vunpack.c.h.b16 %v2581
    %v2671 = vunpack.c.l.b16 %v2582
    %v2672 = vunpack.c.h.b16 %v2582
    %v2673 = vunpack.c.l.b16 %v2583
    %v2674 = vunpack.c.h.b16 %v2583
    %v2675 = vunpack.c.l.b16 %v2584
    %v2676 = vunpack.c.h.b16 %v2584
    %v2677 = vunpack.c.l.b16 %v2585
    %v2678 = vunpack.c.h.b16 %v2585
    %v2679 = vunpack.c.l.b16 %v2586
    %v2680 = vunpack.c.h.b16 %v2586
    %v2681 = vunpack.c.l.b16 %v2587
    %v2682 = vunpack.c.h.b16 %v2587
    %v2683 = vunpack.c.l.b16 %v2588
    %v2684 = vunpack.c.h.b16 %v2588
    %v2685 = vpack.c.b16 %v2623, %v2621
    %v2686 = vpack.c.b16 %v2624, %v2622
    %v2687 = vpack.c.b16 %v2627, %v2625
    %v2688 = vpack.c.b16 %v2628, %v2626
    %v2689 = vpack.c.b16 %v2631, %v2629
    %v2690 = vpack.c.b16 %v2632, %v2630
    %v2691 = vpack.c.b16 %v2635, %v2633
    %v2692 = vpack.c.b16 %v2636, %v2634
    %v2693 = vpack.c.b16 %v2639, %v2637
    %v2694 = vpack.c.b16 %v2640, %v2638
    %v2695 = vpack.c.b16 %v2643, %v2641
    %v2696 = vpack.c.b16 %v2644, %v2642
    %v2697 = vpack.c.b16 %v2647, %v2645
    %v2698 = vpack.c.b16 %v2648, %v2646
    %v2699 = vpack.c.b16 %v2651, %v2649
    %v2700 = vpack.c.b16 %v2652, %v2650
    %v2701 = vpack.c.b16 %v2655, %v2653
    %v2702 = vpack.c.b16 %v2656, %v2654
    %v2703 = vpack.c.b16 %v2659, %v2657
    %v2704 = vpack.c.b16 %v2660, %v2658
    %v2705 = vpack.c.b16 %v2663, %v2661
    %v2706 = vpack.c.b16 %v2664, %v2662
    %v2707 = vpack.c.b16 %v2667, %v2665
    %v2708 = vpack.c.b16 %v2668, %v2666
    %v2709 = vpack.c.b16 %v2671, %v2669
    %v2710 = vpack.c.b16 %v2672, %v2670
    %v2711 = vpack.c.b16 %v2675, %v2673
    %v2712 = vpack.c.b16 %v2676, %v2674
    %v2713 = vpack.c.b16 %v2679, %v2677
    %v2714 = vpack.c.b16 %v2680, %v2678
    %v2715 = vpack.c.b16 %v2683, %v2681
    %v2716 = vpack.c.b16 %v2684, %v2682
    %2749 = vmatprep.subr.bf16.mxu0 %v2686
    %2750 = vmatpush1.bf16.msra.mxu0 %v2685
    %2751 = vmatprep.subr.bf16.mxu0 %v2688
    %2752 = vmatpush1.bf16.msra.mxu0 %v2687
    %2753 = vmatprep.subr.bf16.mxu0 %v2690
    %2754 = vmatpush1.bf16.msra.mxu0 %v2689
    %2755 = vmatprep.subr.bf16.mxu0 %v2692
    %2756 = vmatpush1.bf16.msra.mxu0 %v2691
    %2757 = vmatprep.subr.bf16.mxu0 %v2694
    %2758 = vmatpush1.bf16.msra.mxu0 %v2693
    %2759 = vmatprep.subr.bf16.mxu0 %v2696
    %2760 = vmatpush1.bf16.msra.mxu0 %v2695
    %2761 = vmatprep.subr.bf16.mxu0 %v2698
    %2762 = vmatpush1.bf16.msra.mxu0 %v2697
    %2763 = vmatprep.subr.bf16.mxu0 %v2700
    %2764 = vmatpush1.bf16.msra.mxu0 %v2699
    %2765 = vmatprep.subr.bf16.mxu0 %v2702
    %2766 = vmatpush1.bf16.msra.mxu0 %v2701
    %2767 = vmatprep.subr.bf16.mxu0 %v2704
    %2768 = vmatpush1.bf16.msra.mxu0 %v2703
    %2769 = vmatprep.subr.bf16.mxu0 %v2706
    %2770 = vmatpush1.bf16.msra.mxu0 %v2705
    %2771 = vmatprep.subr.bf16.mxu0 %v2708
    %2772 = vmatpush1.bf16.msra.mxu0 %v2707
    %2773 = vmatprep.subr.bf16.mxu0 %v2710
    %2774 = vmatpush1.bf16.msra.mxu0 %v2709
    %2775 = vmatprep.subr.bf16.mxu0 %v2712
    %2776 = vmatpush1.bf16.msra.mxu0 %v2711
    %2777 = vmatprep.subr.bf16.mxu0 %v2714
    %2778 = vmatpush1.bf16.msra.mxu0 %v2713
    %2779 = vmatprep.subr.bf16.mxu0 %v2716
    %2780 = vmatpush1.bf16.msra.mxu0 %v2715
    %2781 = vmatprep.mubr.bf16.mxu0 %v2526
    %2782 = vmatmul.mubr.bf16.gmra.mrb[0].mxu0 %v2525
    %v2783 = vpop.f32.mrb[0].mxu0
    %v2784 = vadd.f32 0.0, %v2783
    %v2785 = vpop.f32.mrb[0].mxu0
    %v2786 = vadd.f32 0.0, %v2785
    %v2787 = vpop.f32.mrb[0].mxu0
    %v2788 = vadd.f32 0.0, %v2787
    %v2789 = vpop.f32.mrb[0].mxu0
    %v2790 = vadd.f32 0.0, %v2789
    %2791 = vmatprep.mubr.bf16.mxu0 %v2528
    %2792 = vmatmul.mubr.bf16.gmra.mrb[0].mxu0 %v2527
    %v2793 = vpop.f32.mrb[0].mxu0
    %v2794 = vadd.f32 0.0, %v2793
    %v2795 = vpop.f32.mrb[0].mxu0
    %v2796 = vadd.f32 0.0, %v2795
    %v2797 = vpop.f32.mrb[0].mxu0
    %v2798 = vadd.f32 0.0, %v2797
    %v2799 = vpop.f32.mrb[0].mxu0
    %v2800 = vadd.f32 0.0, %v2799
    %2801 = vmatprep.mubr.bf16.mxu0 %v2530
    %2802 = vmatmul.mubr.bf16.gmra.mrb[0].mxu0 %v2529
    %v2803 = vpop.f32.mrb[0].mxu0
    %v2804 = vadd.f32 0.0, %v2803
    %v2805 = vpop.f32.mrb[0].mxu0
    %v2806 = vadd.f32 0.0, %v2805
    %v2807 = vpop.f32.mrb[0].mxu0
    %v2808 = vadd.f32 0.0, %v2807
    %v2809 = vpop.f32.mrb[0].mxu0
    %v2810 = vadd.f32 0.0, %v2809
    %2811 = vmatprep.mubr.bf16.mxu0 %v2532
    %2812 = vmatmul.mubr.bf16.gmra.mrb[0].mxu0 %v2531
    %v2813 = vpop.f32.mrb[0].mxu0
    %v2814 = vadd.f32 0.0, %v2813
    %v2815 = vpop.f32.mrb[0].mxu0
    %v2816 = vadd.f32 0.0, %v2815
    %v2817 = vpop.f32.mrb[0].mxu0
    %v2818 = vadd.f32 0.0, %v2817
    %v2819 = vpop.f32.mrb[0].mxu0
    %v2820 = vadd.f32 0.0, %v2819
    %2821 = vmatprep.mubr.bf16.mxu0 %v2534
    %2822 = vmatmul.mubr.bf16.gmra.mrb[0].mxu0 %v2533
    %v2823 = vpop.f32.mrb[0].mxu0
    %v2824 = vadd.f32 0.0, %v2823
    %v2825 = vpop.f32.mrb[0].mxu0
    %v2826 = vadd.f32 0.0, %v2825
    %v2827 = vpop.f32.mrb[0].mxu0
    %v2828 = vadd.f32 0.0, %v2827
    %v2829 = vpop.f32.mrb[0].mxu0
    %v2830 = vadd.f32 0.0, %v2829
    %2831 = vmatprep.mubr.bf16.mxu0 %v2536
    %2832 = vmatmul.mubr.bf16.gmra.mrb[0].mxu0 %v2535
    %v2833 = vpop.f32.mrb[0].mxu0
    %v2834 = vadd.f32 0.0, %v2833
    %v2835 = vpop.f32.mrb[0].mxu0
    %v2836 = vadd.f32 0.0, %v2835
    %v2837 = vpop.f32.mrb[0].mxu0
    %v2838 = vadd.f32 0.0, %v2837
    %v2839 = vpop.f32.mrb[0].mxu0
    %v2840 = vadd.f32 0.0, %v2839
    %2841 = vmatprep.mubr.bf16.mxu0 %v2538
    %2842 = vmatmul.mubr.bf16.gmra.mrb[0].mxu0 %v2537
    %v2843 = vpop.f32.mrb[0].mxu0
    %v2844 = vadd.f32 0.0, %v2843
    %v2845 = vpop.f32.mrb[0].mxu0
    %v2846 = vadd.f32 0.0, %v2845
    %v2847 = vpop.f32.mrb[0].mxu0
    %v2848 = vadd.f32 0.0, %v2847
    %v2849 = vpop.f32.mrb[0].mxu0
    %v2850 = vadd.f32 0.0, %v2849
    %2851 = vmatprep.mubr.bf16.mxu0 %v2540
    %2852 = vmatmul.mubr.bf16.gmra.mrb[0].mxu0 %v2539
    %v2853 = vpop.f32.mrb[0].mxu0
    %v2854 = vadd.f32 0.0, %v2853
    %v2855 = vpop.f32.mrb[0].mxu0
    %v2856 = vadd.f32 0.0, %v2855
    %v2857 = vpop.f32.mrb[0].mxu0
    %v2858 = vadd.f32 0.0, %v2857
    %v2859 = vpop.f32.mrb[0].mxu0
    %v2860 = vadd.f32 0.0, %v2859
    %2861 = vmatprep.mubr.bf16.mxu0 %v2542
    %2862 = vmatmul.mubr.bf16.gmra.mrb[0].mxu0 %v2541
    %v2863 = vpop.f32.mrb[0].mxu0
    %v2864 = vadd.f32 0.0, %v2863
    %v2865 = vpop.f32.mrb[0].mxu0
    %v2866 = vadd.f32 0.0, %v2865
    %v2867 = vpop.f32.mrb[0].mxu0
    %v2868 = vadd.f32 0.0, %v2867
    %v2869 = vpop.f32.mrb[0].mxu0
    %v2870 = vadd.f32 0.0, %v2869
    %2871 = vmatprep.mubr.bf16.mxu0 %v2544
    %2872 = vmatmul.mubr.bf16.gmra.mrb[0].mxu0 %v2543
    %v2873 = vpop.f32.mrb[0].mxu0
    %v2874 = vadd.f32 0.0, %v2873
    %v2875 = vpop.f32.mrb[0].mxu0
    %v2876 = vadd.f32 0.0, %v2875
    %v2877 = vpop.f32.mrb[0].mxu0
    %v2878 = vadd.f32 0.0, %v2877
    %v2879 = vpop.f32.mrb[0].mxu0
    %v2880 = vadd.f32 0.0, %v2879
    %2881 = vmatprep.mubr.bf16.mxu0 %v2546
    %2882 = vmatmul.mubr.bf16.gmra.mrb[0].mxu0 %v2545
    %v2883 = vpop.f32.mrb[0].mxu0
    %v2884 = vadd.f32 0.0, %v2883
    %v2885 = vpop.f32.mrb[0].mxu0
    %v2886 = vadd.f32 0.0, %v2885
    %v2887 = vpop.f32.mrb[0].mxu0
    %v2888 = vadd.f32 0.0, %v2887
    %v2889 = vpop.f32.mrb[0].mxu0
    %v2890 = vadd.f32 0.0, %v2889
    %2891 = vmatprep.mubr.bf16.mxu0 %v2548
    %2892 = vmatmul.mubr.bf16.gmra.mrb[0].mxu0 %v2547
    %v2893 = vpop.f32.mrb[0].mxu0
    %v2894 = vadd.f32 0.0, %v2893
    %v2895 = vpop.f32.mrb[0].mxu0
    %v2896 = vadd.f32 0.0, %v2895
    %v2897 = vpop.f32.mrb[0].mxu0
    %v2898 = vadd.f32 0.0, %v2897
    %v2899 = vpop.f32.mrb[0].mxu0
    %v2900 = vadd.f32 0.0, %v2899
    %2901 = vmatprep.mubr.bf16.mxu0 %v2550
    %2902 = vmatmul.mubr.bf16.gmra.mrb[0].mxu0 %v2549
    %v2903 = vpop.f32.mrb[0].mxu0
    %v2904 = vadd.f32 0.0, %v2903
    %v2905 = vpop.f32.mrb[0].mxu0
    %v2906 = vadd.f32 0.0, %v2905
    %v2907 = vpop.f32.mrb[0].mxu0
    %v2908 = vadd.f32 0.0, %v2907
    %v2909 = vpop.f32.mrb[0].mxu0
    %v2910 = vadd.f32 0.0, %v2909
    %2911 = vmatprep.mubr.bf16.mxu0 %v2552
    %2912 = vmatmul.mubr.bf16.gmra.mrb[0].mxu0 %v2551
    %v2913 = vpop.f32.mrb[0].mxu0
    %v2914 = vadd.f32 0.0, %v2913
    %v2915 = vpop.f32.mrb[0].mxu0
    %v2916 = vadd.f32 0.0, %v2915
    %v2917 = vpop.f32.mrb[0].mxu0
    %v2918 = vadd.f32 0.0, %v2917
    %v2919 = vpop.f32.mrb[0].mxu0
    %v2920 = vadd.f32 0.0, %v2919
    %2921 = vmatprep.mubr.bf16.mxu0 %v2554
    %2922 = vmatmul.mubr.bf16.gmra.mrb[0].mxu0 %v2553
    %v2923 = vpop.f32.mrb[0].mxu0
    %v2924 = vadd.f32 0.0, %v2923
    %v2925 = vpop.f32.mrb[0].mxu0
    %v2926 = vadd.f32 0.0, %v2925
    %v2927 = vpop.f32.mrb[0].mxu0
    %v2928 = vadd.f32 0.0, %v2927
    %v2929 = vpop.f32.mrb[0].mxu0
    %v2930 = vadd.f32 0.0, %v2929
    %2931 = vmatprep.mubr.bf16.mxu0 %v2556
    %2932 = vmatmul.mubr.bf16.gmra.mrb[0].mxu0 %v2555
    %v2933 = vpop.f32.mrb[0].mxu0
    %v2934 = vadd.f32 0.0, %v2933
    %v2935 = vpop.f32.mrb[0].mxu0
    %v2936 = vadd.f32 0.0, %v2935
    %v2937 = vpop.f32.mrb[0].mxu0
    %v2938 = vadd.f32 0.0, %v2937
    %v2939 = vpop.f32.mrb[0].mxu0
    %v2940 = vadd.f32 0.0, %v2939
    %2941 = vdwg.mxu0
    %v2942 = vld [vmem:[#allocation10] sm:$0xff]
    %v2943 = vld [vmem:[#allocation10 + $0x8] sm:$0xff]
    %v2944 = vld [vmem:[#allocation10 + $0x10] sm:$0xff]
    %v2945 = vld [vmem:[#allocation10 + $0x18] sm:$0xff]
    %v2946 = vld [vmem:[#allocation10 + $0x20] sm:$0xff]
    %v2947 = vld [vmem:[#allocation10 + $0x28] sm:$0xff]
    %v2948 = vld [vmem:[#allocation10 + $0x30] sm:$0xff]
    %v2949 = vld [vmem:[#allocation10 + $0x38] sm:$0xff]
    %v2950 = vld [vmem:[#allocation10 + $0x40] sm:$0xff]
    %v2951 = vld [vmem:[#allocation10 + $0x48] sm:$0xff]
    %v2952 = vld [vmem:[#allocation10 + $0x50] sm:$0xff]
    %v2953 = vld [vmem:[#allocation10 + $0x58] sm:$0xff]
    %v2954 = vld [vmem:[#allocation10 + $0x60] sm:$0xff]
    %v2955 = vld [vmem:[#allocation10 + $0x68] sm:$0xff]
    %v2956 = vld [vmem:[#allocation10 + $0x70] sm:$0xff]
    %v2957 = vld [vmem:[#allocation10 + $0x78] sm:$0xff]
    %v2958 = vld [vmem:[#allocation10 + $0x80] sm:$0xff]
    %v2959 = vld [vmem:[#allocation10 + $0x88] sm:$0xff]
    %v2960 = vld [vmem:[#allocation10 + $0x90] sm:$0xff]
    %v2961 = vld [vmem:[#allocation10 + $0x98] sm:$0xff]
    %v2962 = vld [vmem:[#allocation10 + $0xa0] sm:$0xff]
    %v2963 = vld [vmem:[#allocation10 + $0xa8] sm:$0xff]
    %v2964 = vld [vmem:[#allocation10 + $0xb0] sm:$0xff]
    %v2965 = vld [vmem:[#allocation10 + $0xb8] sm:$0xff]
    %v2966 = vld [vmem:[#allocation10 + $0xc0] sm:$0xff]
    %v2967 = vld [vmem:[#allocation10 + $0xc8] sm:$0xff]
    %v2968 = vld [vmem:[#allocation10 + $0xd0] sm:$0xff]
    %v2969 = vld [vmem:[#allocation10 + $0xd8] sm:$0xff]
    %v2970 = vld [vmem:[#allocation10 + $0xe0] sm:$0xff]
    %v2971 = vld [vmem:[#allocation10 + $0xe8] sm:$0xff]
    %v2972 = vld [vmem:[#allocation10 + $0xf0] sm:$0xff]
    %v2973 = vld [vmem:[#allocation10 + $0xf8] sm:$0xff]
    %v2974 = vld [vmem:[#allocation10 + $0x100] sm:$0xff]
    %v2975 = vld [vmem:[#allocation10 + $0x108] sm:$0xff]
    %v2976 = vld [vmem:[#allocation10 + $0x110] sm:$0xff]
    %v2977 = vld [vmem:[#allocation10 + $0x118] sm:$0xff]
    %v2978 = vld [vmem:[#allocation10 + $0x120] sm:$0xff]
    %v2979 = vld [vmem:[#allocation10 + $0x128] sm:$0xff]
    %v2980 = vld [vmem:[#allocation10 + $0x130] sm:$0xff]
    %v2981 = vld [vmem:[#allocation10 + $0x138] sm:$0xff]
    %v2982 = vld [vmem:[#allocation10 + $0x140] sm:$0xff]
    %v2983 = vld [vmem:[#allocation10 + $0x148] sm:$0xff]
    %v2984 = vld [vmem:[#allocation10 + $0x150] sm:$0xff]
    %v2985 = vld [vmem:[#allocation10 + $0x158] sm:$0xff]
    %v2986 = vld [vmem:[#allocation10 + $0x160] sm:$0xff]
    %v2987 = vld [vmem:[#allocation10 + $0x168] sm:$0xff]
    %v2988 = vld [vmem:[#allocation10 + $0x170] sm:$0xff]
    %v2989 = vld [vmem:[#allocation10 + $0x178] sm:$0xff]
    %v2990 = vld [vmem:[#allocation10 + $0x180] sm:$0xff]
    %v2991 = vld [vmem:[#allocation10 + $0x188] sm:$0xff]
    %v2992 = vld [vmem:[#allocation10 + $0x190] sm:$0xff]
    %v2993 = vld [vmem:[#allocation10 + $0x198] sm:$0xff]
    %v2994 = vld [vmem:[#allocation10 + $0x1a0] sm:$0xff]
    %v2995 = vld [vmem:[#allocation10 + $0x1a8] sm:$0xff]
    %v2996 = vld [vmem:[#allocation10 + $0x1b0] sm:$0xff]
    %v2997 = vld [vmem:[#allocation10 + $0x1b8] sm:$0xff]
    %v2998 = vld [vmem:[#allocation10 + $0x1c0] sm:$0xff]
    %v2999 = vld [vmem:[#allocation10 + $0x1c8] sm:$0xff]
    %v3000 = vld [vmem:[#allocation10 + $0x1d0] sm:$0xff]
    %v3001 = vld [vmem:[#allocation10 + $0x1d8] sm:$0xff]
    %v3002 = vld [vmem:[#allocation10 + $0x1e0] sm:$0xff]
    %v3003 = vld [vmem:[#allocation10 + $0x1e8] sm:$0xff]
    %v3004 = vld [vmem:[#allocation10 + $0x1f0] sm:$0xff]
    %v3005 = vld [vmem:[#allocation10 + $0x1f8] sm:$0xff]
    %v3006 = vadd.f32 %v2942, %v2784
    %v3007 = vadd.f32 %v2943, %v2786
    %v3008 = vadd.f32 %v2944, %v2788
    %v3009 = vadd.f32 %v2945, %v2790
    %v3010 = vadd.f32 %v2946, %v2794
    %v3011 = vadd.f32 %v2947, %v2796
    %v3012 = vadd.f32 %v2948, %v2798
    %v3013 = vadd.f32 %v2949, %v2800
    %v3014 = vadd.f32 %v2950, %v2804
    %v3015 = vadd.f32 %v2951, %v2806
    %v3016 = vadd.f32 %v2952, %v2808
    %v3017 = vadd.f32 %v2953, %v2810
    %v3018 = vadd.f32 %v2954, %v2814
    %v3019 = vadd.f32 %v2955, %v2816
    %v3020 = vadd.f32 %v2956, %v2818
    %v3021 = vadd.f32 %v2957, %v2820
    %v3022 = vadd.f32 %v2958, %v2824
    %v3023 = vadd.f32 %v2959, %v2826
    %v3024 = vadd.f32 %v2960, %v2828
    %v3025 = vadd.f32 %v2961, %v2830
    %v3026 = vadd.f32 %v2962, %v2834
    %v3027 = vadd.f32 %v2963, %v2836
    %v3028 = vadd.f32 %v2964, %v2838
    %v3029 = vadd.f32 %v2965, %v2840
    %v3030 = vadd.f32 %v2966, %v2844
    %v3031 = vadd.f32 %v2967, %v2846
    %v3032 = vadd.f32 %v2968, %v2848
    %v3033 = vadd.f32 %v2969, %v2850
    %v3034 = vadd.f32 %v2970, %v2854
    %v3035 = vadd.f32 %v2971, %v2856
    %v3036 = vadd.f32 %v2972, %v2858
    %v3037 = vadd.f32 %v2973, %v2860
    %v3038 = vadd.f32 %v2974, %v2864
    %v3039 = vadd.f32 %v2975, %v2866
    %v3040 = vadd.f32 %v2976, %v2868
    %v3041 = vadd.f32 %v2977, %v2870
    %v3042 = vadd.f32 %v2978, %v2874
    %v3043 = vadd.f32 %v2979, %v2876
    %v3044 = vadd.f32 %v2980, %v2878
    %v3045 = vadd.f32 %v2981, %v2880
    %v3046 = vadd.f32 %v2982, %v2884
    %v3047 = vadd.f32 %v2983, %v2886
    %v3048 = vadd.f32 %v2984, %v2888
    %v3049 = vadd.f32 %v2985, %v2890
    %v3050 = vadd.f32 %v2986, %v2894
    %v3051 = vadd.f32 %v2987, %v2896
    %v3052 = vadd.f32 %v2988, %v2898
    %v3053 = vadd.f32 %v2989, %v2900
    %v3054 = vadd.f32 %v2990, %v2904
    %v3055 = vadd.f32 %v2991, %v2906
    %v3056 = vadd.f32 %v2992, %v2908
    %v3057 = vadd.f32 %v2993, %v2910
    %v3058 = vadd.f32 %v2994, %v2914
    %v3059 = vadd.f32 %v2995, %v2916
    %v3060 = vadd.f32 %v2996, %v2918
    %v3061 = vadd.f32 %v2997, %v2920
    %v3062 = vadd.f32 %v2998, %v2924
    %v3063 = vadd.f32 %v2999, %v2926
    %v3064 = vadd.f32 %v3000, %v2928
    %v3065 = vadd.f32 %v3001, %v2930
    %v3066 = vadd.f32 %v3002, %v2934
    %v3067 = vadd.f32 %v3003, %v2936
    %v3068 = vadd.f32 %v3004, %v2938
    %v3069 = vadd.f32 %v3005, %v2940
    %3070 = vst [vmem:[#allocation11] sm:$0xff] %v3006
    %3071 = vst [vmem:[#allocation11 + $0x8] sm:$0xff] %v3007
    %3072 = vst [vmem:[#allocation11 + $0x10] sm:$0xff] %v3008
    %3073 = vst [vmem:[#allocation11 + $0x18] sm:$0xff] %v3009
    %3074 = vst [vmem:[#allocation11 + $0x20] sm:$0xff] %v3010
    %3075 = vst [vmem:[#allocation11 + $0x28] sm:$0xff] %v3011
    %3076 = vst [vmem:[#allocation11 + $0x30] sm:$0xff] %v3012
    %3077 = vst [vmem:[#allocation11 + $0x38] sm:$0xff] %v3013
    %3078 = vst [vmem:[#allocation11 + $0x40] sm:$0xff] %v3014
    %3079 = vst [vmem:[#allocation11 + $0x48] sm:$0xff] %v3015
    %3080 = vst [vmem:[#allocation11 + $0x50] sm:$0xff] %v3016
    %3081 = vst [vmem:[#allocation11 + $0x58] sm:$0xff] %v3017
    %3082 = vst [vmem:[#allocation11 + $0x60] sm:$0xff] %v3018
    %3083 = vst [vmem:[#allocation11 + $0x68] sm:$0xff] %v3019
    %3084 = vst [vmem:[#allocation11 + $0x70] sm:$0xff] %v3020
    %3085 = vst [vmem:[#allocation11 + $0x78] sm:$0xff] %v3021
    %3086 = vst [vmem:[#allocation11 + $0x80] sm:$0xff] %v3022
    %3087 = vst [vmem:[#allocation11 + $0x88] sm:$0xff] %v3023
    %3088 = vst [vmem:[#allocation11 + $0x90] sm:$0xff] %v3024
    %3089 = vst [vmem:[#allocation11 + $0x98] sm:$0xff] %v3025
    %3090 = vst [vmem:[#allocation11 + $0xa0] sm:$0xff] %v3026
    %3091 = vst [vmem:[#allocation11 + $0xa8] sm:$0xff] %v3027
    %3092 = vst [vmem:[#allocation11 + $0xb0] sm:$0xff] %v3028
    %3093 = vst [vmem:[#allocation11 + $0xb8] sm:$0xff] %v3029
    %3094 = vst [vmem:[#allocation11 + $0xc0] sm:$0xff] %v3030
    %3095 = vst [vmem:[#allocation11 + $0xc8] sm:$0xff] %v3031
    %3096 = vst [vmem:[#allocation11 + $0xd0] sm:$0xff] %v3032
    %3097 = vst [vmem:[#allocation11 + $0xd8] sm:$0xff] %v3033
    %3098 = vst [vmem:[#allocation11 + $0xe0] sm:$0xff] %v3034
    %3099 = vst [vmem:[#allocation11 + $0xe8] sm:$0xff] %v3035
    %3100 = vst [vmem:[#allocation11 + $0xf0] sm:$0xff] %v3036
    %3101 = vst [vmem:[#allocation11 + $0xf8] sm:$0xff] %v3037
    %3102 = vst [vmem:[#allocation11 + $0x100] sm:$0xff] %v3038
    %3103 = vst [vmem:[#allocation11 + $0x108] sm:$0xff] %v3039
    %3104 = vst [vmem:[#allocation11 + $0x110] sm:$0xff] %v3040
    %3105 = vst [vmem:[#allocation11 + $0x118] sm:$0xff] %v3041
    %3106 = vst [vmem:[#allocation11 + $0x120] sm:$0xff] %v3042
    %3107 = vst [vmem:[#allocation11 + $0x128] sm:$0xff] %v3043
    %3108 = vst [vmem:[#allocation11 + $0x130] sm:$0xff] %v3044
    %3109 = vst [vmem:[#allocation11 + $0x138] sm:$0xff] %v3045
    %3110 = vst [vmem:[#allocation11 + $0x140] sm:$0xff] %v3046
    %3111 = vst [vmem:[#allocation11 + $0x148] sm:$0xff] %v3047
    %3112 = vst [vmem:[#allocation11 + $0x150] sm:$0xff] %v3048
    %3113 = vst [vmem:[#allocation11 + $0x158] sm:$0xff] %v3049
    %3114 = vst [vmem:[#allocation11 + $0x160] sm:$0xff] %v3050
    %3115 = vst [vmem:[#allocation11 + $0x168] sm:$0xff] %v3051
    %3116 = vst [vmem:[#allocation11 + $0x170] sm:$0xff] %v3052
    %3117 = vst [vmem:[#allocation11 + $0x178] sm:$0xff] %v3053
    %3118 = vst [vmem:[#allocation11 + $0x180] sm:$0xff] %v3054
    %3119 = vst [vmem:[#allocation11 + $0x188] sm:$0xff] %v3055
    %3120 = vst [vmem:[#allocation11 + $0x190] sm:$0xff] %v3056
    %3121 = vst [vmem:[#allocation11 + $0x198] sm:$0xff] %v3057
    %3122 = vst [vmem:[#allocation11 + $0x1a0] sm:$0xff] %v3058
    %3123 = vst [vmem:[#allocation11 + $0x1a8] sm:$0xff] %v3059
    %3124 = vst [vmem:[#allocation11 + $0x1b0] sm:$0xff] %v3060
    %3125 = vst [vmem:[#allocation11 + $0x1b8] sm:$0xff] %v3061
    %3126 = vst [vmem:[#allocation11 + $0x1c0] sm:$0xff] %v3062
    %3127 = vst [vmem:[#allocation11 + $0x1c8] sm:$0xff] %v3063
    %3128 = vst [vmem:[#allocation11 + $0x1d0] sm:$0xff] %v3064
    %3129 = vst [vmem:[#allocation11 + $0x1d8] sm:$0xff] %v3065
    %3130 = vst [vmem:[#allocation11 + $0x1e0] sm:$0xff] %v3066
    %3131 = vst [vmem:[#allocation11 + $0x1e8] sm:$0xff] %v3067
    %3132 = vst [vmem:[#allocation11 + $0x1f0] sm:$0xff] %v3068
    %3133 = vst [vmem:[#allocation11 + $0x1f8] sm:$0xff] %v3069
    // Predicated region
    $region42: #{tpu_custom_call.1} parent=1 // pred_check
      _
    $region43: #{tpu_custom_call.1} parent=1 // pred_check_branch
      %3135 = sbr.rel (0) target = $region45
    $region44: #{tpu_custom_call.1} parent=1 // pred_region
      %s3137 = ssub.s32 8192, 8192
      %3138 = vsyncadd [#allocation4], %s3137
      %s3139 = sshll.u32 [#allocation11], 4
      %s3140 = int_to_ptr.vmem [resolvable:$true] %s3139
      %3145 = dma.vmem_to_hbm [thread:$0]  %s3140, 8192, %s5, [#allocation4], 256, 256, 16
    $region45: #{tpu_custom_call.1} parent=1 // pred_fallthru
      _
    // Predicated region
    $region46: #{tpu_custom_call.1} parent=1 // pred_check
      _
    $region47: #{tpu_custom_call.1} parent=1 // pred_check_branch
      %3147 = sbr.rel (0) target = $region49
    $region48: #{tpu_custom_call.1} parent=1 // pred_region
      %3148 = dma.done [#allocation4], 8192
    $region49: #{tpu_custom_call.1} parent=1 // pred_fallthru
      _
    %3149 = vsyncpa [#allocation3], 1
    %3150 = vsyncpa [#allocation6], 1
    %3151 = vsyncpa [#allocation9], 1
    %3152 = vsyncpa [#allocation4], 1

</llo_original>
